<compile_context>
chip_gen: v6e
topology: v6e:2x2x1
jax: 0.10.0
libtpu: 0.0.40
codegen_flags: <defaults>
</compile_context>

<pallas_src>
import numpy as np
import jax
import jax.numpy as jnp
from jax.experimental import pallas as pl
from jax.experimental.pallas import tpu as pltpu

# Hyper-parameters fixed by the reference PyTorch module.
d_k = d_v = 64
d_model = 512
n_heads = 8
LN_EPS = 1e-5  # PyTorch nn.LayerNorm default eps


# ------------------------------ Pallas kernel --------------------------------

def mha_kernel(q_ref, k_ref, v_ref, mask_ref,
               wq_ref, bq_ref, wk_ref, bk_ref, wv_ref, bv_ref,
               wo_ref, bo_ref, g_ref, beta_ref, out_ref):
    """Fused MHA + residual + LayerNorm for one (Bt, S) batch block.

    q/k/v refs: (M, d_model) bf16 with M = Bt*S (tokens flattened in wrapper).
    mask_ref:   (Bt, S, S) int8, nonzero where the score must be masked.
    Weights are pre-transposed (in, out), head-fused, bf16, VMEM-resident;
    the 1/sqrt(d_k) scale is already folded into wq/bq.
    """
    M, D = q_ref.shape
    Bt, S, _ = mask_ref.shape

    q_act = q_ref[...]                                   # (M, D) bf16 (residual too)

    # Fused full-width projections: bf16 operands, f32 accumulation on the MXU.
    Q = jnp.dot(q_act, wq_ref[...], preferred_element_type=jnp.float32) + bq_ref[...]
    K = jnp.dot(k_ref[...], wk_ref[...], preferred_element_type=jnp.float32) + bk_ref[...]
    V = jnp.dot(v_ref[...], wv_ref[...], preferred_element_type=jnp.float32) + bv_ref[...]

    # Boolean mask synthesized once per block (int8 -> f32 compare, VPU select).
    masked = mask_ref[...].astype(jnp.float32) > 0.5     # (Bt, S, S) bool
    neg_fill = jnp.float32(-1e9)

    # Per-head attention from the fused (M, 512) layout: static lane slices and
    # layout-preserving (M, dk) <-> (Bt, S, dk) reshapes — no head transposes.
    ctx_parts = []
    for h in range(n_heads):
        lo = h * d_k
        qh = Q[:, lo:lo + d_k].reshape(Bt, S, d_k).astype(jnp.bfloat16)
        kh = K[:, lo:lo + d_k].reshape(Bt, S, d_k).astype(jnp.bfloat16)
        vh = V[:, lo:lo + d_v].reshape(Bt, S, d_v).astype(jnp.bfloat16)

        s = jnp.einsum('bqd,bkd->bqk', qh, kh,
                       preferred_element_type=jnp.float32)        # (Bt, S, S)
        s = jnp.where(masked, neg_fill, s)                        # masked_fill_

        m = jnp.max(s, axis=-1, keepdims=True)
        p = jnp.exp(s - m)                                        # f32 (v5e-safe)
        denom = jnp.sum(p, axis=-1, keepdims=True)
        attn = p * pl.reciprocal(denom, approx=True)              # softmax(dim=-1)

        ctx_h = jnp.einsum('bqk,bkd->bqd', attn.astype(jnp.bfloat16), vh,
                           preferred_element_type=jnp.float32)    # (Bt, S, d_v)
        ctx_parts.append(ctx_h.reshape(M, d_v).astype(jnp.bfloat16))

    # Lane-axis concat rebuilds the head-fused (M, 512) context so the output
    # projection remains a single full-width matmul.
    ctx = jnp.concatenate(ctx_parts, axis=-1)                     # (M, 512) bf16

    out = (jnp.dot(ctx, wo_ref[...], preferred_element_type=jnp.float32)
           + bo_ref[...] + q_act.astype(jnp.float32))             # linear + residual

    # LayerNorm (f32).
    mean = jnp.mean(out, axis=-1, keepdims=True)
    c = out - mean
    var = jnp.mean(c * c, axis=-1, keepdims=True)
    out_ref[...] = c * jax.lax.rsqrt(var + LN_EPS) * g_ref[...] + beta_ref[...]


# ------------------------------ wrapper / glue --------------------------------

def _pick_batch_tile(B, S):
    """Largest divisor Bt of B whose token slab Bt*S fills the MXU M dimension
    (target ~512 rows) without blowing up VMEM; prefer grid length >= 2 when
    both TensorCores (v7x megacore) can still be fed >= 256 rows per step."""
    target_rows = 512
    max_rows = max(target_rows, S)          # always allow at least one sequence
    bt = 1
    for d in range(1, B + 1):
        if B % d == 0 and d * S <= max_rows:
            bt = d
    if B // bt < 2 and bt > 1 and (bt // 2) * S >= 256 and B % (bt // 2) == 0:
        bt //= 2
    return bt


def multi_head_attention(q_in, k_in, v_in, attn_mask, params):
    """q/k/v: (B, S, d_model) f32; attn_mask: bool (B, S, S), True = masked."""
    B, S, D = q_in.shape
    assert D == d_model
    # TODO(synk): pad S to a multiple of 8 for ragged sequence lengths.
    assert S % 8 == 0, "sequence length must be a multiple of 8"

    bt = _pick_batch_tile(B, S)
    grid = (B // bt,)
    m_blk = bt * S

    # Parameter prep (outside the kernel, once per call): fold the 1/sqrt(d_k)
    # attention scale into W_Q / b_Q, cast matmul weights to bf16.
    scale = 1.0 / float(np.sqrt(d_k))
    wq = (params['wq'] * scale).astype(jnp.bfloat16)
    bq = (params['bq'] * scale).astype(jnp.float32)
    wk = params['wk'].astype(jnp.bfloat16)
    wv = params['wv'].astype(jnp.bfloat16)
    wo = params['wo'].astype(jnp.bfloat16)

    # Activations: flatten tokens and cast to bf16 (halves HBM->VMEM bytes).
    q2 = q_in.reshape(B * S, D).astype(jnp.bfloat16)
    k2 = k_in.reshape(B * S, D).astype(jnp.bfloat16)
    v2 = v_in.reshape(B * S, D).astype(jnp.bfloat16)
    # Mask shipped as int8 (4x less traffic than a precomputed f32 additive mask).
    mask_i8 = attn_mask.astype(jnp.int8)

    act_spec = pl.BlockSpec((m_blk, D), lambda b: (b, 0))
    mask_spec = pl.BlockSpec((bt, S, S), lambda b: (b, 0, 0))
    # Full-array VMEM residency: copied in once, not double-buffered across grid.
    resident = pl.BlockSpec(memory_space=pltpu.MemorySpace.VMEM)

    out2 = pl.pallas_call(
        mha_kernel,
        out_shape=jax.ShapeDtypeStruct((B * S, D), jnp.float32),
        grid=grid,
        in_specs=[act_spec, act_spec, act_spec, mask_spec,
                  resident, resident,          # wq, bq
                  resident, resident,          # wk, bk
                  resident, resident,          # wv, bv
                  resident, resident,          # wo, bo
                  resident, resident],         # gamma, beta
        out_specs=act_spec,
        compiler_params=pltpu.CompilerParams(
            dimension_semantics=("parallel",)),
    )(q2, k2, v2, mask_i8,
      wq, bq, wk, params['bk'], wv, params['bv'],
      wo, params['bo'], params['gamma'], params['beta'])

    return out2.reshape(B, S, D)


# ------------------------------ parameters ------------------------------------

def init_params(key):
    ks = jax.random.split(key, 8)
    s = 0.02

    def lin(k, din, dout):
        return jax.random.normal(k, (din, dout), jnp.float32) * s

    # nn.Linear weights pre-transposed to (in, out); head-fused layout
    # (column j <-> head j // d_k, dim j % d_k) matches the PyTorch .view split.
    return dict(
        wq=lin(ks[0], d_model, n_heads * d_k),
        bq=(jax.random.normal(ks[4], (1, n_heads * d_k), jnp.float32) * s),
        wk=lin(ks[1], d_model, n_heads * d_k),
        bk=(jax.random.normal(ks[5], (1, n_heads * d_k), jnp.float32) * s),
        wv=lin(ks[2], d_model, n_heads * d_v),
        bv=(jax.random.normal(ks[6], (1, n_heads * d_v), jnp.float32) * s),
        wo=lin(ks[3], n_heads * d_v, d_model),
        bo=(jax.random.normal(ks[7], (1, d_model), jnp.float32) * s),
        gamma=jnp.ones((1, d_model), jnp.float32),
        beta=jnp.zeros((1, d_model), jnp.float32),
    )


# ------------------------------ pure-JAX reference -----------------------------

def mha_reference(q_in, k_in, v_in, attn_mask, params):
    B, S, D = q_in.shape
    Q = q_in @ params['wq'] + params['bq']
    K = k_in @ params['wk'] + params['bk']
    V = v_in @ params['wv'] + params['bv']
    qh = Q.reshape(B, S, n_heads, d_k).transpose(0, 2, 1, 3)
    kh = K.reshape(B, S, n_heads, d_k).transpose(0, 2, 1, 3)
    vh = V.reshape(B, S, n_heads, d_v).transpose(0, 2, 1, 3)
    scores = jnp.einsum('bhqd,bhkd->bhqk', qh, kh) / np.sqrt(d_k)
    scores = jnp.where(attn_mask[:, None, :, :], jnp.float32(-1e9), scores)
    attn = jax.nn.softmax(scores, axis=-1)
    ctx = jnp.einsum('bhqk,bhkd->bhqd', attn, vh)
    ctx = ctx.transpose(0, 2, 1, 3).reshape(B, S, n_heads * d_v)
    out = ctx @ params['wo'] + params['bo'] + q_in
    mean = out.mean(-1, keepdims=True)
    c = out - mean
    var = (c * c).mean(-1, keepdims=True)
    return c * jax.lax.rsqrt(var + LN_EPS) * params['gamma'] + params['beta']


# --------------------------------- demo ----------------------------------------

if __name__ == "__main__":
    B, S = 2, 8

    key = jax.random.PRNGKey(0)
    kp, kq, kk, kv = jax.random.split(key, 4)
    params = init_params(kp)

    q_in = jax.random.normal(kq, (B, S, d_model), jnp.float32)
    k_in = jax.random.normal(kk, (B, S, d_model), jnp.float32)
    v_in = jax.random.normal(kv, (B, S, d_model), jnp.float32)
    # Mask the last key position for every query (simulates a PAD token).
    attn_mask = jnp.zeros((B, S, S), jnp.bool_).at[:, :, -1].set(True)

    out = jax.jit(multi_head_attention)(q_in, k_in, v_in, attn_mask, params)
    jax.block_until_ready(out)

    ref = mha_reference(q_in, k_in, v_in, attn_mask, params)

    assert out.shape == (B, S, d_model)
    assert bool(jnp.all(jnp.isfinite(out)))
    max_err = float(jnp.max(jnp.abs(out - ref)))
    assert max_err < 0.1, f"max abs error vs reference: {max_err}"
    print("KERNEL_OK")
</pallas_src>

<mosaic_0001>
module attributes {stable_mosaic.version = 11 : i64} {
  func.func @mha_kernel(%arg0: i32, %arg1: memref<16x512xbf16, #tpu.memory_space<vmem>>, %arg2: memref<16x512xbf16, #tpu.memory_space<vmem>>, %arg3: memref<16x512xbf16, #tpu.memory_space<vmem>>, %arg4: memref<2x8x8xi8, #tpu.memory_space<vmem>>, %arg5: memref<512x512xbf16, #tpu.memory_space<vmem>>, %arg6: memref<1x512xf32, #tpu.memory_space<vmem>>, %arg7: memref<512x512xbf16, #tpu.memory_space<vmem>>, %arg8: memref<1x512xf32, #tpu.memory_space<vmem>>, %arg9: memref<512x512xbf16, #tpu.memory_space<vmem>>, %arg10: memref<1x512xf32, #tpu.memory_space<vmem>>, %arg11: memref<512x512xbf16, #tpu.memory_space<vmem>>, %arg12: memref<1x512xf32, #tpu.memory_space<vmem>>, %arg13: memref<1x512xf32, #tpu.memory_space<vmem>>, %arg14: memref<1x512xf32, #tpu.memory_space<vmem>>, %arg15: memref<16x512xf32, #tpu.memory_space<vmem>>) attributes {dimension_semantics = [#tpu.dimension_semantics<parallel>], iteration_bounds = array<i64: 1>, scalar_prefetch = 0 : i64, scratch_operands = 0 : i64, tpu.core_type = #tpu.core_type<tc>, window_params = [{transform_indices = @transform_0, window_bounds = array<i64: 16, 512>}, {transform_indices = @transform_1, window_bounds = array<i64: 16, 512>}, {transform_indices = @transform_2, window_bounds = array<i64: 16, 512>}, {transform_indices = @transform_3, window_bounds = array<i64: 2, 8, 8>}, {pipeline_mode = #tpu.pipeline_mode<synchronous>, transform_indices = @transform_4, window_bounds = array<i64: 512, 512>}, {pipeline_mode = #tpu.pipeline_mode<synchronous>, transform_indices = @transform_5, window_bounds = array<i64: 1, 512>}, {pipeline_mode = #tpu.pipeline_mode<synchronous>, transform_indices = @transform_6, window_bounds = array<i64: 512, 512>}, {pipeline_mode = #tpu.pipeline_mode<synchronous>, transform_indices = @transform_7, window_bounds = array<i64: 1, 512>}, {pipeline_mode = #tpu.pipeline_mode<synchronous>, transform_indices = @transform_8, window_bounds = array<i64: 512, 512>}, {pipeline_mode = #tpu.pipeline_mode<synchronous>, transform_indices = @transform_9, window_bounds = array<i64: 1, 512>}, {pipeline_mode = #tpu.pipeline_mode<synchronous>, transform_indices = @transform_10, window_bounds = array<i64: 512, 512>}, {pipeline_mode = #tpu.pipeline_mode<synchronous>, transform_indices = @transform_11, window_bounds = array<i64: 1, 512>}, {pipeline_mode = #tpu.pipeline_mode<synchronous>, transform_indices = @transform_12, window_bounds = array<i64: 1, 512>}, {pipeline_mode = #tpu.pipeline_mode<synchronous>, transform_indices = @transform_13, window_bounds = array<i64: 1, 512>}, {transform_indices = @transform_14, window_bounds = array<i64: 16, 512>}]} {
    %c0 = arith.constant 0 : index
    %c0_0 = arith.constant 0 : index
    %0 = vector.load %arg1[%c0, %c0_0] : memref<16x512xbf16, #tpu.memory_space<vmem>>, vector<16x512xbf16>
    %c0_1 = arith.constant 0 : index
    %c0_2 = arith.constant 0 : index
    %1 = vector.load %arg5[%c0_1, %c0_2] : memref<512x512xbf16, #tpu.memory_space<vmem>>, vector<512x512xbf16>
    %cst = arith.constant dense<0.000000e+00> : vector<16x512xf32>
    %2 = tpu.matmul %0, %1, %cst {dimension_numbers = #tpu.dot_dimension_numbers<[1], [0], [0], [1], [0, 0, 1, 1], [], []>} : vector<16x512xbf16>, vector<512x512xbf16>, vector<16x512xf32> -> vector<16x512xf32>
    %c0_3 = arith.constant 0 : index
    %c0_4 = arith.constant 0 : index
    %3 = vector.load %arg6[%c0_3, %c0_4] : memref<1x512xf32, #tpu.memory_space<vmem>>, vector<1x512xf32>
    %4 = vector.broadcast %3 : vector<1x512xf32> to vector<16x512xf32>
    %5 = arith.addf %2, %4 : vector<16x512xf32>
    %c0_5 = arith.constant 0 : index
    %c0_6 = arith.constant 0 : index
    %6 = vector.load %arg2[%c0_5, %c0_6] : memref<16x512xbf16, #tpu.memory_space<vmem>>, vector<16x512xbf16>
    %c0_7 = arith.constant 0 : index
    %c0_8 = arith.constant 0 : index
    %7 = vector.load %arg7[%c0_7, %c0_8] : memref<512x512xbf16, #tpu.memory_space<vmem>>, vector<512x512xbf16>
    %cst_9 = arith.constant dense<0.000000e+00> : vector<16x512xf32>
    %8 = tpu.matmul %6, %7, %cst_9 {dimension_numbers = #tpu.dot_dimension_numbers<[1], [0], [0], [1], [0, 0, 1, 1], [], []>} : vector<16x512xbf16>, vector<512x512xbf16>, vector<16x512xf32> -> vector<16x512xf32>
    %c0_10 = arith.constant 0 : index
    %c0_11 = arith.constant 0 : index
    %9 = vector.load %arg8[%c0_10, %c0_11] : memref<1x512xf32, #tpu.memory_space<vmem>>, vector<1x512xf32>
    %10 = vector.broadcast %9 : vector<1x512xf32> to vector<16x512xf32>
    %11 = arith.addf %8, %10 : vector<16x512xf32>
    %c0_12 = arith.constant 0 : index
    %c0_13 = arith.constant 0 : index
    %12 = vector.load %arg3[%c0_12, %c0_13] : memref<16x512xbf16, #tpu.memory_space<vmem>>, vector<16x512xbf16>
    %c0_14 = arith.constant 0 : index
    %c0_15 = arith.constant 0 : index
    %13 = vector.load %arg9[%c0_14, %c0_15] : memref<512x512xbf16, #tpu.memory_space<vmem>>, vector<512x512xbf16>
    %cst_16 = arith.constant dense<0.000000e+00> : vector<16x512xf32>
    %14 = tpu.matmul %12, %13, %cst_16 {dimension_numbers = #tpu.dot_dimension_numbers<[1], [0], [0], [1], [0, 0, 1, 1], [], []>} : vector<16x512xbf16>, vector<512x512xbf16>, vector<16x512xf32> -> vector<16x512xf32>
    %c0_17 = arith.constant 0 : index
    %c0_18 = arith.constant 0 : index
    %15 = vector.load %arg10[%c0_17, %c0_18] : memref<1x512xf32, #tpu.memory_space<vmem>>, vector<1x512xf32>
    %16 = vector.broadcast %15 : vector<1x512xf32> to vector<16x512xf32>
    %17 = arith.addf %14, %16 : vector<16x512xf32>
    %c0_19 = arith.constant 0 : index
    %c0_20 = arith.constant 0 : index
    %c0_21 = arith.constant 0 : index
    %18 = vector.load %arg4[%c0_19, %c0_20, %c0_21] : memref<2x8x8xi8, #tpu.memory_space<vmem>>, vector<2x8x8xi8>
    %19 = arith.sitofp %18 : vector<2x8x8xi8> to vector<2x8x8xf32>
    %cst_22 = arith.constant 5.000000e-01 : f32
    %20 = vector.broadcast %cst_22 : f32 to vector<2x8x8xf32>
    %21 = arith.cmpf ogt, %19, %20 : vector<2x8x8xf32>
    %22 = vector.extract_strided_slice %5 {offsets = [0, 0], sizes = [16, 64], strides = [1, 1]} : vector<16x512xf32> to vector<16x64xf32>
    %23 = vector.shape_cast %22 : vector<16x64xf32> to vector<2x8x64xf32>
    %24 = arith.truncf %23 : vector<2x8x64xf32> to vector<2x8x64xbf16>
    %25 = vector.extract_strided_slice %11 {offsets = [0, 0], sizes = [16, 64], strides = [1, 1]} : vector<16x512xf32> to vector<16x64xf32>
    %26 = vector.shape_cast %25 : vector<16x64xf32> to vector<2x8x64xf32>
    %27 = arith.truncf %26 : vector<2x8x64xf32> to vector<2x8x64xbf16>
    %28 = vector.extract_strided_slice %17 {offsets = [0, 0], sizes = [16, 64], strides = [1, 1]} : vector<16x512xf32> to vector<16x64xf32>
    %29 = vector.shape_cast %28 : vector<16x64xf32> to vector<2x8x64xf32>
    %30 = arith.truncf %29 : vector<2x8x64xf32> to vector<2x8x64xbf16>
    "tpu.trace_start"() <{level = 10 : i32, message = "bqd,bkd->bqk"}> : () -> ()
    %cst_23 = arith.constant dense<0.000000e+00> : vector<2x8x8xf32>
    %31 = tpu.matmul %24, %27, %cst_23 {dimension_numbers = #tpu.dot_dimension_numbers<[2], [2], [1], [1], [0, 0, 0, 1, 1, 1], [0], [0]>} : vector<2x8x64xbf16>, vector<2x8x64xbf16>, vector<2x8x8xf32> -> vector<2x8x8xf32>
    %cst_24 = arith.constant -1.000000e+09 : f32
    "tpu.trace_stop"() : () -> ()
    %32 = vector.broadcast %cst_24 : f32 to vector<2x8x8xf32>
    %33 = arith.select %21, %32, %31 : vector<2x8x8xi1>, vector<2x8x8xf32>
    %cst_25 = arith.constant dense<0xFF800000> : vector<2x8xf32>
    %34 = vector.multi_reduction <maximumf>, %33, %cst_25 [2] : vector<2x8x8xf32> to vector<2x8xf32>
    %35 = vector.shape_cast %34 : vector<2x8xf32> to vector<2x8x1xf32>
    %36 = vector.broadcast %35 : vector<2x8x1xf32> to vector<2x8x8xf32>
    %37 = arith.subf %33, %36 : vector<2x8x8xf32>
    %38 = math.exp %37 : vector<2x8x8xf32>
    %cst_26 = arith.constant dense<0.000000e+00> : vector<2x8xf32>
    %39 = vector.multi_reduction <add>, %38, %cst_26 [2] : vector<2x8x8xf32> to vector<2x8xf32>
    %40 = vector.shape_cast %39 : vector<2x8xf32> to vector<2x8x1xf32>
    %41 = tpu.reciprocal %40 {approx = true} : vector<2x8x1xf32> -> vector<2x8x1xf32>
    %42 = vector.broadcast %41 : vector<2x8x1xf32> to vector<2x8x8xf32>
    %43 = arith.mulf %38, %42 : vector<2x8x8xf32>
    %44 = arith.truncf %43 : vector<2x8x8xf32> to vector<2x8x8xbf16>
    "tpu.trace_start"() <{level = 10 : i32, message = "bqk,bkd->bqd"}> : () -> ()
    %cst_27 = arith.constant dense<0.000000e+00> : vector<2x8x64xf32>
    %45 = tpu.matmul %44, %30, %cst_27 {dimension_numbers = #tpu.dot_dimension_numbers<[2], [1], [1], [2], [0, 0, 0, 1, 1, 2], [0], [0]>} : vector<2x8x8xbf16>, vector<2x8x64xbf16>, vector<2x8x64xf32> -> vector<2x8x64xf32>
    "tpu.trace_stop"() : () -> ()
    %46 = vector.shape_cast %45 : vector<2x8x64xf32> to vector<16x64xf32>
    %47 = arith.truncf %46 : vector<16x64xf32> to vector<16x64xbf16>
    %48 = vector.extract_strided_slice %5 {offsets = [0, 64], sizes = [16, 64], strides = [1, 1]} : vector<16x512xf32> to vector<16x64xf32>
    %49 = vector.shape_cast %48 : vector<16x64xf32> to vector<2x8x64xf32>
    %50 = arith.truncf %49 : vector<2x8x64xf32> to vector<2x8x64xbf16>
    %51 = vector.extract_strided_slice %11 {offsets = [0, 64], sizes = [16, 64], strides = [1, 1]} : vector<16x512xf32> to vector<16x64xf32>
    %52 = vector.shape_cast %51 : vector<16x64xf32> to vector<2x8x64xf32>
    %53 = arith.truncf %52 : vector<2x8x64xf32> to vector<2x8x64xbf16>
    %54 = vector.extract_strided_slice %17 {offsets = [0, 64], sizes = [16, 64], strides = [1, 1]} : vector<16x512xf32> to vector<16x64xf32>
    %55 = vector.shape_cast %54 : vector<16x64xf32> to vector<2x8x64xf32>
    %56 = arith.truncf %55 : vector<2x8x64xf32> to vector<2x8x64xbf16>
    "tpu.trace_start"() <{level = 10 : i32, message = "bqd,bkd->bqk"}> : () -> ()
    %cst_28 = arith.constant dense<0.000000e+00> : vector<2x8x8xf32>
    %57 = tpu.matmul %50, %53, %cst_28 {dimension_numbers = #tpu.dot_dimension_numbers<[2], [2], [1], [1], [0, 0, 0, 1, 1, 1], [0], [0]>} : vector<2x8x64xbf16>, vector<2x8x64xbf16>, vector<2x8x8xf32> -> vector<2x8x8xf32>
    %cst_29 = arith.constant -1.000000e+09 : f32
    "tpu.trace_stop"() : () -> ()
    %58 = vector.broadcast %cst_29 : f32 to vector<2x8x8xf32>
    %59 = arith.select %21, %58, %57 : vector<2x8x8xi1>, vector<2x8x8xf32>
    %cst_30 = arith.constant dense<0xFF800000> : vector<2x8xf32>
    %60 = vector.multi_reduction <maximumf>, %59, %cst_30 [2] : vector<2x8x8xf32> to vector<2x8xf32>
    %61 = vector.shape_cast %60 : vector<2x8xf32> to vector<2x8x1xf32>
    %62 = vector.broadcast %61 : vector<2x8x1xf32> to vector<2x8x8xf32>
    %63 = arith.subf %59, %62 : vector<2x8x8xf32>
    %64 = math.exp %63 : vector<2x8x8xf32>
    %cst_31 = arith.constant dense<0.000000e+00> : vector<2x8xf32>
    %65 = vector.multi_reduction <add>, %64, %cst_31 [2] : vector<2x8x8xf32> to vector<2x8xf32>
    %66 = vector.shape_cast %65 : vector<2x8xf32> to vector<2x8x1xf32>
    %67 = tpu.reciprocal %66 {approx = true} : vector<2x8x1xf32> -> vector<2x8x1xf32>
    %68 = vector.broadcast %67 : vector<2x8x1xf32> to vector<2x8x8xf32>
    %69 = arith.mulf %64, %68 : vector<2x8x8xf32>
    %70 = arith.truncf %69 : vector<2x8x8xf32> to vector<2x8x8xbf16>
    "tpu.trace_start"() <{level = 10 : i32, message = "bqk,bkd->bqd"}> : () -> ()
    %cst_32 = arith.constant dense<0.000000e+00> : vector<2x8x64xf32>
    %71 = tpu.matmul %70, %56, %cst_32 {dimension_numbers = #tpu.dot_dimension_numbers<[2], [1], [1], [2], [0, 0, 0, 1, 1, 2], [0], [0]>} : vector<2x8x8xbf16>, vector<2x8x64xbf16>, vector<2x8x64xf32> -> vector<2x8x64xf32>
    "tpu.trace_stop"() : () -> ()
    %72 = vector.shape_cast %71 : vector<2x8x64xf32> to vector<16x64xf32>
    %73 = arith.truncf %72 : vector<16x64xf32> to vector<16x64xbf16>
    %74 = vector.extract_strided_slice %5 {offsets = [0, 128], sizes = [16, 64], strides = [1, 1]} : vector<16x512xf32> to vector<16x64xf32>
    %75 = vector.shape_cast %74 : vector<16x64xf32> to vector<2x8x64xf32>
    %76 = arith.truncf %75 : vector<2x8x64xf32> to vector<2x8x64xbf16>
    %77 = vector.extract_strided_slice %11 {offsets = [0, 128], sizes = [16, 64], strides = [1, 1]} : vector<16x512xf32> to vector<16x64xf32>
    %78 = vector.shape_cast %77 : vector<16x64xf32> to vector<2x8x64xf32>
    %79 = arith.truncf %78 : vector<2x8x64xf32> to vector<2x8x64xbf16>
    %80 = vector.extract_strided_slice %17 {offsets = [0, 128], sizes = [16, 64], strides = [1, 1]} : vector<16x512xf32> to vector<16x64xf32>
    %81 = vector.shape_cast %80 : vector<16x64xf32> to vector<2x8x64xf32>
    %82 = arith.truncf %81 : vector<2x8x64xf32> to vector<2x8x64xbf16>
    "tpu.trace_start"() <{level = 10 : i32, message = "bqd,bkd->bqk"}> : () -> ()
    %cst_33 = arith.constant dense<0.000000e+00> : vector<2x8x8xf32>
    %83 = tpu.matmul %76, %79, %cst_33 {dimension_numbers = #tpu.dot_dimension_numbers<[2], [2], [1], [1], [0, 0, 0, 1, 1, 1], [0], [0]>} : vector<2x8x64xbf16>, vector<2x8x64xbf16>, vector<2x8x8xf32> -> vector<2x8x8xf32>
    %cst_34 = arith.constant -1.000000e+09 : f32
    "tpu.trace_stop"() : () -> ()
    %84 = vector.broadcast %cst_34 : f32 to vector<2x8x8xf32>
    %85 = arith.select %21, %84, %83 : vector<2x8x8xi1>, vector<2x8x8xf32>
    %cst_35 = arith.constant dense<0xFF800000> : vector<2x8xf32>
    %86 = vector.multi_reduction <maximumf>, %85, %cst_35 [2] : vector<2x8x8xf32> to vector<2x8xf32>
    %87 = vector.shape_cast %86 : vector<2x8xf32> to vector<2x8x1xf32>
    %88 = vector.broadcast %87 : vector<2x8x1xf32> to vector<2x8x8xf32>
    %89 = arith.subf %85, %88 : vector<2x8x8xf32>
    %90 = math.exp %89 : vector<2x8x8xf32>
    %cst_36 = arith.constant dense<0.000000e+00> : vector<2x8xf32>
    %91 = vector.multi_reduction <add>, %90, %cst_36 [2] : vector<2x8x8xf32> to vector<2x8xf32>
    %92 = vector.shape_cast %91 : vector<2x8xf32> to vector<2x8x1xf32>
    %93 = tpu.reciprocal %92 {approx = true} : vector<2x8x1xf32> -> vector<2x8x1xf32>
    %94 = vector.broadcast %93 : vector<2x8x1xf32> to vector<2x8x8xf32>
    %95 = arith.mulf %90, %94 : vector<2x8x8xf32>
    %96 = arith.truncf %95 : vector<2x8x8xf32> to vector<2x8x8xbf16>
    "tpu.trace_start"() <{level = 10 : i32, message = "bqk,bkd->bqd"}> : () -> ()
    %cst_37 = arith.constant dense<0.000000e+00> : vector<2x8x64xf32>
    %97 = tpu.matmul %96, %82, %cst_37 {dimension_numbers = #tpu.dot_dimension_numbers<[2], [1], [1], [2], [0, 0, 0, 1, 1, 2], [0], [0]>} : vector<2x8x8xbf16>, vector<2x8x64xbf16>, vector<2x8x64xf32> -> vector<2x8x64xf32>
    "tpu.trace_stop"() : () -> ()
    %98 = vector.shape_cast %97 : vector<2x8x64xf32> to vector<16x64xf32>
    %99 = arith.truncf %98 : vector<16x64xf32> to vector<16x64xbf16>
    %100 = vector.extract_strided_slice %5 {offsets = [0, 192], sizes = [16, 64], strides = [1, 1]} : vector<16x512xf32> to vector<16x64xf32>
    %101 = vector.shape_cast %100 : vector<16x64xf32> to vector<2x8x64xf32>
    %102 = arith.truncf %101 : vector<2x8x64xf32> to vector<2x8x64xbf16>
    %103 = vector.extract_strided_slice %11 {offsets = [0, 192], sizes = [16, 64], strides = [1, 1]} : vector<16x512xf32> to vector<16x64xf32>
    %104 = vector.shape_cast %103 : vector<16x64xf32> to vector<2x8x64xf32>
    %105 = arith.truncf %104 : vector<2x8x64xf32> to vector<2x8x64xbf16>
    %106 = vector.extract_strided_slice %17 {offsets = [0, 192], sizes = [16, 64], strides = [1, 1]} : vector<16x512xf32> to vector<16x64xf32>
    %107 = vector.shape_cast %106 : vector<16x64xf32> to vector<2x8x64xf32>
    %108 = arith.truncf %107 : vector<2x8x64xf32> to vector<2x8x64xbf16>
    "tpu.trace_start"() <{level = 10 : i32, message = "bqd,bkd->bqk"}> : () -> ()
    %cst_38 = arith.constant dense<0.000000e+00> : vector<2x8x8xf32>
    %109 = tpu.matmul %102, %105, %cst_38 {dimension_numbers = #tpu.dot_dimension_numbers<[2], [2], [1], [1], [0, 0, 0, 1, 1, 1], [0], [0]>} : vector<2x8x64xbf16>, vector<2x8x64xbf16>, vector<2x8x8xf32> -> vector<2x8x8xf32>
    %cst_39 = arith.constant -1.000000e+09 : f32
    "tpu.trace_stop"() : () -> ()
    %110 = vector.broadcast %cst_39 : f32 to vector<2x8x8xf32>
    %111 = arith.select %21, %110, %109 : vector<2x8x8xi1>, vector<2x8x8xf32>
    %cst_40 = arith.constant dense<0xFF800000> : vector<2x8xf32>
    %112 = vector.multi_reduction <maximumf>, %111, %cst_40 [2] : vector<2x8x8xf32> to vector<2x8xf32>
    %113 = vector.shape_cast %112 : vector<2x8xf32> to vector<2x8x1xf32>
    %114 = vector.broadcast %113 : vector<2x8x1xf32> to vector<2x8x8xf32>
    %115 = arith.subf %111, %114 : vector<2x8x8xf32>
    %116 = math.exp %115 : vector<2x8x8xf32>
    %cst_41 = arith.constant dense<0.000000e+00> : vector<2x8xf32>
    %117 = vector.multi_reduction <add>, %116, %cst_41 [2] : vector<2x8x8xf32> to vector<2x8xf32>
    %118 = vector.shape_cast %117 : vector<2x8xf32> to vector<2x8x1xf32>
    %119 = tpu.reciprocal %118 {approx = true} : vector<2x8x1xf32> -> vector<2x8x1xf32>
    %120 = vector.broadcast %119 : vector<2x8x1xf32> to vector<2x8x8xf32>
    %121 = arith.mulf %116, %120 : vector<2x8x8xf32>
    %122 = arith.truncf %121 : vector<2x8x8xf32> to vector<2x8x8xbf16>
    "tpu.trace_start"() <{level = 10 : i32, message = "bqk,bkd->bqd"}> : () -> ()
    %cst_42 = arith.constant dense<0.000000e+00> : vector<2x8x64xf32>
    %123 = tpu.matmul %122, %108, %cst_42 {dimension_numbers = #tpu.dot_dimension_numbers<[2], [1], [1], [2], [0, 0, 0, 1, 1, 2], [0], [0]>} : vector<2x8x8xbf16>, vector<2x8x64xbf16>, vector<2x8x64xf32> -> vector<2x8x64xf32>
    "tpu.trace_stop"() : () -> ()
    %124 = vector.shape_cast %123 : vector<2x8x64xf32> to vector<16x64xf32>
    %125 = arith.truncf %124 : vector<16x64xf32> to vector<16x64xbf16>
    %126 = vector.extract_strided_slice %5 {offsets = [0, 256], sizes = [16, 64], strides = [1, 1]} : vector<16x512xf32> to vector<16x64xf32>
    %127 = vector.shape_cast %126 : vector<16x64xf32> to vector<2x8x64xf32>
    %128 = arith.truncf %127 : vector<2x8x64xf32> to vector<2x8x64xbf16>
    %129 = vector.extract_strided_slice %11 {offsets = [0, 256], sizes = [16, 64], strides = [1, 1]} : vector<16x512xf32> to vector<16x64xf32>
    %130 = vector.shape_cast %129 : vector<16x64xf32> to vector<2x8x64xf32>
    %131 = arith.truncf %130 : vector<2x8x64xf32> to vector<2x8x64xbf16>
    %132 = vector.extract_strided_slice %17 {offsets = [0, 256], sizes = [16, 64], strides = [1, 1]} : vector<16x512xf32> to vector<16x64xf32>
    %133 = vector.shape_cast %132 : vector<16x64xf32> to vector<2x8x64xf32>
    %134 = arith.truncf %133 : vector<2x8x64xf32> to vector<2x8x64xbf16>
    "tpu.trace_start"() <{level = 10 : i32, message = "bqd,bkd->bqk"}> : () -> ()
    %cst_43 = arith.constant dense<0.000000e+00> : vector<2x8x8xf32>
    %135 = tpu.matmul %128, %131, %cst_43 {dimension_numbers = #tpu.dot_dimension_numbers<[2], [2], [1], [1], [0, 0, 0, 1, 1, 1], [0], [0]>} : vector<2x8x64xbf16>, vector<2x8x64xbf16>, vector<2x8x8xf32> -> vector<2x8x8xf32>
    %cst_44 = arith.constant -1.000000e+09 : f32
    "tpu.trace_stop"() : () -> ()
    %136 = vector.broadcast %cst_44 : f32 to vector<2x8x8xf32>
    %137 = arith.select %21, %136, %135 : vector<2x8x8xi1>, vector<2x8x8xf32>
    %cst_45 = arith.constant dense<0xFF800000> : vector<2x8xf32>
    %138 = vector.multi_reduction <maximumf>, %137, %cst_45 [2] : vector<2x8x8xf32> to vector<2x8xf32>
    %139 = vector.shape_cast %138 : vector<2x8xf32> to vector<2x8x1xf32>
    %140 = vector.broadcast %139 : vector<2x8x1xf32> to vector<2x8x8xf32>
    %141 = arith.subf %137, %140 : vector<2x8x8xf32>
    %142 = math.exp %141 : vector<2x8x8xf32>
    %cst_46 = arith.constant dense<0.000000e+00> : vector<2x8xf32>
    %143 = vector.multi_reduction <add>, %142, %cst_46 [2] : vector<2x8x8xf32> to vector<2x8xf32>
    %144 = vector.shape_cast %143 : vector<2x8xf32> to vector<2x8x1xf32>
    %145 = tpu.reciprocal %144 {approx = true} : vector<2x8x1xf32> -> vector<2x8x1xf32>
    %146 = vector.broadcast %145 : vector<2x8x1xf32> to vector<2x8x8xf32>
    %147 = arith.mulf %142, %146 : vector<2x8x8xf32>
    %148 = arith.truncf %147 : vector<2x8x8xf32> to vector<2x8x8xbf16>
    "tpu.trace_start"() <{level = 10 : i32, message = "bqk,bkd->bqd"}> : () -> ()
    %cst_47 = arith.constant dense<0.000000e+00> : vector<2x8x64xf32>
    %149 = tpu.matmul %148, %134, %cst_47 {dimension_numbers = #tpu.dot_dimension_numbers<[2], [1], [1], [2], [0, 0, 0, 1, 1, 2], [0], [0]>} : vector<2x8x8xbf16>, vector<2x8x64xbf16>, vector<2x8x64xf32> -> vector<2x8x64xf32>
    "tpu.trace_stop"() : () -> ()
    %150 = vector.shape_cast %149 : vector<2x8x64xf32> to vector<16x64xf32>
    %151 = arith.truncf %150 : vector<16x64xf32> to vector<16x64xbf16>
    %152 = vector.extract_strided_slice %5 {offsets = [0, 320], sizes = [16, 64], strides = [1, 1]} : vector<16x512xf32> to vector<16x64xf32>
    %153 = vector.shape_cast %152 : vector<16x64xf32> to vector<2x8x64xf32>
    %154 = arith.truncf %153 : vector<2x8x64xf32> to vector<2x8x64xbf16>
    %155 = vector.extract_strided_slice %11 {offsets = [0, 320], sizes = [16, 64], strides = [1, 1]} : vector<16x512xf32> to vector<16x64xf32>
    %156 = vector.shape_cast %155 : vector<16x64xf32> to vector<2x8x64xf32>
    %157 = arith.truncf %156 : vector<2x8x64xf32> to vector<2x8x64xbf16>
    %158 = vector.extract_strided_slice %17 {offsets = [0, 320], sizes = [16, 64], strides = [1, 1]} : vector<16x512xf32> to vector<16x64xf32>
    %159 = vector.shape_cast %158 : vector<16x64xf32> to vector<2x8x64xf32>
    %160 = arith.truncf %159 : vector<2x8x64xf32> to vector<2x8x64xbf16>
    "tpu.trace_start"() <{level = 10 : i32, message = "bqd,bkd->bqk"}> : () -> ()
    %cst_48 = arith.constant dense<0.000000e+00> : vector<2x8x8xf32>
    %161 = tpu.matmul %154, %157, %cst_48 {dimension_numbers = #tpu.dot_dimension_numbers<[2], [2], [1], [1], [0, 0, 0, 1, 1, 1], [0], [0]>} : vector<2x8x64xbf16>, vector<2x8x64xbf16>, vector<2x8x8xf32> -> vector<2x8x8xf32>
    %cst_49 = arith.constant -1.000000e+09 : f32
    "tpu.trace_stop"() : () -> ()
    %162 = vector.broadcast %cst_49 : f32 to vector<2x8x8xf32>
    %163 = arith.select %21, %162, %161 : vector<2x8x8xi1>, vector<2x8x8xf32>
    %cst_50 = arith.constant dense<0xFF800000> : vector<2x8xf32>
    %164 = vector.multi_reduction <maximumf>, %163, %cst_50 [2] : vector<2x8x8xf32> to vector<2x8xf32>
    %165 = vector.shape_cast %164 : vector<2x8xf32> to vector<2x8x1xf32>
    %166 = vector.broadcast %165 : vector<2x8x1xf32> to vector<2x8x8xf32>
    %167 = arith.subf %163, %166 : vector<2x8x8xf32>
    %168 = math.exp %167 : vector<2x8x8xf32>
    %cst_51 = arith.constant dense<0.000000e+00> : vector<2x8xf32>
    %169 = vector.multi_reduction <add>, %168, %cst_51 [2] : vector<2x8x8xf32> to vector<2x8xf32>
    %170 = vector.shape_cast %169 : vector<2x8xf32> to vector<2x8x1xf32>
    %171 = tpu.reciprocal %170 {approx = true} : vector<2x8x1xf32> -> vector<2x8x1xf32>
    %172 = vector.broadcast %171 : vector<2x8x1xf32> to vector<2x8x8xf32>
    %173 = arith.mulf %168, %172 : vector<2x8x8xf32>
    %174 = arith.truncf %173 : vector<2x8x8xf32> to vector<2x8x8xbf16>
    "tpu.trace_start"() <{level = 10 : i32, message = "bqk,bkd->bqd"}> : () -> ()
    %cst_52 = arith.constant dense<0.000000e+00> : vector<2x8x64xf32>
    %175 = tpu.matmul %174, %160, %cst_52 {dimension_numbers = #tpu.dot_dimension_numbers<[2], [1], [1], [2], [0, 0, 0, 1, 1, 2], [0], [0]>} : vector<2x8x8xbf16>, vector<2x8x64xbf16>, vector<2x8x64xf32> -> vector<2x8x64xf32>
    "tpu.trace_stop"() : () -> ()
    %176 = vector.shape_cast %175 : vector<2x8x64xf32> to vector<16x64xf32>
    %177 = arith.truncf %176 : vector<16x64xf32> to vector<16x64xbf16>
    %178 = vector.extract_strided_slice %5 {offsets = [0, 384], sizes = [16, 64], strides = [1, 1]} : vector<16x512xf32> to vector<16x64xf32>
    %179 = vector.shape_cast %178 : vector<16x64xf32> to vector<2x8x64xf32>
    %180 = arith.truncf %179 : vector<2x8x64xf32> to vector<2x8x64xbf16>
    %181 = vector.extract_strided_slice %11 {offsets = [0, 384], sizes = [16, 64], strides = [1, 1]} : vector<16x512xf32> to vector<16x64xf32>
    %182 = vector.shape_cast %181 : vector<16x64xf32> to vector<2x8x64xf32>
    %183 = arith.truncf %182 : vector<2x8x64xf32> to vector<2x8x64xbf16>
    %184 = vector.extract_strided_slice %17 {offsets = [0, 384], sizes = [16, 64], strides = [1, 1]} : vector<16x512xf32> to vector<16x64xf32>
    %185 = vector.shape_cast %184 : vector<16x64xf32> to vector<2x8x64xf32>
    %186 = arith.truncf %185 : vector<2x8x64xf32> to vector<2x8x64xbf16>
    "tpu.trace_start"() <{level = 10 : i32, message = "bqd,bkd->bqk"}> : () -> ()
    %cst_53 = arith.constant dense<0.000000e+00> : vector<2x8x8xf32>
    %187 = tpu.matmul %180, %183, %cst_53 {dimension_numbers = #tpu.dot_dimension_numbers<[2], [2], [1], [1], [0, 0, 0, 1, 1, 1], [0], [0]>} : vector<2x8x64xbf16>, vector<2x8x64xbf16>, vector<2x8x8xf32> -> vector<2x8x8xf32>
    %cst_54 = arith.constant -1.000000e+09 : f32
    "tpu.trace_stop"() : () -> ()
    %188 = vector.broadcast %cst_54 : f32 to vector<2x8x8xf32>
    %189 = arith.select %21, %188, %187 : vector<2x8x8xi1>, vector<2x8x8xf32>
    %cst_55 = arith.constant dense<0xFF800000> : vector<2x8xf32>
    %190 = vector.multi_reduction <maximumf>, %189, %cst_55 [2] : vector<2x8x8xf32> to vector<2x8xf32>
    %191 = vector.shape_cast %190 : vector<2x8xf32> to vector<2x8x1xf32>
    %192 = vector.broadcast %191 : vector<2x8x1xf32> to vector<2x8x8xf32>
    %193 = arith.subf %189, %192 : vector<2x8x8xf32>
    %194 = math.exp %193 : vector<2x8x8xf32>
    %cst_56 = arith.constant dense<0.000000e+00> : vector<2x8xf32>
    %195 = vector.multi_reduction <add>, %194, %cst_56 [2] : vector<2x8x8xf32> to vector<2x8xf32>
    %196 = vector.shape_cast %195 : vector<2x8xf32> to vector<2x8x1xf32>
    %197 = tpu.reciprocal %196 {approx = true} : vector<2x8x1xf32> -> vector<2x8x1xf32>
    %198 = vector.broadcast %197 : vector<2x8x1xf32> to vector<2x8x8xf32>
    %199 = arith.mulf %194, %198 : vector<2x8x8xf32>
    %200 = arith.truncf %199 : vector<2x8x8xf32> to vector<2x8x8xbf16>
    "tpu.trace_start"() <{level = 10 : i32, message = "bqk,bkd->bqd"}> : () -> ()
    %cst_57 = arith.constant dense<0.000000e+00> : vector<2x8x64xf32>
    %201 = tpu.matmul %200, %186, %cst_57 {dimension_numbers = #tpu.dot_dimension_numbers<[2], [1], [1], [2], [0, 0, 0, 1, 1, 2], [0], [0]>} : vector<2x8x8xbf16>, vector<2x8x64xbf16>, vector<2x8x64xf32> -> vector<2x8x64xf32>
    "tpu.trace_stop"() : () -> ()
    %202 = vector.shape_cast %201 : vector<2x8x64xf32> to vector<16x64xf32>
    %203 = arith.truncf %202 : vector<16x64xf32> to vector<16x64xbf16>
    %204 = vector.extract_strided_slice %5 {offsets = [0, 448], sizes = [16, 64], strides = [1, 1]} : vector<16x512xf32> to vector<16x64xf32>
    %205 = vector.shape_cast %204 : vector<16x64xf32> to vector<2x8x64xf32>
    %206 = arith.truncf %205 : vector<2x8x64xf32> to vector<2x8x64xbf16>
    %207 = vector.extract_strided_slice %11 {offsets = [0, 448], sizes = [16, 64], strides = [1, 1]} : vector<16x512xf32> to vector<16x64xf32>
    %208 = vector.shape_cast %207 : vector<16x64xf32> to vector<2x8x64xf32>
    %209 = arith.truncf %208 : vector<2x8x64xf32> to vector<2x8x64xbf16>
    %210 = vector.extract_strided_slice %17 {offsets = [0, 448], sizes = [16, 64], strides = [1, 1]} : vector<16x512xf32> to vector<16x64xf32>
    %211 = vector.shape_cast %210 : vector<16x64xf32> to vector<2x8x64xf32>
    %212 = arith.truncf %211 : vector<2x8x64xf32> to vector<2x8x64xbf16>
    "tpu.trace_start"() <{level = 10 : i32, message = "bqd,bkd->bqk"}> : () -> ()
    %cst_58 = arith.constant dense<0.000000e+00> : vector<2x8x8xf32>
    %213 = tpu.matmul %206, %209, %cst_58 {dimension_numbers = #tpu.dot_dimension_numbers<[2], [2], [1], [1], [0, 0, 0, 1, 1, 1], [0], [0]>} : vector<2x8x64xbf16>, vector<2x8x64xbf16>, vector<2x8x8xf32> -> vector<2x8x8xf32>
    %cst_59 = arith.constant -1.000000e+09 : f32
    "tpu.trace_stop"() : () -> ()
    %214 = vector.broadcast %cst_59 : f32 to vector<2x8x8xf32>
    %215 = arith.select %21, %214, %213 : vector<2x8x8xi1>, vector<2x8x8xf32>
    %cst_60 = arith.constant dense<0xFF800000> : vector<2x8xf32>
    %216 = vector.multi_reduction <maximumf>, %215, %cst_60 [2] : vector<2x8x8xf32> to vector<2x8xf32>
    %217 = vector.shape_cast %216 : vector<2x8xf32> to vector<2x8x1xf32>
    %218 = vector.broadcast %217 : vector<2x8x1xf32> to vector<2x8x8xf32>
    %219 = arith.subf %215, %218 : vector<2x8x8xf32>
    %220 = math.exp %219 : vector<2x8x8xf32>
    %cst_61 = arith.constant dense<0.000000e+00> : vector<2x8xf32>
    %221 = vector.multi_reduction <add>, %220, %cst_61 [2] : vector<2x8x8xf32> to vector<2x8xf32>
    %222 = vector.shape_cast %221 : vector<2x8xf32> to vector<2x8x1xf32>
    %223 = tpu.reciprocal %222 {approx = true} : vector<2x8x1xf32> -> vector<2x8x1xf32>
    %224 = vector.broadcast %223 : vector<2x8x1xf32> to vector<2x8x8xf32>
    %225 = arith.mulf %220, %224 : vector<2x8x8xf32>
    %226 = arith.truncf %225 : vector<2x8x8xf32> to vector<2x8x8xbf16>
    "tpu.trace_start"() <{level = 10 : i32, message = "bqk,bkd->bqd"}> : () -> ()
    %cst_62 = arith.constant dense<0.000000e+00> : vector<2x8x64xf32>
    %227 = tpu.matmul %226, %212, %cst_62 {dimension_numbers = #tpu.dot_dimension_numbers<[2], [1], [1], [2], [0, 0, 0, 1, 1, 2], [0], [0]>} : vector<2x8x8xbf16>, vector<2x8x64xbf16>, vector<2x8x64xf32> -> vector<2x8x64xf32>
    "tpu.trace_stop"() : () -> ()
    %228 = vector.shape_cast %227 : vector<2x8x64xf32> to vector<16x64xf32>
    %229 = arith.truncf %228 : vector<16x64xf32> to vector<16x64xbf16>
    %230 = tpu.concatenate %47, %73, %99, %125, %151, %177, %203, %229 in 1 : vector<16x64xbf16>, vector<16x64xbf16>, vector<16x64xbf16>, vector<16x64xbf16>, vector<16x64xbf16>, vector<16x64xbf16>, vector<16x64xbf16>, vector<16x64xbf16> -> vector<16x512xbf16>
    %c0_63 = arith.constant 0 : index
    %c0_64 = arith.constant 0 : index
    %231 = vector.load %arg11[%c0_63, %c0_64] : memref<512x512xbf16, #tpu.memory_space<vmem>>, vector<512x512xbf16>
    %cst_65 = arith.constant dense<0.000000e+00> : vector<16x512xf32>
    %232 = tpu.matmul %230, %231, %cst_65 {dimension_numbers = #tpu.dot_dimension_numbers<[1], [0], [0], [1], [0, 0, 1, 1], [], []>} : vector<16x512xbf16>, vector<512x512xbf16>, vector<16x512xf32> -> vector<16x512xf32>
    %c0_66 = arith.constant 0 : index
    %c0_67 = arith.constant 0 : index
    %233 = vector.load %arg12[%c0_66, %c0_67] : memref<1x512xf32, #tpu.memory_space<vmem>>, vector<1x512xf32>
    %234 = vector.broadcast %233 : vector<1x512xf32> to vector<16x512xf32>
    %235 = arith.addf %232, %234 : vector<16x512xf32>
    %236 = arith.extf %0 : vector<16x512xbf16> to vector<16x512xf32>
    %237 = arith.addf %235, %236 : vector<16x512xf32>
    %cst_68 = arith.constant dense<0.000000e+00> : vector<16xf32>
    %238 = vector.multi_reduction <add>, %237, %cst_68 [1] : vector<16x512xf32> to vector<16xf32>
    %239 = vector.shape_cast %238 : vector<16xf32> to vector<16x1xf32>
    %cst_69 = arith.constant 5.120000e+02 : f32
    %240 = vector.broadcast %cst_69 : f32 to vector<16x1xf32>
    %241 = arith.divf %239, %240 : vector<16x1xf32>
    %242 = vector.broadcast %241 : vector<16x1xf32> to vector<16x512xf32>
    %243 = arith.subf %237, %242 : vector<16x512xf32>
    %244 = arith.mulf %243, %243 : vector<16x512xf32>
    %cst_70 = arith.constant dense<0.000000e+00> : vector<16xf32>
    %245 = vector.multi_reduction <add>, %244, %cst_70 [1] : vector<16x512xf32> to vector<16xf32>
    %246 = vector.shape_cast %245 : vector<16xf32> to vector<16x1xf32>
    %cst_71 = arith.constant 5.120000e+02 : f32
    %247 = vector.broadcast %cst_71 : f32 to vector<16x1xf32>
    %248 = arith.divf %246, %247 : vector<16x1xf32>
    %cst_72 = arith.constant 9.99999974E-6 : f32
    %249 = vector.broadcast %cst_72 : f32 to vector<16x1xf32>
    %250 = arith.addf %248, %249 : vector<16x1xf32>
    %251 = math.rsqrt %250 : vector<16x1xf32>
    %252 = vector.broadcast %251 : vector<16x1xf32> to vector<16x512xf32>
    %253 = arith.mulf %243, %252 : vector<16x512xf32>
    %c0_73 = arith.constant 0 : index
    %c0_74 = arith.constant 0 : index
    %254 = vector.load %arg13[%c0_73, %c0_74] : memref<1x512xf32, #tpu.memory_space<vmem>>, vector<1x512xf32>
    %255 = vector.broadcast %254 : vector<1x512xf32> to vector<16x512xf32>
    %256 = arith.mulf %253, %255 : vector<16x512xf32>
    %c0_75 = arith.constant 0 : index
    %c0_76 = arith.constant 0 : index
    %257 = vector.load %arg14[%c0_75, %c0_76] : memref<1x512xf32, #tpu.memory_space<vmem>>, vector<1x512xf32>
    %258 = vector.broadcast %257 : vector<1x512xf32> to vector<16x512xf32>
    %259 = arith.addf %256, %258 : vector<16x512xf32>
    %c0_77 = arith.constant 0 : index
    %c0_78 = arith.constant 0 : index
    %260 = vector.load %arg15[%c0_77, %c0_78] : memref<16x512xf32, #tpu.memory_space<vmem>>, vector<16x512xf32>
    tpu.vector_store %arg15[%c0_77, %c0_78], %259 {strides = array<i32>} : memref<16x512xf32, #tpu.memory_space<vmem>>, vector<16x512xf32>,
    return
  }
  func.func @transform_0(%arg0: i32) -> (i32, i32) {
    %c0_i32 = arith.constant 0 : i32
    %c0_i32_0 = arith.constant 0 : i32
    return %arg0, %c0_i32 : i32, i32
  }
  func.func @transform_1(%arg0: i32) -> (i32, i32) {
    %c0_i32 = arith.constant 0 : i32
    %c0_i32_0 = arith.constant 0 : i32
    return %arg0, %c0_i32 : i32, i32
  }
  func.func @transform_2(%arg0: i32) -> (i32, i32) {
    %c0_i32 = arith.constant 0 : i32
    %c0_i32_0 = arith.constant 0 : i32
    return %arg0, %c0_i32 : i32, i32
  }
  func.func @transform_3(%arg0: i32) -> (i32, i32, i32) {
    %c0_i32 = arith.constant 0 : i32
    %c0_i32_0 = arith.constant 0 : i32
    %c0_i32_1 = arith.constant 0 : i32
    return %arg0, %c0_i32, %c0_i32_0 : i32, i32, i32
  }
  func.func @transform_4(%arg0: i32) -> (i32, i32) {
    %c0_i32 = arith.constant 0 : i32
    %c0_i32_0 = arith.constant 0 : i32
    %c0_i32_1 = arith.constant 0 : i32
    return %c0_i32, %c0_i32_0 : i32, i32
  }
  func.func @transform_5(%arg0: i32) -> (i32, i32) {
    %c0_i32 = arith.constant 0 : i32
    %c0_i32_0 = arith.constant 0 : i32
    %c0_i32_1 = arith.constant 0 : i32
    return %c0_i32, %c0_i32_0 : i32, i32
  }
  func.func @transform_6(%arg0: i32) -> (i32, i32) {
    %c0_i32 = arith.constant 0 : i32
    %c0_i32_0 = arith.constant 0 : i32
    %c0_i32_1 = arith.constant 0 : i32
    return %c0_i32, %c0_i32_0 : i32, i32
  }
  func.func @transform_7(%arg0: i32) -> (i32, i32) {
    %c0_i32 = arith.constant 0 : i32
    %c0_i32_0 = arith.constant 0 : i32
    %c0_i32_1 = arith.constant 0 : i32
    return %c0_i32, %c0_i32_0 : i32, i32
  }
  func.func @transform_8(%arg0: i32) -> (i32, i32) {
    %c0_i32 = arith.constant 0 : i32
    %c0_i32_0 = arith.constant 0 : i32
    %c0_i32_1 = arith.constant 0 : i32
    return %c0_i32, %c0_i32_0 : i32, i32
  }
  func.func @transform_9(%arg0: i32) -> (i32, i32) {
    %c0_i32 = arith.constant 0 : i32
    %c0_i32_0 = arith.constant 0 : i32
    %c0_i32_1 = arith.constant 0 : i32
    return %c0_i32, %c0_i32_0 : i32, i32
  }
  func.func @transform_10(%arg0: i32) -> (i32, i32) {
    %c0_i32 = arith.constant 0 : i32
    %c0_i32_0 = arith.constant 0 : i32
    %c0_i32_1 = arith.constant 0 : i32
    return %c0_i32, %c0_i32_0 : i32, i32
  }
  func.func @transform_11(%arg0: i32) -> (i32, i32) {
    %c0_i32 = arith.constant 0 : i32
    %c0_i32_0 = arith.constant 0 : i32
    %c0_i32_1 = arith.constant 0 : i32
    return %c0_i32, %c0_i32_0 : i32, i32
  }
  func.func @transform_12(%arg0: i32) -> (i32, i32) {
    %c0_i32 = arith.constant 0 : i32
    %c0_i32_0 = arith.constant 0 : i32
    %c0_i32_1 = arith.constant 0 : i32
    return %c0_i32, %c0_i32_0 : i32, i32
  }
  func.func @transform_13(%arg0: i32) -> (i32, i32) {
    %c0_i32 = arith.constant 0 : i32
    %c0_i32_0 = arith.constant 0 : i32
    %c0_i32_1 = arith.constant 0 : i32
    return %c0_i32, %c0_i32_0 : i32, i32
  }
  func.func @transform_14(%arg0: i32) -> (i32, i32) {
    %c0_i32 = arith.constant 0 : i32
    %c0_i32_0 = arith.constant 0 : i32
    return %arg0, %c0_i32 : i32, i32
  }
}

</mosaic_0001>

<llo_original>
// kernel: multi_head_attention.1
$region0: #{multi_head_attention.1}
  #allocation0 [shape = 'u32[]', space=smem, size = 0x4, offset = 0x4, fixed_abs, tag = 'smem constant byte address 0x4 - core index']
  #allocation1 [shape = 'u32[144,128]{1,0:T(1,128)}', space=vmem, size = 0x12000, scoped, tag = 'internal scratch']
  %s0 = inlined_call_operand.vmem [shape: bf16[16,512], index: 0, kind: input, shape index: {}]
  %s1 = inlined_call_operand.vmem [shape: bf16[16,512], index: 1, kind: input, shape index: {}]
  %s2 = inlined_call_operand.vmem [shape: bf16[16,512], index: 2, kind: input, shape index: {}]
  %s3 = inlined_call_operand.vmem [shape: s8[2,8,8], index: 3, kind: input, shape index: {}]
  %s4 = inlined_call_operand.vmem [shape: bf16[512,512], index: 4, kind: input, shape index: {}]
  %s5 = inlined_call_operand.vmem [shape: f32[1,512], index: 5, kind: input, shape index: {}]
  %s6 = inlined_call_operand.vmem [shape: bf16[512,512], index: 6, kind: input, shape index: {}]
  %s7 = inlined_call_operand.vmem [shape: f32[1,512], index: 7, kind: input, shape index: {}]
  %s8 = inlined_call_operand.vmem [shape: bf16[512,512], index: 8, kind: input, shape index: {}]
  %s9 = inlined_call_operand.vmem [shape: f32[1,512], index: 9, kind: input, shape index: {}]
  %s10 = inlined_call_operand.vmem [shape: bf16[512,512], index: 10, kind: input, shape index: {}]
  %s11 = inlined_call_operand.vmem [shape: f32[1,512], index: 11, kind: input, shape index: {}]
  %s12 = inlined_call_operand.vmem [shape: f32[1,512], index: 12, kind: input, shape index: {}]
  %s13 = inlined_call_operand.vmem [shape: f32[1,512], index: 13, kind: input, shape index: {}]
  %s14 = inlined_call_operand.hbm [shape: f32[16,512], index: 14, kind: output, shape index: {}]
  %s15 = sld [smem:[#allocation0]]
  $region66: #{multi_head_attention.1} parent=0
    _
  %s17 = ssub.s32 1, %s15
  %s18 = scalar_select 0, %s17, %s15
  $region1: #{multi_head_attention.1} parent=0
    #allocation2 [shape = 'u8[32768]{0}', space=vmem, size = 0x8000, scoped, tag = 'output window, operand 0, single buffered']
    #allocation3 [shape = 's32[1]{0}', space=sflag, size = 0x4, scoped, tag = 'scoped memory for multi_head_attention.1']
    %19 = vsyncpa [#allocation3], 0
    // Predicated region
    $region2: #{multi_head_attention.1} parent=1 // pred_check
      _
    $region3: #{multi_head_attention.1} parent=1 // pred_check_branch
      %21 = sbr.rel (0) target = $region5
    $region4: #{multi_head_attention.1} parent=1 // pred_region
      _
    $region5: #{multi_head_attention.1} parent=1 // pred_fallthru
      _
    // Predicated region
    $region6: #{multi_head_attention.1} parent=1 // pred_check
      _
    $region7: #{multi_head_attention.1} parent=1 // pred_check_branch
      %23 = sbr.rel (0) target = $region9
    $region8: #{multi_head_attention.1} parent=1 // pred_region
      _
    $region9: #{multi_head_attention.1} parent=1 // pred_fallthru
      _
    // Predicated region
    $region10: #{multi_head_attention.1} parent=1 // pred_check
      _
    $region11: #{multi_head_attention.1} parent=1 // pred_check_branch
      %25 = sbr.rel (0) target = $region13
    $region12: #{multi_head_attention.1} parent=1 // pred_region
      _
    $region13: #{multi_head_attention.1} parent=1 // pred_fallthru
      _
    // Predicated region
    $region14: #{multi_head_attention.1} parent=1 // pred_check
      _
    $region15: #{multi_head_attention.1} parent=1 // pred_check_branch
      %27 = sbr.rel (0) target = $region17
    $region16: #{multi_head_attention.1} parent=1 // pred_region
      _
    $region17: #{multi_head_attention.1} parent=1 // pred_fallthru
      _
    // Predicated region
    $region18: #{multi_head_attention.1} parent=1 // pred_check
      _
    $region19: #{multi_head_attention.1} parent=1 // pred_check_branch
      %29 = sbr.rel (0) target = $region21
    $region20: #{multi_head_attention.1} parent=1 // pred_region
      _
    $region21: #{multi_head_attention.1} parent=1 // pred_fallthru
      _
    // Predicated region
    $region22: #{multi_head_attention.1} parent=1 // pred_check
      _
    $region23: #{multi_head_attention.1} parent=1 // pred_check_branch
      %31 = sbr.rel (0) target = $region25
    $region24: #{multi_head_attention.1} parent=1 // pred_region
      _
    $region25: #{multi_head_attention.1} parent=1 // pred_fallthru
      _
    // Predicated region
    $region26: #{multi_head_attention.1} parent=1 // pred_check
      _
    $region27: #{multi_head_attention.1} parent=1 // pred_check_branch
      %33 = sbr.rel (0) target = $region29
    $region28: #{multi_head_attention.1} parent=1 // pred_region
      _
    $region29: #{multi_head_attention.1} parent=1 // pred_fallthru
      _
    // Predicated region
    $region30: #{multi_head_attention.1} parent=1 // pred_check
      _
    $region31: #{multi_head_attention.1} parent=1 // pred_check_branch
      %35 = sbr.rel (0) target = $region33
    $region32: #{multi_head_attention.1} parent=1 // pred_region
      _
    $region33: #{multi_head_attention.1} parent=1 // pred_fallthru
      _
    // Predicated region
    $region34: #{multi_head_attention.1} parent=1 // pred_check
      _
    $region35: #{multi_head_attention.1} parent=1 // pred_check_branch
      %37 = sbr.rel (0) target = $region37
    $region36: #{multi_head_attention.1} parent=1 // pred_region
      _
    $region37: #{multi_head_attention.1} parent=1 // pred_fallthru
      _
    // Predicated region
    $region38: #{multi_head_attention.1} parent=1 // pred_check
      _
    $region39: #{multi_head_attention.1} parent=1 // pred_check_branch
      %39 = sbr.rel (0) target = $region41
    $region40: #{multi_head_attention.1} parent=1 // pred_region
      _
    $region41: #{multi_head_attention.1} parent=1 // pred_fallthru
      _
    // Predicated region
    $region42: #{multi_head_attention.1} parent=1 // pred_check
      _
    $region43: #{multi_head_attention.1} parent=1 // pred_check_branch
      %41 = sbr.rel (0) target = $region45
    $region44: #{multi_head_attention.1} parent=1 // pred_region
      _
    $region45: #{multi_head_attention.1} parent=1 // pred_fallthru
      _
    // Predicated region
    $region46: #{multi_head_attention.1} parent=1 // pred_check
      _
    $region47: #{multi_head_attention.1} parent=1 // pred_check_branch
      %43 = sbr.rel (0) target = $region49
    $region48: #{multi_head_attention.1} parent=1 // pred_region
      _
    $region49: #{multi_head_attention.1} parent=1 // pred_fallthru
      _
    // Predicated region
    $region50: #{multi_head_attention.1} parent=1 // pred_check
      _
    $region51: #{multi_head_attention.1} parent=1 // pred_check_branch
      %45 = sbr.rel (0) target = $region53
    $region52: #{multi_head_attention.1} parent=1 // pred_region
      _
    $region53: #{multi_head_attention.1} parent=1 // pred_fallthru
      _
    // Predicated region
    $region54: #{multi_head_attention.1} parent=1 // pred_check
      _
    $region55: #{multi_head_attention.1} parent=1 // pred_check_branch
      %47 = sbr.rel (0) target = $region57
    $region56: #{multi_head_attention.1} parent=1 // pred_region
      _
    $region57: #{multi_head_attention.1} parent=1 // pred_fallthru
      _
    %v49 = vld [vmem:[%s0] sm:$0xff]
    %v50 = vld [vmem:[%s0 + $0x8] sm:$0xff]
    %v51 = vld [vmem:[%s0 + $0x10] sm:$0xff]
    %v52 = vld [vmem:[%s0 + $0x18] sm:$0xff]
    %v53 = vld [vmem:[%s4] sm:$0xff]
    %v54 = vld [vmem:[%s4 + $0x8] sm:$0xff]
    %v55 = vld [vmem:[%s4 + $0x10] sm:$0xff]
    %v56 = vld [vmem:[%s4 + $0x18] sm:$0xff]
    %v57 = vld [vmem:[%s4 + $0x20] sm:$0xff]
    %v58 = vld [vmem:[%s4 + $0x28] sm:$0xff]
    %v59 = vld [vmem:[%s4 + $0x30] sm:$0xff]
    %v60 = vld [vmem:[%s4 + $0x38] sm:$0xff]
    %v61 = vld [vmem:[%s4 + $0x40] sm:$0xff]
    %v62 = vld [vmem:[%s4 + $0x48] sm:$0xff]
    %v63 = vld [vmem:[%s4 + $0x50] sm:$0xff]
    %v64 = vld [vmem:[%s4 + $0x58] sm:$0xff]
    %v65 = vld [vmem:[%s4 + $0x60] sm:$0xff]
    %v66 = vld [vmem:[%s4 + $0x68] sm:$0xff]
    %v67 = vld [vmem:[%s4 + $0x70] sm:$0xff]
    %v68 = vld [vmem:[%s4 + $0x78] sm:$0xff]
    %v69 = vld [vmem:[%s4 + $0x80] sm:$0xff]
    %v70 = vld [vmem:[%s4 + $0x88] sm:$0xff]
    %v71 = vld [vmem:[%s4 + $0x90] sm:$0xff]
    %v72 = vld [vmem:[%s4 + $0x98] sm:$0xff]
    %v73 = vld [vmem:[%s4 + $0xa0] sm:$0xff]
    %v74 = vld [vmem:[%s4 + $0xa8] sm:$0xff]
    %v75 = vld [vmem:[%s4 + $0xb0] sm:$0xff]
    %v76 = vld [vmem:[%s4 + $0xb8] sm:$0xff]
    %v77 = vld [vmem:[%s4 + $0xc0] sm:$0xff]
    %v78 = vld [vmem:[%s4 + $0xc8] sm:$0xff]
    %v79 = vld [vmem:[%s4 + $0xd0] sm:$0xff]
    %v80 = vld [vmem:[%s4 + $0xd8] sm:$0xff]
    %v81 = vld [vmem:[%s4 + $0xe0] sm:$0xff]
    %v82 = vld [vmem:[%s4 + $0xe8] sm:$0xff]
    %v83 = vld [vmem:[%s4 + $0xf0] sm:$0xff]
    %v84 = vld [vmem:[%s4 + $0xf8] sm:$0xff]
    %v85 = vld [vmem:[%s4 + $0x100] sm:$0xff]
    %v86 = vld [vmem:[%s4 + $0x108] sm:$0xff]
    %v87 = vld [vmem:[%s4 + $0x110] sm:$0xff]
    %v88 = vld [vmem:[%s4 + $0x118] sm:$0xff]
    %v89 = vld [vmem:[%s4 + $0x120] sm:$0xff]
    %v90 = vld [vmem:[%s4 + $0x128] sm:$0xff]
    %v91 = vld [vmem:[%s4 + $0x130] sm:$0xff]
    %v92 = vld [vmem:[%s4 + $0x138] sm:$0xff]
    %v93 = vld [vmem:[%s4 + $0x140] sm:$0xff]
    %v94 = vld [vmem:[%s4 + $0x148] sm:$0xff]
    %v95 = vld [vmem:[%s4 + $0x150] sm:$0xff]
    %v96 = vld [vmem:[%s4 + $0x158] sm:$0xff]
    %v97 = vld [vmem:[%s4 + $0x160] sm:$0xff]
    %v98 = vld [vmem:[%s4 + $0x168] sm:$0xff]
    %v99 = vld [vmem:[%s4 + $0x170] sm:$0xff]
    %v100 = vld [vmem:[%s4 + $0x178] sm:$0xff]
    %v101 = vld [vmem:[%s4 + $0x180] sm:$0xff]
    %v102 = vld [vmem:[%s4 + $0x188] sm:$0xff]
    %v103 = vld [vmem:[%s4 + $0x190] sm:$0xff]
    %v104 = vld [vmem:[%s4 + $0x198] sm:$0xff]
    %v105 = vld [vmem:[%s4 + $0x1a0] sm:$0xff]
    %v106 = vld [vmem:[%s4 + $0x1a8] sm:$0xff]
    %v107 = vld [vmem:[%s4 + $0x1b0] sm:$0xff]
    %v108 = vld [vmem:[%s4 + $0x1b8] sm:$0xff]
    %v109 = vld [vmem:[%s4 + $0x1c0] sm:$0xff]
    %v110 = vld [vmem:[%s4 + $0x1c8] sm:$0xff]
    %v111 = vld [vmem:[%s4 + $0x1d0] sm:$0xff]
    %v112 = vld [vmem:[%s4 + $0x1d8] sm:$0xff]
    %v113 = vld [vmem:[%s4 + $0x1e0] sm:$0xff]
    %v114 = vld [vmem:[%s4 + $0x1e8] sm:$0xff]
    %v115 = vld [vmem:[%s4 + $0x1f0] sm:$0xff]
    %v116 = vld [vmem:[%s4 + $0x1f8] sm:$0xff]
    %v117 = vld [vmem:[%s4 + $0x200] sm:$0xff]
    %v118 = vld [vmem:[%s4 + $0x208] sm:$0xff]
    %v119 = vld [vmem:[%s4 + $0x210] sm:$0xff]
    %v120 = vld [vmem:[%s4 + $0x218] sm:$0xff]
    %v121 = vld [vmem:[%s4 + $0x220] sm:$0xff]
    %v122 = vld [vmem:[%s4 + $0x228] sm:$0xff]
    %v123 = vld [vmem:[%s4 + $0x230] sm:$0xff]
    %v124 = vld [vmem:[%s4 + $0x238] sm:$0xff]
    %v125 = vld [vmem:[%s4 + $0x240] sm:$0xff]
    %v126 = vld [vmem:[%s4 + $0x248] sm:$0xff]
    %v127 = vld [vmem:[%s4 + $0x250] sm:$0xff]
    %v128 = vld [vmem:[%s4 + $0x258] sm:$0xff]
    %v129 = vld [vmem:[%s4 + $0x260] sm:$0xff]
    %v130 = vld [vmem:[%s4 + $0x268] sm:$0xff]
    %v131 = vld [vmem:[%s4 + $0x270] sm:$0xff]
    %v132 = vld [vmem:[%s4 + $0x278] sm:$0xff]
    %v133 = vld [vmem:[%s4 + $0x280] sm:$0xff]
    %v134 = vld [vmem:[%s4 + $0x288] sm:$0xff]
    %v135 = vld [vmem:[%s4 + $0x290] sm:$0xff]
    %v136 = vld [vmem:[%s4 + $0x298] sm:$0xff]
    %v137 = vld [vmem:[%s4 + $0x2a0] sm:$0xff]
    %v138 = vld [vmem:[%s4 + $0x2a8] sm:$0xff]
    %v139 = vld [vmem:[%s4 + $0x2b0] sm:$0xff]
    %v140 = vld [vmem:[%s4 + $0x2b8] sm:$0xff]
    %v141 = vld [vmem:[%s4 + $0x2c0] sm:$0xff]
    %v142 = vld [vmem:[%s4 + $0x2c8] sm:$0xff]
    %v143 = vld [vmem:[%s4 + $0x2d0] sm:$0xff]
    %v144 = vld [vmem:[%s4 + $0x2d8] sm:$0xff]
    %v145 = vld [vmem:[%s4 + $0x2e0] sm:$0xff]
    %v146 = vld [vmem:[%s4 + $0x2e8] sm:$0xff]
    %v147 = vld [vmem:[%s4 + $0x2f0] sm:$0xff]
    %v148 = vld [vmem:[%s4 + $0x2f8] sm:$0xff]
    %v149 = vld [vmem:[%s4 + $0x300] sm:$0xff]
    %v150 = vld [vmem:[%s4 + $0x308] sm:$0xff]
    %v151 = vld [vmem:[%s4 + $0x310] sm:$0xff]
    %v152 = vld [vmem:[%s4 + $0x318] sm:$0xff]
    %v153 = vld [vmem:[%s4 + $0x320] sm:$0xff]
    %v154 = vld [vmem:[%s4 + $0x328] sm:$0xff]
    %v155 = vld [vmem:[%s4 + $0x330] sm:$0xff]
    %v156 = vld [vmem:[%s4 + $0x338] sm:$0xff]
    %v157 = vld [vmem:[%s4 + $0x340] sm:$0xff]
    %v158 = vld [vmem:[%s4 + $0x348] sm:$0xff]
    %v159 = vld [vmem:[%s4 + $0x350] sm:$0xff]
    %v160 = vld [vmem:[%s4 + $0x358] sm:$0xff]
    %v161 = vld [vmem:[%s4 + $0x360] sm:$0xff]
    %v162 = vld [vmem:[%s4 + $0x368] sm:$0xff]
    %v163 = vld [vmem:[%s4 + $0x370] sm:$0xff]
    %v164 = vld [vmem:[%s4 + $0x378] sm:$0xff]
    %v165 = vld [vmem:[%s4 + $0x380] sm:$0xff]
    %v166 = vld [vmem:[%s4 + $0x388] sm:$0xff]
    %v167 = vld [vmem:[%s4 + $0x390] sm:$0xff]
    %v168 = vld [vmem:[%s4 + $0x398] sm:$0xff]
    %v169 = vld [vmem:[%s4 + $0x3a0] sm:$0xff]
    %v170 = vld [vmem:[%s4 + $0x3a8] sm:$0xff]
    %v171 = vld [vmem:[%s4 + $0x3b0] sm:$0xff]
    %v172 = vld [vmem:[%s4 + $0x3b8] sm:$0xff]
    %v173 = vld [vmem:[%s4 + $0x3c0] sm:$0xff]
    %v174 = vld [vmem:[%s4 + $0x3c8] sm:$0xff]
    %v175 = vld [vmem:[%s4 + $0x3d0] sm:$0xff]
    %v176 = vld [vmem:[%s4 + $0x3d8] sm:$0xff]
    %v177 = vld [vmem:[%s4 + $0x3e0] sm:$0xff]
    %v178 = vld [vmem:[%s4 + $0x3e8] sm:$0xff]
    %v179 = vld [vmem:[%s4 + $0x3f0] sm:$0xff]
    %v180 = vld [vmem:[%s4 + $0x3f8] sm:$0xff]
    %v181 = vld [vmem:[%s5] sm:$0xf]
    %v183 = vlaneseq
    %v184 = vshrl.u32 %v183, 7
    %v185 = vsub.s32 0, %v184
    %v186 = vrot.slane %v181, %v185
    %v187 = vlaneseq
    %v188 = vshrl.u32 %v187, 7
    %v189 = vsub.s32 1, %v188
    %v190 = vrot.slane %v181, %v189
    %v191 = vlaneseq
    %v192 = vshrl.u32 %v191, 7
    %v193 = vsub.s32 2, %v192
    %v194 = vrot.slane %v181, %v193
    %v195 = vlaneseq
    %v196 = vshrl.u32 %v195, 7
    %v197 = vsub.s32 3, %v196
    %v198 = vrot.slane %v181, %v197
    %v207 = vunpack.c.l.b16 %v49
    %v208 = vunpack.c.h.b16 %v49
    %v209 = vunpack.c.l.b16 %v50
    %v210 = vunpack.c.h.b16 %v50
    %v211 = vunpack.c.l.b16 %v51
    %v212 = vunpack.c.h.b16 %v51
    %v213 = vunpack.c.l.b16 %v52
    %v214 = vunpack.c.h.b16 %v52
    %v215 = vpack.c.b16 %v211, %v207
    %v216 = vpack.c.b16 %v212, %v208
    %v217 = vpack.c.b16 %v213, %v209
    %v218 = vpack.c.b16 %v214, %v210
    %v351 = vunpack.c.l.b16 %v53
    %v352 = vunpack.c.h.b16 %v53
    %v353 = vunpack.c.l.b16 %v54
    %v354 = vunpack.c.h.b16 %v54
    %v355 = vunpack.c.l.b16 %v55
    %v356 = vunpack.c.h.b16 %v55
    %v357 = vunpack.c.l.b16 %v56
    %v358 = vunpack.c.h.b16 %v56
    %v359 = vunpack.c.l.b16 %v57
    %v360 = vunpack.c.h.b16 %v57
    %v361 = vunpack.c.l.b16 %v58
    %v362 = vunpack.c.h.b16 %v58
    %v363 = vunpack.c.l.b16 %v59
    %v364 = vunpack.c.h.b16 %v59
    %v365 = vunpack.c.l.b16 %v60
    %v366 = vunpack.c.h.b16 %v60
    %v367 = vunpack.c.l.b16 %v61
    %v368 = vunpack.c.h.b16 %v61
    %v369 = vunpack.c.l.b16 %v62
    %v370 = vunpack.c.h.b16 %v62
    %v371 = vunpack.c.l.b16 %v63
    %v372 = vunpack.c.h.b16 %v63
    %v373 = vunpack.c.l.b16 %v64
    %v374 = vunpack.c.h.b16 %v64
    %v375 = vunpack.c.l.b16 %v65
    %v376 = vunpack.c.h.b16 %v65
    %v377 = vunpack.c.l.b16 %v66
    %v378 = vunpack.c.h.b16 %v66
    %v379 = vunpack.c.l.b16 %v67
    %v380 = vunpack.c.h.b16 %v67
    %v381 = vunpack.c.l.b16 %v68
    %v382 = vunpack.c.h.b16 %v68
    %v383 = vunpack.c.l.b16 %v69
    %v384 = vunpack.c.h.b16 %v69
    %v385 = vunpack.c.l.b16 %v70
    %v386 = vunpack.c.h.b16 %v70
    %v387 = vunpack.c.l.b16 %v71
    %v388 = vunpack.c.h.b16 %v71
    %v389 = vunpack.c.l.b16 %v72
    %v390 = vunpack.c.h.b16 %v72
    %v391 = vunpack.c.l.b16 %v73
    %v392 = vunpack.c.h.b16 %v73
    %v393 = vunpack.c.l.b16 %v74
    %v394 = vunpack.c.h.b16 %v74
    %v395 = vunpack.c.l.b16 %v75
    %v396 = vunpack.c.h.b16 %v75
    %v397 = vunpack.c.l.b16 %v76
    %v398 = vunpack.c.h.b16 %v76
    %v399 = vunpack.c.l.b16 %v77
    %v400 = vunpack.c.h.b16 %v77
    %v401 = vunpack.c.l.b16 %v78
    %v402 = vunpack.c.h.b16 %v78
    %v403 = vunpack.c.l.b16 %v79
    %v404 = vunpack.c.h.b16 %v79
    %v405 = vunpack.c.l.b16 %v80
    %v406 = vunpack.c.h.b16 %v80
    %v407 = vunpack.c.l.b16 %v81
    %v408 = vunpack.c.h.b16 %v81
    %v409 = vunpack.c.l.b16 %v82
    %v410 = vunpack.c.h.b16 %v82
    %v411 = vunpack.c.l.b16 %v83
    %v412 = vunpack.c.h.b16 %v83
    %v413 = vunpack.c.l.b16 %v84
    %v414 = vunpack.c.h.b16 %v84
    %v415 = vunpack.c.l.b16 %v85
    %v416 = vunpack.c.h.b16 %v85
    %v417 = vunpack.c.l.b16 %v86
    %v418 = vunpack.c.h.b16 %v86
    %v419 = vunpack.c.l.b16 %v87
    %v420 = vunpack.c.h.b16 %v87
    %v421 = vunpack.c.l.b16 %v88
    %v422 = vunpack.c.h.b16 %v88
    %v423 = vunpack.c.l.b16 %v89
    %v424 = vunpack.c.h.b16 %v89
    %v425 = vunpack.c.l.b16 %v90
    %v426 = vunpack.c.h.b16 %v90
    %v427 = vunpack.c.l.b16 %v91
    %v428 = vunpack.c.h.b16 %v91
    %v429 = vunpack.c.l.b16 %v92
    %v430 = vunpack.c.h.b16 %v92
    %v431 = vunpack.c.l.b16 %v93
    %v432 = vunpack.c.h.b16 %v93
    %v433 = vunpack.c.l.b16 %v94
    %v434 = vunpack.c.h.b16 %v94
    %v435 = vunpack.c.l.b16 %v95
    %v436 = vunpack.c.h.b16 %v95
    %v437 = vunpack.c.l.b16 %v96
    %v438 = vunpack.c.h.b16 %v96
    %v439 = vunpack.c.l.b16 %v97
    %v440 = vunpack.c.h.b16 %v97
    %v441 = vunpack.c.l.b16 %v98
    %v442 = vunpack.c.h.b16 %v98
    %v443 = vunpack.c.l.b16 %v99
    %v444 = vunpack.c.h.b16 %v99
    %v445 = vunpack.c.l.b16 %v100
    %v446 = vunpack.c.h.b16 %v100
    %v447 = vunpack.c.l.b16 %v101
    %v448 = vunpack.c.h.b16 %v101
    %v449 = vunpack.c.l.b16 %v102
    %v450 = vunpack.c.h.b16 %v102
    %v451 = vunpack.c.l.b16 %v103
    %v452 = vunpack.c.h.b16 %v103
    %v453 = vunpack.c.l.b16 %v104
    %v454 = vunpack.c.h.b16 %v104
    %v455 = vunpack.c.l.b16 %v105
    %v456 = vunpack.c.h.b16 %v105
    %v457 = vunpack.c.l.b16 %v106
    %v458 = vunpack.c.h.b16 %v106
    %v459 = vunpack.c.l.b16 %v107
    %v460 = vunpack.c.h.b16 %v107
    %v461 = vunpack.c.l.b16 %v108
    %v462 = vunpack.c.h.b16 %v108
    %v463 = vunpack.c.l.b16 %v109
    %v464 = vunpack.c.h.b16 %v109
    %v465 = vunpack.c.l.b16 %v110
    %v466 = vunpack.c.h.b16 %v110
    %v467 = vunpack.c.l.b16 %v111
    %v468 = vunpack.c.h.b16 %v111
    %v469 = vunpack.c.l.b16 %v112
    %v470 = vunpack.c.h.b16 %v112
    %v471 = vunpack.c.l.b16 %v113
    %v472 = vunpack.c.h.b16 %v113
    %v473 = vunpack.c.l.b16 %v114
    %v474 = vunpack.c.h.b16 %v114
    %v475 = vunpack.c.l.b16 %v115
    %v476 = vunpack.c.h.b16 %v115
    %v477 = vunpack.c.l.b16 %v116
    %v478 = vunpack.c.h.b16 %v116
    %v479 = vunpack.c.l.b16 %v117
    %v480 = vunpack.c.h.b16 %v117
    %v481 = vunpack.c.l.b16 %v118
    %v482 = vunpack.c.h.b16 %v118
    %v483 = vunpack.c.l.b16 %v119
    %v484 = vunpack.c.h.b16 %v119
    %v485 = vunpack.c.l.b16 %v120
    %v486 = vunpack.c.h.b16 %v120
    %v487 = vunpack.c.l.b16 %v121
    %v488 = vunpack.c.h.b16 %v121
    %v489 = vunpack.c.l.b16 %v122
    %v490 = vunpack.c.h.b16 %v122
    %v491 = vunpack.c.l.b16 %v123
    %v492 = vunpack.c.h.b16 %v123
    %v493 = vunpack.c.l.b16 %v124
    %v494 = vunpack.c.h.b16 %v124
    %v495 = vunpack.c.l.b16 %v125
    %v496 = vunpack.c.h.b16 %v125
    %v497 = vunpack.c.l.b16 %v126
    %v498 = vunpack.c.h.b16 %v126
    %v499 = vunpack.c.l.b16 %v127
    %v500 = vunpack.c.h.b16 %v127
    %v501 = vunpack.c.l.b16 %v128
    %v502 = vunpack.c.h.b16 %v128
    %v503 = vunpack.c.l.b16 %v129
    %v504 = vunpack.c.h.b16 %v129
    %v505 = vunpack.c.l.b16 %v130
    %v506 = vunpack.c.h.b16 %v130
    %v507 = vunpack.c.l.b16 %v131
    %v508 = vunpack.c.h.b16 %v131
    %v509 = vunpack.c.l.b16 %v132
    %v510 = vunpack.c.h.b16 %v132
    %v511 = vunpack.c.l.b16 %v133
    %v512 = vunpack.c.h.b16 %v133
    %v513 = vunpack.c.l.b16 %v134
    %v514 = vunpack.c.h.b16 %v134
    %v515 = vunpack.c.l.b16 %v135
    %v516 = vunpack.c.h.b16 %v135
    %v517 = vunpack.c.l.b16 %v136
    %v518 = vunpack.c.h.b16 %v136
    %v519 = vunpack.c.l.b16 %v137
    %v520 = vunpack.c.h.b16 %v137
    %v521 = vunpack.c.l.b16 %v138
    %v522 = vunpack.c.h.b16 %v138
    %v523 = vunpack.c.l.b16 %v139
    %v524 = vunpack.c.h.b16 %v139
    %v525 = vunpack.c.l.b16 %v140
    %v526 = vunpack.c.h.b16 %v140
    %v527 = vunpack.c.l.b16 %v141
    %v528 = vunpack.c.h.b16 %v141
    %v529 = vunpack.c.l.b16 %v142
    %v530 = vunpack.c.h.b16 %v142
    %v531 = vunpack.c.l.b16 %v143
    %v532 = vunpack.c.h.b16 %v143
    %v533 = vunpack.c.l.b16 %v144
    %v534 = vunpack.c.h.b16 %v144
    %v535 = vunpack.c.l.b16 %v145
    %v536 = vunpack.c.h.b16 %v145
    %v537 = vunpack.c.l.b16 %v146
    %v538 = vunpack.c.h.b16 %v146
    %v539 = vunpack.c.l.b16 %v147
    %v540 = vunpack.c.h.b16 %v147
    %v541 = vunpack.c.l.b16 %v148
    %v542 = vunpack.c.h.b16 %v148
    %v543 = vunpack.c.l.b16 %v149
    %v544 = vunpack.c.h.b16 %v149
    %v545 = vunpack.c.l.b16 %v150
    %v546 = vunpack.c.h.b16 %v150
    %v547 = vunpack.c.l.b16 %v151
    %v548 = vunpack.c.h.b16 %v151
    %v549 = vunpack.c.l.b16 %v152
    %v550 = vunpack.c.h.b16 %v152
    %v551 = vunpack.c.l.b16 %v153
    %v552 = vunpack.c.h.b16 %v153
    %v553 = vunpack.c.l.b16 %v154
    %v554 = vunpack.c.h.b16 %v154
    %v555 = vunpack.c.l.b16 %v155
    %v556 = vunpack.c.h.b16 %v155
    %v557 = vunpack.c.l.b16 %v156
    %v558 = vunpack.c.h.b16 %v156
    %v559 = vunpack.c.l.b16 %v157
    %v560 = vunpack.c.h.b16 %v157
    %v561 = vunpack.c.l.b16 %v158
    %v562 = vunpack.c.h.b16 %v158
    %v563 = vunpack.c.l.b16 %v159
    %v564 = vunpack.c.h.b16 %v159
    %v565 = vunpack.c.l.b16 %v160
    %v566 = vunpack.c.h.b16 %v160
    %v567 = vunpack.c.l.b16 %v161
    %v568 = vunpack.c.h.b16 %v161
    %v569 = vunpack.c.l.b16 %v162
    %v570 = vunpack.c.h.b16 %v162
    %v571 = vunpack.c.l.b16 %v163
    %v572 = vunpack.c.h.b16 %v163
    %v573 = vunpack.c.l.b16 %v164
    %v574 = vunpack.c.h.b16 %v164
    %v575 = vunpack.c.l.b16 %v165
    %v576 = vunpack.c.h.b16 %v165
    %v577 = vunpack.c.l.b16 %v166
    %v578 = vunpack.c.h.b16 %v166
    %v579 = vunpack.c.l.b16 %v167
    %v580 = vunpack.c.h.b16 %v167
    %v581 = vunpack.c.l.b16 %v168
    %v582 = vunpack.c.h.b16 %v168
    %v583 = vunpack.c.l.b16 %v169
    %v584 = vunpack.c.h.b16 %v169
    %v585 = vunpack.c.l.b16 %v170
    %v586 = vunpack.c.h.b16 %v170
    %v587 = vunpack.c.l.b16 %v171
    %v588 = vunpack.c.h.b16 %v171
    %v589 = vunpack.c.l.b16 %v172
    %v590 = vunpack.c.h.b16 %v172
    %v591 = vunpack.c.l.b16 %v173
    %v592 = vunpack.c.h.b16 %v173
    %v593 = vunpack.c.l.b16 %v174
    %v594 = vunpack.c.h.b16 %v174
    %v595 = vunpack.c.l.b16 %v175
    %v596 = vunpack.c.h.b16 %v175
    %v597 = vunpack.c.l.b16 %v176
    %v598 = vunpack.c.h.b16 %v176
    %v599 = vunpack.c.l.b16 %v177
    %v600 = vunpack.c.h.b16 %v177
    %v601 = vunpack.c.l.b16 %v178
    %v602 = vunpack.c.h.b16 %v178
    %v603 = vunpack.c.l.b16 %v179
    %v604 = vunpack.c.h.b16 %v179
    %v605 = vunpack.c.l.b16 %v180
    %v606 = vunpack.c.h.b16 %v180
    %v607 = vpack.c.b16 %v355, %v351
    %v608 = vpack.c.b16 %v356, %v352
    %v609 = vpack.c.b16 %v357, %v353
    %v610 = vpack.c.b16 %v358, %v354
    %v611 = vpack.c.b16 %v363, %v359
    %v612 = vpack.c.b16 %v364, %v360
    %v613 = vpack.c.b16 %v365, %v361
    %v614 = vpack.c.b16 %v366, %v362
    %v615 = vpack.c.b16 %v371, %v367
    %v616 = vpack.c.b16 %v372, %v368
    %v617 = vpack.c.b16 %v373, %v369
    %v618 = vpack.c.b16 %v374, %v370
    %v619 = vpack.c.b16 %v379, %v375
    %v620 = vpack.c.b16 %v380, %v376
    %v621 = vpack.c.b16 %v381, %v377
    %v622 = vpack.c.b16 %v382, %v378
    %v623 = vpack.c.b16 %v387, %v383
    %v624 = vpack.c.b16 %v388, %v384
    %v625 = vpack.c.b16 %v389, %v385
    %v626 = vpack.c.b16 %v390, %v386
    %v627 = vpack.c.b16 %v395, %v391
    %v628 = vpack.c.b16 %v396, %v392
    %v629 = vpack.c.b16 %v397, %v393
    %v630 = vpack.c.b16 %v398, %v394
    %v631 = vpack.c.b16 %v403, %v399
    %v632 = vpack.c.b16 %v404, %v400
    %v633 = vpack.c.b16 %v405, %v401
    %v634 = vpack.c.b16 %v406, %v402
    %v635 = vpack.c.b16 %v411, %v407
    %v636 = vpack.c.b16 %v412, %v408
    %v637 = vpack.c.b16 %v413, %v409
    %v638 = vpack.c.b16 %v414, %v410
    %v639 = vpack.c.b16 %v419, %v415
    %v640 = vpack.c.b16 %v420, %v416
    %v641 = vpack.c.b16 %v421, %v417
    %v642 = vpack.c.b16 %v422, %v418
    %v643 = vpack.c.b16 %v427, %v423
    %v644 = vpack.c.b16 %v428, %v424
    %v645 = vpack.c.b16 %v429, %v425
    %v646 = vpack.c.b16 %v430, %v426
    %v647 = vpack.c.b16 %v435, %v431
    %v648 = vpack.c.b16 %v436, %v432
    %v649 = vpack.c.b16 %v437, %v433
    %v650 = vpack.c.b16 %v438, %v434
    %v651 = vpack.c.b16 %v443, %v439
    %v652 = vpack.c.b16 %v444, %v440
    %v653 = vpack.c.b16 %v445, %v441
    %v654 = vpack.c.b16 %v446, %v442
    %v655 = vpack.c.b16 %v451, %v447
    %v656 = vpack.c.b16 %v452, %v448
    %v657 = vpack.c.b16 %v453, %v449
    %v658 = vpack.c.b16 %v454, %v450
    %v659 = vpack.c.b16 %v459, %v455
    %v660 = vpack.c.b16 %v460, %v456
    %v661 = vpack.c.b16 %v461, %v457
    %v662 = vpack.c.b16 %v462, %v458
    %v663 = vpack.c.b16 %v467, %v463
    %v664 = vpack.c.b16 %v468, %v464
    %v665 = vpack.c.b16 %v469, %v465
    %v666 = vpack.c.b16 %v470, %v466
    %v667 = vpack.c.b16 %v475, %v471
    %v668 = vpack.c.b16 %v476, %v472
    %v669 = vpack.c.b16 %v477, %v473
    %v670 = vpack.c.b16 %v478, %v474
    %v671 = vpack.c.b16 %v483, %v479
    %v672 = vpack.c.b16 %v484, %v480
    %v673 = vpack.c.b16 %v485, %v481
    %v674 = vpack.c.b16 %v486, %v482
    %v675 = vpack.c.b16 %v491, %v487
    %v676 = vpack.c.b16 %v492, %v488
    %v677 = vpack.c.b16 %v493, %v489
    %v678 = vpack.c.b16 %v494, %v490
    %v679 = vpack.c.b16 %v499, %v495
    %v680 = vpack.c.b16 %v500, %v496
    %v681 = vpack.c.b16 %v501, %v497
    %v682 = vpack.c.b16 %v502, %v498
    %v683 = vpack.c.b16 %v507, %v503
    %v684 = vpack.c.b16 %v508, %v504
    %v685 = vpack.c.b16 %v509, %v505
    %v686 = vpack.c.b16 %v510, %v506
    %v687 = vpack.c.b16 %v515, %v511
    %v688 = vpack.c.b16 %v516, %v512
    %v689 = vpack.c.b16 %v517, %v513
    %v690 = vpack.c.b16 %v518, %v514
    %v691 = vpack.c.b16 %v523, %v519
    %v692 = vpack.c.b16 %v524, %v520
    %v693 = vpack.c.b16 %v525, %v521
    %v694 = vpack.c.b16 %v526, %v522
    %v695 = vpack.c.b16 %v531, %v527
    %v696 = vpack.c.b16 %v532, %v528
    %v697 = vpack.c.b16 %v533, %v529
    %v698 = vpack.c.b16 %v534, %v530
    %v699 = vpack.c.b16 %v539, %v535
    %v700 = vpack.c.b16 %v540, %v536
    %v701 = vpack.c.b16 %v541, %v537
    %v702 = vpack.c.b16 %v542, %v538
    %v703 = vpack.c.b16 %v547, %v543
    %v704 = vpack.c.b16 %v548, %v544
    %v705 = vpack.c.b16 %v549, %v545
    %v706 = vpack.c.b16 %v550, %v546
    %v707 = vpack.c.b16 %v555, %v551
    %v708 = vpack.c.b16 %v556, %v552
    %v709 = vpack.c.b16 %v557, %v553
    %v710 = vpack.c.b16 %v558, %v554
    %v711 = vpack.c.b16 %v563, %v559
    %v712 = vpack.c.b16 %v564, %v560
    %v713 = vpack.c.b16 %v565, %v561
    %v714 = vpack.c.b16 %v566, %v562
    %v715 = vpack.c.b16 %v571, %v567
    %v716 = vpack.c.b16 %v572, %v568
    %v717 = vpack.c.b16 %v573, %v569
    %v718 = vpack.c.b16 %v574, %v570
    %v719 = vpack.c.b16 %v579, %v575
    %v720 = vpack.c.b16 %v580, %v576
    %v721 = vpack.c.b16 %v581, %v577
    %v722 = vpack.c.b16 %v582, %v578
    %v723 = vpack.c.b16 %v587, %v583
    %v724 = vpack.c.b16 %v588, %v584
    %v725 = vpack.c.b16 %v589, %v585
    %v726 = vpack.c.b16 %v590, %v586
    %v727 = vpack.c.b16 %v595, %v591
    %v728 = vpack.c.b16 %v596, %v592
    %v729 = vpack.c.b16 %v597, %v593
    %v730 = vpack.c.b16 %v598, %v594
    %v731 = vpack.c.b16 %v603, %v599
    %v732 = vpack.c.b16 %v604, %v600
    %v733 = vpack.c.b16 %v605, %v601
    %v734 = vpack.c.b16 %v606, %v602
    %863 = vmatprep.subr.bf16.mxu0 %v636
    %864 = vmatpush1.bf16.msra.mxu0 %v635
    %865 = vmatprep.subr.bf16.mxu0 %v632
    %866 = vmatpush1.bf16.msra.mxu0 %v631
    %867 = vmatprep.subr.bf16.mxu0 %v628
    %868 = vmatpush1.bf16.msra.mxu0 %v627
    %869 = vmatprep.subr.bf16.mxu0 %v624
    %870 = vmatpush1.bf16.msra.mxu0 %v623
    %871 = vmatprep.subr.bf16.mxu0 %v620
    %872 = vmatpush1.bf16.msra.mxu0 %v619
    %873 = vmatprep.subr.bf16.mxu0 %v616
    %874 = vmatpush1.bf16.msra.mxu0 %v615
    %875 = vmatprep.subr.bf16.mxu0 %v612
    %876 = vmatpush1.bf16.msra.mxu0 %v611
    %877 = vmatprep.subr.bf16.mxu0 %v608
    %878 = vmatpush1.bf16.msra.mxu0 %v607
    %879 = vmatprep.subr.bf16.mxu0 %v668
    %880 = vmatpush2.bf16.msra.mxu0 %v667
    %881 = vmatprep.subr.bf16.mxu0 %v664
    %882 = vmatpush2.bf16.msra.mxu0 %v663
    %883 = vmatprep.subr.bf16.mxu0 %v660
    %884 = vmatpush2.bf16.msra.mxu0 %v659
    %885 = vmatprep.subr.bf16.mxu0 %v656
    %886 = vmatpush2.bf16.msra.mxu0 %v655
    %887 = vmatprep.subr.bf16.mxu0 %v652
    %888 = vmatpush2.bf16.msra.mxu0 %v651
    %889 = vmatprep.subr.bf16.mxu0 %v648
    %890 = vmatpush2.bf16.msra.mxu0 %v647
    %891 = vmatprep.subr.bf16.mxu0 %v644
    %892 = vmatpush2.bf16.msra.mxu0 %v643
    %893 = vmatprep.subr.bf16.mxu0 %v640
    %894 = vmatpush2.bf16.msra.mxu0 %v639
    %895 = vmatprep.mubr.bf16.mxu0 %v216
    %896 = vmatmul.mubr.bf16.gmra.mxu0 %v215
    %v897 = vpop.f32.mrf.mxu0
    %v898 = vadd.f32 %v186, %v897
    %v899 = vpop.f32.mrf.mxu0
    %v900 = vadd.f32 %v190, %v899
    %v901 = vpop.f32.mrf.mxu0
    %v902 = vadd.f32 %v186, %v901
    %v903 = vpop.f32.mrf.mxu0
    %v904 = vadd.f32 %v190, %v903
    %905 = vdwg.mxu0
    %906 = vmatprep.subr.bf16.mxu0 %v700
    %907 = vmatpush1.bf16.msra.mxu0 %v699
    %908 = vmatprep.subr.bf16.mxu0 %v696
    %909 = vmatpush1.bf16.msra.mxu0 %v695
    %910 = vmatprep.subr.bf16.mxu0 %v692
    %911 = vmatpush1.bf16.msra.mxu0 %v691
    %912 = vmatprep.subr.bf16.mxu0 %v688
    %913 = vmatpush1.bf16.msra.mxu0 %v687
    %914 = vmatprep.subr.bf16.mxu0 %v684
    %915 = vmatpush1.bf16.msra.mxu0 %v683
    %916 = vmatprep.subr.bf16.mxu0 %v680
    %917 = vmatpush1.bf16.msra.mxu0 %v679
    %918 = vmatprep.subr.bf16.mxu0 %v676
    %919 = vmatpush1.bf16.msra.mxu0 %v675
    %920 = vmatprep.subr.bf16.mxu0 %v672
    %921 = vmatpush1.bf16.msra.mxu0 %v671
    %922 = vmatprep.subr.bf16.mxu0 %v732
    %923 = vmatpush2.bf16.msra.mxu0 %v731
    %924 = vmatprep.subr.bf16.mxu0 %v728
    %925 = vmatpush2.bf16.msra.mxu0 %v727
    %926 = vmatprep.subr.bf16.mxu0 %v724
    %927 = vmatpush2.bf16.msra.mxu0 %v723
    %928 = vmatprep.subr.bf16.mxu0 %v720
    %929 = vmatpush2.bf16.msra.mxu0 %v719
    %930 = vmatprep.subr.bf16.mxu0 %v716
    %931 = vmatpush2.bf16.msra.mxu0 %v715
    %932 = vmatprep.subr.bf16.mxu0 %v712
    %933 = vmatpush2.bf16.msra.mxu0 %v711
    %934 = vmatprep.subr.bf16.mxu0 %v708
    %935 = vmatpush2.bf16.msra.mxu0 %v707
    %936 = vmatprep.subr.bf16.mxu0 %v704
    %937 = vmatpush2.bf16.msra.mxu0 %v703
    %938 = vmatprep.mubr.bf16.mxu0 %v218
    %939 = vmatmul.mubr.bf16.gmra.mxu0 %v217
    %v940 = vpop.f32.mrf.mxu0
    %v941 = vadd.f32 %v898, %v940
    %v942 = vpop.f32.mrf.mxu0
    %v943 = vadd.f32 %v900, %v942
    %v944 = vpop.f32.mrf.mxu0
    %v945 = vadd.f32 %v902, %v944
    %v946 = vpop.f32.mrf.mxu0
    %v947 = vadd.f32 %v904, %v946
    %948 = vdwg.mxu0
    %949 = vmatprep.subr.bf16.mxu0 %v638
    %950 = vmatpush1.bf16.msra.mxu0 %v637
    %951 = vmatprep.subr.bf16.mxu0 %v634
    %952 = vmatpush1.bf16.msra.mxu0 %v633
    %953 = vmatprep.subr.bf16.mxu0 %v630
    %954 = vmatpush1.bf16.msra.mxu0 %v629
    %955 = vmatprep.subr.bf16.mxu0 %v626
    %956 = vmatpush1.bf16.msra.mxu0 %v625
    %957 = vmatprep.subr.bf16.mxu0 %v622
    %958 = vmatpush1.bf16.msra.mxu0 %v621
    %959 = vmatprep.subr.bf16.mxu0 %v618
    %960 = vmatpush1.bf16.msra.mxu0 %v617
    %961 = vmatprep.subr.bf16.mxu0 %v614
    %962 = vmatpush1.bf16.msra.mxu0 %v613
    %963 = vmatprep.subr.bf16.mxu0 %v610
    %964 = vmatpush1.bf16.msra.mxu0 %v609
    %965 = vmatprep.subr.bf16.mxu0 %v670
    %966 = vmatpush2.bf16.msra.mxu0 %v669
    %967 = vmatprep.subr.bf16.mxu0 %v666
    %968 = vmatpush2.bf16.msra.mxu0 %v665
    %969 = vmatprep.subr.bf16.mxu0 %v662
    %970 = vmatpush2.bf16.msra.mxu0 %v661
    %971 = vmatprep.subr.bf16.mxu0 %v658
    %972 = vmatpush2.bf16.msra.mxu0 %v657
    %973 = vmatprep.subr.bf16.mxu0 %v654
    %974 = vmatpush2.bf16.msra.mxu0 %v653
    %975 = vmatprep.subr.bf16.mxu0 %v650
    %976 = vmatpush2.bf16.msra.mxu0 %v649
    %977 = vmatprep.subr.bf16.mxu0 %v646
    %978 = vmatpush2.bf16.msra.mxu0 %v645
    %979 = vmatprep.subr.bf16.mxu0 %v642
    %980 = vmatpush2.bf16.msra.mxu0 %v641
    %981 = vmatprep.mubr.bf16.mxu0 %v216
    %982 = vmatmul.mubr.bf16.gmra.mxu0 %v215
    %v983 = vpop.f32.mrf.mxu0
    %v984 = vadd.f32 %v194, %v983
    %v985 = vpop.f32.mrf.mxu0
    %v986 = vadd.f32 %v198, %v985
    %v987 = vpop.f32.mrf.mxu0
    %v988 = vadd.f32 %v194, %v987
    %v989 = vpop.f32.mrf.mxu0
    %v990 = vadd.f32 %v198, %v989
    %991 = vdwg.mxu0
    %992 = vmatprep.subr.bf16.mxu0 %v702
    %993 = vmatpush1.bf16.msra.mxu0 %v701
    %994 = vmatprep.subr.bf16.mxu0 %v698
    %995 = vmatpush1.bf16.msra.mxu0 %v697
    %996 = vmatprep.subr.bf16.mxu0 %v694
    %997 = vmatpush1.bf16.msra.mxu0 %v693
    %998 = vmatprep.subr.bf16.mxu0 %v690
    %999 = vmatpush1.bf16.msra.mxu0 %v689
    %1000 = vmatprep.subr.bf16.mxu0 %v686
    %1001 = vmatpush1.bf16.msra.mxu0 %v685
    %1002 = vmatprep.subr.bf16.mxu0 %v682
    %1003 = vmatpush1.bf16.msra.mxu0 %v681
    %1004 = vmatprep.subr.bf16.mxu0 %v678
    %1005 = vmatpush1.bf16.msra.mxu0 %v677
    %1006 = vmatprep.subr.bf16.mxu0 %v674
    %1007 = vmatpush1.bf16.msra.mxu0 %v673
    %1008 = vmatprep.subr.bf16.mxu0 %v734
    %1009 = vmatpush2.bf16.msra.mxu0 %v733
    %1010 = vmatprep.subr.bf16.mxu0 %v730
    %1011 = vmatpush2.bf16.msra.mxu0 %v729
    %1012 = vmatprep.subr.bf16.mxu0 %v726
    %1013 = vmatpush2.bf16.msra.mxu0 %v725
    %1014 = vmatprep.subr.bf16.mxu0 %v722
    %1015 = vmatpush2.bf16.msra.mxu0 %v721
    %1016 = vmatprep.subr.bf16.mxu0 %v718
    %1017 = vmatpush2.bf16.msra.mxu0 %v717
    %1018 = vmatprep.subr.bf16.mxu0 %v714
    %1019 = vmatpush2.bf16.msra.mxu0 %v713
    %1020 = vmatprep.subr.bf16.mxu0 %v710
    %1021 = vmatpush2.bf16.msra.mxu0 %v709
    %1022 = vmatprep.subr.bf16.mxu0 %v706
    %1023 = vmatpush2.bf16.msra.mxu0 %v705
    %1024 = vmatprep.mubr.bf16.mxu0 %v218
    %1025 = vmatmul.mubr.bf16.gmra.mxu0 %v217
    %v1026 = vpop.f32.mrf.mxu0
    %v1027 = vadd.f32 %v984, %v1026
    %v1028 = vpop.f32.mrf.mxu0
    %v1029 = vadd.f32 %v986, %v1028
    %v1030 = vpop.f32.mrf.mxu0
    %v1031 = vadd.f32 %v988, %v1030
    %v1032 = vpop.f32.mrf.mxu0
    %v1033 = vadd.f32 %v990, %v1032
    %1034 = vdwg.mxu0
    %v1035 = vld [vmem:[%s1] sm:$0xff]
    %v1036 = vld [vmem:[%s1 + $0x8] sm:$0xff]
    %v1037 = vld [vmem:[%s1 + $0x10] sm:$0xff]
    %v1038 = vld [vmem:[%s1 + $0x18] sm:$0xff]
    %v1039 = vld [vmem:[%s6] sm:$0xff]
    %v1040 = vld [vmem:[%s6 + $0x8] sm:$0xff]
    %v1041 = vld [vmem:[%s6 + $0x10] sm:$0xff]
    %v1042 = vld [vmem:[%s6 + $0x18] sm:$0xff]
    %v1043 = vld [vmem:[%s6 + $0x20] sm:$0xff]
    %v1044 = vld [vmem:[%s6 + $0x28] sm:$0xff]
    %v1045 = vld [vmem:[%s6 + $0x30] sm:$0xff]
    %v1046 = vld [vmem:[%s6 + $0x38] sm:$0xff]
    %v1047 = vld [vmem:[%s6 + $0x40] sm:$0xff]
    %v1048 = vld [vmem:[%s6 + $0x48] sm:$0xff]
    %v1049 = vld [vmem:[%s6 + $0x50] sm:$0xff]
    %v1050 = vld [vmem:[%s6 + $0x58] sm:$0xff]
    %v1051 = vld [vmem:[%s6 + $0x60] sm:$0xff]
    %v1052 = vld [vmem:[%s6 + $0x68] sm:$0xff]
    %v1053 = vld [vmem:[%s6 + $0x70] sm:$0xff]
    %v1054 = vld [vmem:[%s6 + $0x78] sm:$0xff]
    %v1055 = vld [vmem:[%s6 + $0x80] sm:$0xff]
    %v1056 = vld [vmem:[%s6 + $0x88] sm:$0xff]
    %v1057 = vld [vmem:[%s6 + $0x90] sm:$0xff]
    %v1058 = vld [vmem:[%s6 + $0x98] sm:$0xff]
    %v1059 = vld [vmem:[%s6 + $0xa0] sm:$0xff]
    %v1060 = vld [vmem:[%s6 + $0xa8] sm:$0xff]
    %v1061 = vld [vmem:[%s6 + $0xb0] sm:$0xff]
    %v1062 = vld [vmem:[%s6 + $0xb8] sm:$0xff]
    %v1063 = vld [vmem:[%s6 + $0xc0] sm:$0xff]
    %v1064 = vld [vmem:[%s6 + $0xc8] sm:$0xff]
    %v1065 = vld [vmem:[%s6 + $0xd0] sm:$0xff]
    %v1066 = vld [vmem:[%s6 + $0xd8] sm:$0xff]
    %v1067 = vld [vmem:[%s6 + $0xe0] sm:$0xff]
    %v1068 = vld [vmem:[%s6 + $0xe8] sm:$0xff]
    %v1069 = vld [vmem:[%s6 + $0xf0] sm:$0xff]
    %v1070 = vld [vmem:[%s6 + $0xf8] sm:$0xff]
    %v1071 = vld [vmem:[%s6 + $0x100] sm:$0xff]
    %v1072 = vld [vmem:[%s6 + $0x108] sm:$0xff]
    %v1073 = vld [vmem:[%s6 + $0x110] sm:$0xff]
    %v1074 = vld [vmem:[%s6 + $0x118] sm:$0xff]
    %v1075 = vld [vmem:[%s6 + $0x120] sm:$0xff]
    %v1076 = vld [vmem:[%s6 + $0x128] sm:$0xff]
    %v1077 = vld [vmem:[%s6 + $0x130] sm:$0xff]
    %v1078 = vld [vmem:[%s6 + $0x138] sm:$0xff]
    %v1079 = vld [vmem:[%s6 + $0x140] sm:$0xff]
    %v1080 = vld [vmem:[%s6 + $0x148] sm:$0xff]
    %v1081 = vld [vmem:[%s6 + $0x150] sm:$0xff]
    %v1082 = vld [vmem:[%s6 + $0x158] sm:$0xff]
    %v1083 = vld [vmem:[%s6 + $0x160] sm:$0xff]
    %v1084 = vld [vmem:[%s6 + $0x168] sm:$0xff]
    %v1085 = vld [vmem:[%s6 + $0x170] sm:$0xff]
    %v1086 = vld [vmem:[%s6 + $0x178] sm:$0xff]
    %v1087 = vld [vmem:[%s6 + $0x180] sm:$0xff]
    %v1088 = vld [vmem:[%s6 + $0x188] sm:$0xff]
    %v1089 = vld [vmem:[%s6 + $0x190] sm:$0xff]
    %v1090 = vld [vmem:[%s6 + $0x198] sm:$0xff]
    %v1091 = vld [vmem:[%s6 + $0x1a0] sm:$0xff]
    %v1092 = vld [vmem:[%s6 + $0x1a8] sm:$0xff]
    %v1093 = vld [vmem:[%s6 + $0x1b0] sm:$0xff]
    %v1094 = vld [vmem:[%s6 + $0x1b8] sm:$0xff]
    %v1095 = vld [vmem:[%s6 + $0x1c0] sm:$0xff]
    %v1096 = vld [vmem:[%s6 + $0x1c8] sm:$0xff]
    %v1097 = vld [vmem:[%s6 + $0x1d0] sm:$0xff]
    %v1098 = vld [vmem:[%s6 + $0x1d8] sm:$0xff]
    %v1099 = vld [vmem:[%s6 + $0x1e0] sm:$0xff]
    %v1100 = vld [vmem:[%s6 + $0x1e8] sm:$0xff]
    %v1101 = vld [vmem:[%s6 + $0x1f0] sm:$0xff]
    %v1102 = vld [vmem:[%s6 + $0x1f8] sm:$0xff]
    %v1103 = vld [vmem:[%s6 + $0x200] sm:$0xff]
    %v1104 = vld [vmem:[%s6 + $0x208] sm:$0xff]
    %v1105 = vld [vmem:[%s6 + $0x210] sm:$0xff]
    %v1106 = vld [vmem:[%s6 + $0x218] sm:$0xff]
    %v1107 = vld [vmem:[%s6 + $0x220] sm:$0xff]
    %v1108 = vld [vmem:[%s6 + $0x228] sm:$0xff]
    %v1109 = vld [vmem:[%s6 + $0x230] sm:$0xff]
    %v1110 = vld [vmem:[%s6 + $0x238] sm:$0xff]
    %v1111 = vld [vmem:[%s6 + $0x240] sm:$0xff]
    %v1112 = vld [vmem:[%s6 + $0x248] sm:$0xff]
    %v1113 = vld [vmem:[%s6 + $0x250] sm:$0xff]
    %v1114 = vld [vmem:[%s6 + $0x258] sm:$0xff]
    %v1115 = vld [vmem:[%s6 + $0x260] sm:$0xff]
    %v1116 = vld [vmem:[%s6 + $0x268] sm:$0xff]
    %v1117 = vld [vmem:[%s6 + $0x270] sm:$0xff]
    %v1118 = vld [vmem:[%s6 + $0x278] sm:$0xff]
    %v1119 = vld [vmem:[%s6 + $0x280] sm:$0xff]
    %v1120 = vld [vmem:[%s6 + $0x288] sm:$0xff]
    %v1121 = vld [vmem:[%s6 + $0x290] sm:$0xff]
    %v1122 = vld [vmem:[%s6 + $0x298] sm:$0xff]
    %v1123 = vld [vmem:[%s6 + $0x2a0] sm:$0xff]
    %v1124 = vld [vmem:[%s6 + $0x2a8] sm:$0xff]
    %v1125 = vld [vmem:[%s6 + $0x2b0] sm:$0xff]
    %v1126 = vld [vmem:[%s6 + $0x2b8] sm:$0xff]
    %v1127 = vld [vmem:[%s6 + $0x2c0] sm:$0xff]
    %v1128 = vld [vmem:[%s6 + $0x2c8] sm:$0xff]
    %v1129 = vld [vmem:[%s6 + $0x2d0] sm:$0xff]
    %v1130 = vld [vmem:[%s6 + $0x2d8] sm:$0xff]
    %v1131 = vld [vmem:[%s6 + $0x2e0] sm:$0xff]
    %v1132 = vld [vmem:[%s6 + $0x2e8] sm:$0xff]
    %v1133 = vld [vmem:[%s6 + $0x2f0] sm:$0xff]
    %v1134 = vld [vmem:[%s6 + $0x2f8] sm:$0xff]
    %v1135 = vld [vmem:[%s6 + $0x300] sm:$0xff]
    %v1136 = vld [vmem:[%s6 + $0x308] sm:$0xff]
    %v1137 = vld [vmem:[%s6 + $0x310] sm:$0xff]
    %v1138 = vld [vmem:[%s6 + $0x318] sm:$0xff]
    %v1139 = vld [vmem:[%s6 + $0x320] sm:$0xff]
    %v1140 = vld [vmem:[%s6 + $0x328] sm:$0xff]
    %v1141 = vld [vmem:[%s6 + $0x330] sm:$0xff]
    %v1142 = vld [vmem:[%s6 + $0x338] sm:$0xff]
    %v1143 = vld [vmem:[%s6 + $0x340] sm:$0xff]
    %v1144 = vld [vmem:[%s6 + $0x348] sm:$0xff]
    %v1145 = vld [vmem:[%s6 + $0x350] sm:$0xff]
    %v1146 = vld [vmem:[%s6 + $0x358] sm:$0xff]
    %v1147 = vld [vmem:[%s6 + $0x360] sm:$0xff]
    %v1148 = vld [vmem:[%s6 + $0x368] sm:$0xff]
    %v1149 = vld [vmem:[%s6 + $0x370] sm:$0xff]
    %v1150 = vld [vmem:[%s6 + $0x378] sm:$0xff]
    %v1151 = vld [vmem:[%s6 + $0x380] sm:$0xff]
    %v1152 = vld [vmem:[%s6 + $0x388] sm:$0xff]
    %v1153 = vld [vmem:[%s6 + $0x390] sm:$0xff]
    %v1154 = vld [vmem:[%s6 + $0x398] sm:$0xff]
    %v1155 = vld [vmem:[%s6 + $0x3a0] sm:$0xff]
    %v1156 = vld [vmem:[%s6 + $0x3a8] sm:$0xff]
    %v1157 = vld [vmem:[%s6 + $0x3b0] sm:$0xff]
    %v1158 = vld [vmem:[%s6 + $0x3b8] sm:$0xff]
    %v1159 = vld [vmem:[%s6 + $0x3c0] sm:$0xff]
    %v1160 = vld [vmem:[%s6 + $0x3c8] sm:$0xff]
    %v1161 = vld [vmem:[%s6 + $0x3d0] sm:$0xff]
    %v1162 = vld [vmem:[%s6 + $0x3d8] sm:$0xff]
    %v1163 = vld [vmem:[%s6 + $0x3e0] sm:$0xff]
    %v1164 = vld [vmem:[%s6 + $0x3e8] sm:$0xff]
    %v1165 = vld [vmem:[%s6 + $0x3f0] sm:$0xff]
    %v1166 = vld [vmem:[%s6 + $0x3f8] sm:$0xff]
    %v1167 = vld [vmem:[%s7] sm:$0xf]
    %v1169 = vlaneseq
    %v1170 = vshrl.u32 %v1169, 7
    %v1171 = vsub.s32 0, %v1170
    %v1172 = vrot.slane %v1167, %v1171
    %v1173 = vlaneseq
    %v1174 = vshrl.u32 %v1173, 7
    %v1175 = vsub.s32 1, %v1174
    %v1176 = vrot.slane %v1167, %v1175
    %v1177 = vlaneseq
    %v1178 = vshrl.u32 %v1177, 7
    %v1179 = vsub.s32 2, %v1178
    %v1180 = vrot.slane %v1167, %v1179
    %v1181 = vlaneseq
    %v1182 = vshrl.u32 %v1181, 7
    %v1183 = vsub.s32 3, %v1182
    %v1184 = vrot.slane %v1167, %v1183
    %v1193 = vunpack.c.l.b16 %v1035
    %v1194 = vunpack.c.h.b16 %v1035
    %v1195 = vunpack.c.l.b16 %v1036
    %v1196 = vunpack.c.h.b16 %v1036
    %v1197 = vunpack.c.l.b16 %v1037
    %v1198 = vunpack.c.h.b16 %v1037
    %v1199 = vunpack.c.l.b16 %v1038
    %v1200 = vunpack.c.h.b16 %v1038
    %v1201 = vpack.c.b16 %v1197, %v1193
    %v1202 = vpack.c.b16 %v1198, %v1194
    %v1203 = vpack.c.b16 %v1199, %v1195
    %v1204 = vpack.c.b16 %v1200, %v1196
    %v1337 = vunpack.c.l.b16 %v1039
    %v1338 = vunpack.c.h.b16 %v1039
    %v1339 = vunpack.c.l.b16 %v1040
    %v1340 = vunpack.c.h.b16 %v1040
    %v1341 = vunpack.c.l.b16 %v1041
    %v1342 = vunpack.c.h.b16 %v1041
    %v1343 = vunpack.c.l.b16 %v1042
    %v1344 = vunpack.c.h.b16 %v1042
    %v1345 = vunpack.c.l.b16 %v1043
    %v1346 = vunpack.c.h.b16 %v1043
    %v1347 = vunpack.c.l.b16 %v1044
    %v1348 = vunpack.c.h.b16 %v1044
    %v1349 = vunpack.c.l.b16 %v1045
    %v1350 = vunpack.c.h.b16 %v1045
    %v1351 = vunpack.c.l.b16 %v1046
    %v1352 = vunpack.c.h.b16 %v1046
    %v1353 = vunpack.c.l.b16 %v1047
    %v1354 = vunpack.c.h.b16 %v1047
    %v1355 = vunpack.c.l.b16 %v1048
    %v1356 = vunpack.c.h.b16 %v1048
    %v1357 = vunpack.c.l.b16 %v1049
    %v1358 = vunpack.c.h.b16 %v1049
    %v1359 = vunpack.c.l.b16 %v1050
    %v1360 = vunpack.c.h.b16 %v1050
    %v1361 = vunpack.c.l.b16 %v1051
    %v1362 = vunpack.c.h.b16 %v1051
    %v1363 = vunpack.c.l.b16 %v1052
    %v1364 = vunpack.c.h.b16 %v1052
    %v1365 = vunpack.c.l.b16 %v1053
    %v1366 = vunpack.c.h.b16 %v1053
    %v1367 = vunpack.c.l.b16 %v1054
    %v1368 = vunpack.c.h.b16 %v1054
    %v1369 = vunpack.c.l.b16 %v1055
    %v1370 = vunpack.c.h.b16 %v1055
    %v1371 = vunpack.c.l.b16 %v1056
    %v1372 = vunpack.c.h.b16 %v1056
    %v1373 = vunpack.c.l.b16 %v1057
    %v1374 = vunpack.c.h.b16 %v1057
    %v1375 = vunpack.c.l.b16 %v1058
    %v1376 = vunpack.c.h.b16 %v1058
    %v1377 = vunpack.c.l.b16 %v1059
    %v1378 = vunpack.c.h.b16 %v1059
    %v1379 = vunpack.c.l.b16 %v1060
    %v1380 = vunpack.c.h.b16 %v1060
    %v1381 = vunpack.c.l.b16 %v1061
    %v1382 = vunpack.c.h.b16 %v1061
    %v1383 = vunpack.c.l.b16 %v1062
    %v1384 = vunpack.c.h.b16 %v1062
    %v1385 = vunpack.c.l.b16 %v1063
    %v1386 = vunpack.c.h.b16 %v1063
    %v1387 = vunpack.c.l.b16 %v1064
    %v1388 = vunpack.c.h.b16 %v1064
    %v1389 = vunpack.c.l.b16 %v1065
    %v1390 = vunpack.c.h.b16 %v1065
    %v1391 = vunpack.c.l.b16 %v1066
    %v1392 = vunpack.c.h.b16 %v1066
    %v1393 = vunpack.c.l.b16 %v1067
    %v1394 = vunpack.c.h.b16 %v1067
    %v1395 = vunpack.c.l.b16 %v1068
    %v1396 = vunpack.c.h.b16 %v1068
    %v1397 = vunpack.c.l.b16 %v1069
    %v1398 = vunpack.c.h.b16 %v1069
    %v1399 = vunpack.c.l.b16 %v1070
    %v1400 = vunpack.c.h.b16 %v1070
    %v1401 = vunpack.c.l.b16 %v1071
    %v1402 = vunpack.c.h.b16 %v1071
    %v1403 = vunpack.c.l.b16 %v1072
    %v1404 = vunpack.c.h.b16 %v1072
    %v1405 = vunpack.c.l.b16 %v1073
    %v1406 = vunpack.c.h.b16 %v1073
    %v1407 = vunpack.c.l.b16 %v1074
    %v1408 = vunpack.c.h.b16 %v1074
    %v1409 = vunpack.c.l.b16 %v1075
    %v1410 = vunpack.c.h.b16 %v1075
    %v1411 = vunpack.c.l.b16 %v1076
    %v1412 = vunpack.c.h.b16 %v1076
    %v1413 = vunpack.c.l.b16 %v1077
    %v1414 = vunpack.c.h.b16 %v1077
    %v1415 = vunpack.c.l.b16 %v1078
    %v1416 = vunpack.c.h.b16 %v1078
    %v1417 = vunpack.c.l.b16 %v1079
    %v1418 = vunpack.c.h.b16 %v1079
    %v1419 = vunpack.c.l.b16 %v1080
    %v1420 = vunpack.c.h.b16 %v1080
    %v1421 = vunpack.c.l.b16 %v1081
    %v1422 = vunpack.c.h.b16 %v1081
    %v1423 = vunpack.c.l.b16 %v1082
    %v1424 = vunpack.c.h.b16 %v1082
    %v1425 = vunpack.c.l.b16 %v1083
    %v1426 = vunpack.c.h.b16 %v1083
    %v1427 = vunpack.c.l.b16 %v1084
    %v1428 = vunpack.c.h.b16 %v1084
    %v1429 = vunpack.c.l.b16 %v1085
    %v1430 = vunpack.c.h.b16 %v1085
    %v1431 = vunpack.c.l.b16 %v1086
    %v1432 = vunpack.c.h.b16 %v1086
    %v1433 = vunpack.c.l.b16 %v1087
    %v1434 = vunpack.c.h.b16 %v1087
    %v1435 = vunpack.c.l.b16 %v1088
    %v1436 = vunpack.c.h.b16 %v1088
    %v1437 = vunpack.c.l.b16 %v1089
    %v1438 = vunpack.c.h.b16 %v1089
    %v1439 = vunpack.c.l.b16 %v1090
    %v1440 = vunpack.c.h.b16 %v1090
    %v1441 = vunpack.c.l.b16 %v1091
    %v1442 = vunpack.c.h.b16 %v1091
    %v1443 = vunpack.c.l.b16 %v1092
    %v1444 = vunpack.c.h.b16 %v1092
    %v1445 = vunpack.c.l.b16 %v1093
    %v1446 = vunpack.c.h.b16 %v1093
    %v1447 = vunpack.c.l.b16 %v1094
    %v1448 = vunpack.c.h.b16 %v1094
    %v1449 = vunpack.c.l.b16 %v1095
    %v1450 = vunpack.c.h.b16 %v1095
    %v1451 = vunpack.c.l.b16 %v1096
    %v1452 = vunpack.c.h.b16 %v1096
    %v1453 = vunpack.c.l.b16 %v1097
    %v1454 = vunpack.c.h.b16 %v1097
    %v1455 = vunpack.c.l.b16 %v1098
    %v1456 = vunpack.c.h.b16 %v1098
    %v1457 = vunpack.c.l.b16 %v1099
    %v1458 = vunpack.c.h.b16 %v1099
    %v1459 = vunpack.c.l.b16 %v1100
    %v1460 = vunpack.c.h.b16 %v1100
    %v1461 = vunpack.c.l.b16 %v1101
    %v1462 = vunpack.c.h.b16 %v1101
    %v1463 = vunpack.c.l.b16 %v1102
    %v1464 = vunpack.c.h.b16 %v1102
    %v1465 = vunpack.c.l.b16 %v1103
    %v1466 = vunpack.c.h.b16 %v1103
    %v1467 = vunpack.c.l.b16 %v1104
    %v1468 = vunpack.c.h.b16 %v1104
    %v1469 = vunpack.c.l.b16 %v1105
    %v1470 = vunpack.c.h.b16 %v1105
    %v1471 = vunpack.c.l.b16 %v1106
    %v1472 = vunpack.c.h.b16 %v1106
    %v1473 = vunpack.c.l.b16 %v1107
    %v1474 = vunpack.c.h.b16 %v1107
    %v1475 = vunpack.c.l.b16 %v1108
    %v1476 = vunpack.c.h.b16 %v1108
    %v1477 = vunpack.c.l.b16 %v1109
    %v1478 = vunpack.c.h.b16 %v1109
    %v1479 = vunpack.c.l.b16 %v1110
    %v1480 = vunpack.c.h.b16 %v1110
    %v1481 = vunpack.c.l.b16 %v1111
    %v1482 = vunpack.c.h.b16 %v1111
    %v1483 = vunpack.c.l.b16 %v1112
    %v1484 = vunpack.c.h.b16 %v1112
    %v1485 = vunpack.c.l.b16 %v1113
    %v1486 = vunpack.c.h.b16 %v1113
    %v1487 = vunpack.c.l.b16 %v1114
    %v1488 = vunpack.c.h.b16 %v1114
    %v1489 = vunpack.c.l.b16 %v1115
    %v1490 = vunpack.c.h.b16 %v1115
    %v1491 = vunpack.c.l.b16 %v1116
    %v1492 = vunpack.c.h.b16 %v1116
    %v1493 = vunpack.c.l.b16 %v1117
    %v1494 = vunpack.c.h.b16 %v1117
    %v1495 = vunpack.c.l.b16 %v1118
    %v1496 = vunpack.c.h.b16 %v1118
    %v1497 = vunpack.c.l.b16 %v1119
    %v1498 = vunpack.c.h.b16 %v1119
    %v1499 = vunpack.c.l.b16 %v1120
    %v1500 = vunpack.c.h.b16 %v1120
    %v1501 = vunpack.c.l.b16 %v1121
    %v1502 = vunpack.c.h.b16 %v1121
    %v1503 = vunpack.c.l.b16 %v1122
    %v1504 = vunpack.c.h.b16 %v1122
    %v1505 = vunpack.c.l.b16 %v1123
    %v1506 = vunpack.c.h.b16 %v1123
    %v1507 = vunpack.c.l.b16 %v1124
    %v1508 = vunpack.c.h.b16 %v1124
    %v1509 = vunpack.c.l.b16 %v1125
    %v1510 = vunpack.c.h.b16 %v1125
    %v1511 = vunpack.c.l.b16 %v1126
    %v1512 = vunpack.c.h.b16 %v1126
    %v1513 = vunpack.c.l.b16 %v1127
    %v1514 = vunpack.c.h.b16 %v1127
    %v1515 = vunpack.c.l.b16 %v1128
    %v1516 = vunpack.c.h.b16 %v1128
    %v1517 = vunpack.c.l.b16 %v1129
    %v1518 = vunpack.c.h.b16 %v1129
    %v1519 = vunpack.c.l.b16 %v1130
    %v1520 = vunpack.c.h.b16 %v1130
    %v1521 = vunpack.c.l.b16 %v1131
    %v1522 = vunpack.c.h.b16 %v1131
    %v1523 = vunpack.c.l.b16 %v1132
    %v1524 = vunpack.c.h.b16 %v1132
    %v1525 = vunpack.c.l.b16 %v1133
    %v1526 = vunpack.c.h.b16 %v1133
    %v1527 = vunpack.c.l.b16 %v1134
    %v1528 = vunpack.c.h.b16 %v1134
    %v1529 = vunpack.c.l.b16 %v1135
    %v1530 = vunpack.c.h.b16 %v1135
    %v1531 = vunpack.c.l.b16 %v1136
    %v1532 = vunpack.c.h.b16 %v1136
    %v1533 = vunpack.c.l.b16 %v1137
    %v1534 = vunpack.c.h.b16 %v1137
    %v1535 = vunpack.c.l.b16 %v1138
    %v1536 = vunpack.c.h.b16 %v1138
    %v1537 = vunpack.c.l.b16 %v1139
    %v1538 = vunpack.c.h.b16 %v1139
    %v1539 = vunpack.c.l.b16 %v1140
    %v1540 = vunpack.c.h.b16 %v1140
    %v1541 = vunpack.c.l.b16 %v1141
    %v1542 = vunpack.c.h.b16 %v1141
    %v1543 = vunpack.c.l.b16 %v1142
    %v1544 = vunpack.c.h.b16 %v1142
    %v1545 = vunpack.c.l.b16 %v1143
    %v1546 = vunpack.c.h.b16 %v1143
    %v1547 = vunpack.c.l.b16 %v1144
    %v1548 = vunpack.c.h.b16 %v1144
    %v1549 = vunpack.c.l.b16 %v1145
    %v1550 = vunpack.c.h.b16 %v1145
    %v1551 = vunpack.c.l.b16 %v1146
    %v1552 = vunpack.c.h.b16 %v1146
    %v1553 = vunpack.c.l.b16 %v1147
    %v1554 = vunpack.c.h.b16 %v1147
    %v1555 = vunpack.c.l.b16 %v1148
    %v1556 = vunpack.c.h.b16 %v1148
    %v1557 = vunpack.c.l.b16 %v1149
    %v1558 = vunpack.c.h.b16 %v1149
    %v1559 = vunpack.c.l.b16 %v1150
    %v1560 = vunpack.c.h.b16 %v1150
    %v1561 = vunpack.c.l.b16 %v1151
    %v1562 = vunpack.c.h.b16 %v1151
    %v1563 = vunpack.c.l.b16 %v1152
    %v1564 = vunpack.c.h.b16 %v1152
    %v1565 = vunpack.c.l.b16 %v1153
    %v1566 = vunpack.c.h.b16 %v1153
    %v1567 = vunpack.c.l.b16 %v1154
    %v1568 = vunpack.c.h.b16 %v1154
    %v1569 = vunpack.c.l.b16 %v1155
    %v1570 = vunpack.c.h.b16 %v1155
    %v1571 = vunpack.c.l.b16 %v1156
    %v1572 = vunpack.c.h.b16 %v1156
    %v1573 = vunpack.c.l.b16 %v1157
    %v1574 = vunpack.c.h.b16 %v1157
    %v1575 = vunpack.c.l.b16 %v1158
    %v1576 = vunpack.c.h.b16 %v1158
    %v1577 = vunpack.c.l.b16 %v1159
    %v1578 = vunpack.c.h.b16 %v1159
    %v1579 = vunpack.c.l.b16 %v1160
    %v1580 = vunpack.c.h.b16 %v1160
    %v1581 = vunpack.c.l.b16 %v1161
    %v1582 = vunpack.c.h.b16 %v1161
    %v1583 = vunpack.c.l.b16 %v1162
    %v1584 = vunpack.c.h.b16 %v1162
    %v1585 = vunpack.c.l.b16 %v1163
    %v1586 = vunpack.c.h.b16 %v1163
    %v1587 = vunpack.c.l.b16 %v1164
    %v1588 = vunpack.c.h.b16 %v1164
    %v1589 = vunpack.c.l.b16 %v1165
    %v1590 = vunpack.c.h.b16 %v1165
    %v1591 = vunpack.c.l.b16 %v1166
    %v1592 = vunpack.c.h.b16 %v1166
    %v1593 = vpack.c.b16 %v1341, %v1337
    %v1594 = vpack.c.b16 %v1342, %v1338
    %v1595 = vpack.c.b16 %v1343, %v1339
    %v1596 = vpack.c.b16 %v1344, %v1340
    %v1597 = vpack.c.b16 %v1349, %v1345
    %v1598 = vpack.c.b16 %v1350, %v1346
    %v1599 = vpack.c.b16 %v1351, %v1347
    %v1600 = vpack.c.b16 %v1352, %v1348
    %v1601 = vpack.c.b16 %v1357, %v1353
    %v1602 = vpack.c.b16 %v1358, %v1354
    %v1603 = vpack.c.b16 %v1359, %v1355
    %v1604 = vpack.c.b16 %v1360, %v1356
    %v1605 = vpack.c.b16 %v1365, %v1361
    %v1606 = vpack.c.b16 %v1366, %v1362
    %v1607 = vpack.c.b16 %v1367, %v1363
    %v1608 = vpack.c.b16 %v1368, %v1364
    %v1609 = vpack.c.b16 %v1373, %v1369
    %v1610 = vpack.c.b16 %v1374, %v1370
    %v1611 = vpack.c.b16 %v1375, %v1371
    %v1612 = vpack.c.b16 %v1376, %v1372
    %v1613 = vpack.c.b16 %v1381, %v1377
    %v1614 = vpack.c.b16 %v1382, %v1378
    %v1615 = vpack.c.b16 %v1383, %v1379
    %v1616 = vpack.c.b16 %v1384, %v1380
    %v1617 = vpack.c.b16 %v1389, %v1385
    %v1618 = vpack.c.b16 %v1390, %v1386
    %v1619 = vpack.c.b16 %v1391, %v1387
    %v1620 = vpack.c.b16 %v1392, %v1388
    %v1621 = vpack.c.b16 %v1397, %v1393
    %v1622 = vpack.c.b16 %v1398, %v1394
    %v1623 = vpack.c.b16 %v1399, %v1395
    %v1624 = vpack.c.b16 %v1400, %v1396
    %v1625 = vpack.c.b16 %v1405, %v1401
    %v1626 = vpack.c.b16 %v1406, %v1402
    %v1627 = vpack.c.b16 %v1407, %v1403
    %v1628 = vpack.c.b16 %v1408, %v1404
    %v1629 = vpack.c.b16 %v1413, %v1409
    %v1630 = vpack.c.b16 %v1414, %v1410
    %v1631 = vpack.c.b16 %v1415, %v1411
    %v1632 = vpack.c.b16 %v1416, %v1412
    %v1633 = vpack.c.b16 %v1421, %v1417
    %v1634 = vpack.c.b16 %v1422, %v1418
    %v1635 = vpack.c.b16 %v1423, %v1419
    %v1636 = vpack.c.b16 %v1424, %v1420
    %v1637 = vpack.c.b16 %v1429, %v1425
    %v1638 = vpack.c.b16 %v1430, %v1426
    %v1639 = vpack.c.b16 %v1431, %v1427
    %v1640 = vpack.c.b16 %v1432, %v1428
    %v1641 = vpack.c.b16 %v1437, %v1433
    %v1642 = vpack.c.b16 %v1438, %v1434
    %v1643 = vpack.c.b16 %v1439, %v1435
    %v1644 = vpack.c.b16 %v1440, %v1436
    %v1645 = vpack.c.b16 %v1445, %v1441
    %v1646 = vpack.c.b16 %v1446, %v1442
    %v1647 = vpack.c.b16 %v1447, %v1443
    %v1648 = vpack.c.b16 %v1448, %v1444
    %v1649 = vpack.c.b16 %v1453, %v1449
    %v1650 = vpack.c.b16 %v1454, %v1450
    %v1651 = vpack.c.b16 %v1455, %v1451
    %v1652 = vpack.c.b16 %v1456, %v1452
    %v1653 = vpack.c.b16 %v1461, %v1457
    %v1654 = vpack.c.b16 %v1462, %v1458
    %v1655 = vpack.c.b16 %v1463, %v1459
    %v1656 = vpack.c.b16 %v1464, %v1460
    %v1657 = vpack.c.b16 %v1469, %v1465
    %v1658 = vpack.c.b16 %v1470, %v1466
    %v1659 = vpack.c.b16 %v1471, %v1467
    %v1660 = vpack.c.b16 %v1472, %v1468
    %v1661 = vpack.c.b16 %v1477, %v1473
    %v1662 = vpack.c.b16 %v1478, %v1474
    %v1663 = vpack.c.b16 %v1479, %v1475
    %v1664 = vpack.c.b16 %v1480, %v1476
    %v1665 = vpack.c.b16 %v1485, %v1481
    %v1666 = vpack.c.b16 %v1486, %v1482
    %v1667 = vpack.c.b16 %v1487, %v1483
    %v1668 = vpack.c.b16 %v1488, %v1484
    %v1669 = vpack.c.b16 %v1493, %v1489
    %v1670 = vpack.c.b16 %v1494, %v1490
    %v1671 = vpack.c.b16 %v1495, %v1491
    %v1672 = vpack.c.b16 %v1496, %v1492
    %v1673 = vpack.c.b16 %v1501, %v1497
    %v1674 = vpack.c.b16 %v1502, %v1498
    %v1675 = vpack.c.b16 %v1503, %v1499
    %v1676 = vpack.c.b16 %v1504, %v1500
    %v1677 = vpack.c.b16 %v1509, %v1505
    %v1678 = vpack.c.b16 %v1510, %v1506
    %v1679 = vpack.c.b16 %v1511, %v1507
    %v1680 = vpack.c.b16 %v1512, %v1508
    %v1681 = vpack.c.b16 %v1517, %v1513
    %v1682 = vpack.c.b16 %v1518, %v1514
    %v1683 = vpack.c.b16 %v1519, %v1515
    %v1684 = vpack.c.b16 %v1520, %v1516
    %v1685 = vpack.c.b16 %v1525, %v1521
    %v1686 = vpack.c.b16 %v1526, %v1522
    %v1687 = vpack.c.b16 %v1527, %v1523
    %v1688 = vpack.c.b16 %v1528, %v1524
    %v1689 = vpack.c.b16 %v1533, %v1529
    %v1690 = vpack.c.b16 %v1534, %v1530
    %v1691 = vpack.c.b16 %v1535, %v1531
    %v1692 = vpack.c.b16 %v1536, %v1532
    %v1693 = vpack.c.b16 %v1541, %v1537
    %v1694 = vpack.c.b16 %v1542, %v1538
    %v1695 = vpack.c.b16 %v1543, %v1539
    %v1696 = vpack.c.b16 %v1544, %v1540
    %v1697 = vpack.c.b16 %v1549, %v1545
    %v1698 = vpack.c.b16 %v1550, %v1546
    %v1699 = vpack.c.b16 %v1551, %v1547
    %v1700 = vpack.c.b16 %v1552, %v1548
    %v1701 = vpack.c.b16 %v1557, %v1553
    %v1702 = vpack.c.b16 %v1558, %v1554
    %v1703 = vpack.c.b16 %v1559, %v1555
    %v1704 = vpack.c.b16 %v1560, %v1556
    %v1705 = vpack.c.b16 %v1565, %v1561
    %v1706 = vpack.c.b16 %v1566, %v1562
    %v1707 = vpack.c.b16 %v1567, %v1563
    %v1708 = vpack.c.b16 %v1568, %v1564
    %v1709 = vpack.c.b16 %v1573, %v1569
    %v1710 = vpack.c.b16 %v1574, %v1570
    %v1711 = vpack.c.b16 %v1575, %v1571
    %v1712 = vpack.c.b16 %v1576, %v1572
    %v1713 = vpack.c.b16 %v1581, %v1577
    %v1714 = vpack.c.b16 %v1582, %v1578
    %v1715 = vpack.c.b16 %v1583, %v1579
    %v1716 = vpack.c.b16 %v1584, %v1580
    %v1717 = vpack.c.b16 %v1589, %v1585
    %v1718 = vpack.c.b16 %v1590, %v1586
    %v1719 = vpack.c.b16 %v1591, %v1587
    %v1720 = vpack.c.b16 %v1592, %v1588
    %1849 = vmatprep.subr.bf16.mxu0 %v1622
    %1850 = vmatpush1.bf16.msra.mxu0 %v1621
    %1851 = vmatprep.subr.bf16.mxu0 %v1618
    %1852 = vmatpush1.bf16.msra.mxu0 %v1617
    %1853 = vmatprep.subr.bf16.mxu0 %v1614
    %1854 = vmatpush1.bf16.msra.mxu0 %v1613
    %1855 = vmatprep.subr.bf16.mxu0 %v1610
    %1856 = vmatpush1.bf16.msra.mxu0 %v1609
    %1857 = vmatprep.subr.bf16.mxu0 %v1606
    %1858 = vmatpush1.bf16.msra.mxu0 %v1605
    %1859 = vmatprep.subr.bf16.mxu0 %v1602
    %1860 = vmatpush1.bf16.msra.mxu0 %v1601
    %1861 = vmatprep.subr.bf16.mxu0 %v1598
    %1862 = vmatpush1.bf16.msra.mxu0 %v1597
    %1863 = vmatprep.subr.bf16.mxu0 %v1594
    %1864 = vmatpush1.bf16.msra.mxu0 %v1593
    %1865 = vmatprep.subr.bf16.mxu0 %v1654
    %1866 = vmatpush2.bf16.msra.mxu0 %v1653
    %1867 = vmatprep.subr.bf16.mxu0 %v1650
    %1868 = vmatpush2.bf16.msra.mxu0 %v1649
    %1869 = vmatprep.subr.bf16.mxu0 %v1646
    %1870 = vmatpush2.bf16.msra.mxu0 %v1645
    %1871 = vmatprep.subr.bf16.mxu0 %v1642
    %1872 = vmatpush2.bf16.msra.mxu0 %v1641
    %1873 = vmatprep.subr.bf16.mxu0 %v1638
    %1874 = vmatpush2.bf16.msra.mxu0 %v1637
    %1875 = vmatprep.subr.bf16.mxu0 %v1634
    %1876 = vmatpush2.bf16.msra.mxu0 %v1633
    %1877 = vmatprep.subr.bf16.mxu0 %v1630
    %1878 = vmatpush2.bf16.msra.mxu0 %v1629
    %1879 = vmatprep.subr.bf16.mxu0 %v1626
    %1880 = vmatpush2.bf16.msra.mxu0 %v1625
    %1881 = vmatprep.mubr.bf16.mxu0 %v1202
    %1882 = vmatmul.mubr.bf16.gmra.mxu0 %v1201
    %v1883 = vpop.f32.mrf.mxu0
    %v1884 = vadd.f32 %v1172, %v1883
    %v1885 = vpop.f32.mrf.mxu0
    %v1886 = vadd.f32 %v1176, %v1885
    %v1887 = vpop.f32.mrf.mxu0
    %v1888 = vadd.f32 %v1172, %v1887
    %v1889 = vpop.f32.mrf.mxu0
    %v1890 = vadd.f32 %v1176, %v1889
    %1891 = vdwg.mxu0
    %1892 = vmatprep.subr.bf16.mxu0 %v1686
    %1893 = vmatpush1.bf16.msra.mxu0 %v1685
    %1894 = vmatprep.subr.bf16.mxu0 %v1682
    %1895 = vmatpush1.bf16.msra.mxu0 %v1681
    %1896 = vmatprep.subr.bf16.mxu0 %v1678
    %1897 = vmatpush1.bf16.msra.mxu0 %v1677
    %1898 = vmatprep.subr.bf16.mxu0 %v1674
    %1899 = vmatpush1.bf16.msra.mxu0 %v1673
    %1900 = vmatprep.subr.bf16.mxu0 %v1670
    %1901 = vmatpush1.bf16.msra.mxu0 %v1669
    %1902 = vmatprep.subr.bf16.mxu0 %v1666
    %1903 = vmatpush1.bf16.msra.mxu0 %v1665
    %1904 = vmatprep.subr.bf16.mxu0 %v1662
    %1905 = vmatpush1.bf16.msra.mxu0 %v1661
    %1906 = vmatprep.subr.bf16.mxu0 %v1658
    %1907 = vmatpush1.bf16.msra.mxu0 %v1657
    %1908 = vmatprep.subr.bf16.mxu0 %v1718
    %1909 = vmatpush2.bf16.msra.mxu0 %v1717
    %1910 = vmatprep.subr.bf16.mxu0 %v1714
    %1911 = vmatpush2.bf16.msra.mxu0 %v1713
    %1912 = vmatprep.subr.bf16.mxu0 %v1710
    %1913 = vmatpush2.bf16.msra.mxu0 %v1709
    %1914 = vmatprep.subr.bf16.mxu0 %v1706
    %1915 = vmatpush2.bf16.msra.mxu0 %v1705
    %1916 = vmatprep.subr.bf16.mxu0 %v1702
    %1917 = vmatpush2.bf16.msra.mxu0 %v1701
    %1918 = vmatprep.subr.bf16.mxu0 %v1698
    %1919 = vmatpush2.bf16.msra.mxu0 %v1697
    %1920 = vmatprep.subr.bf16.mxu0 %v1694
    %1921 = vmatpush2.bf16.msra.mxu0 %v1693
    %1922 = vmatprep.subr.bf16.mxu0 %v1690
    %1923 = vmatpush2.bf16.msra.mxu0 %v1689
    %1924 = vmatprep.mubr.bf16.mxu0 %v1204
    %1925 = vmatmul.mubr.bf16.gmra.mxu0 %v1203
    %v1926 = vpop.f32.mrf.mxu0
    %v1927 = vadd.f32 %v1884, %v1926
    %v1928 = vpop.f32.mrf.mxu0
    %v1929 = vadd.f32 %v1886, %v1928
    %v1930 = vpop.f32.mrf.mxu0
    %v1931 = vadd.f32 %v1888, %v1930
    %v1932 = vpop.f32.mrf.mxu0
    %v1933 = vadd.f32 %v1890, %v1932
    %1934 = vdwg.mxu0
    %1935 = vmatprep.subr.bf16.mxu0 %v1624
    %1936 = vmatpush1.bf16.msra.mxu0 %v1623
    %1937 = vmatprep.subr.bf16.mxu0 %v1620
    %1938 = vmatpush1.bf16.msra.mxu0 %v1619
    %1939 = vmatprep.subr.bf16.mxu0 %v1616
    %1940 = vmatpush1.bf16.msra.mxu0 %v1615
    %1941 = vmatprep.subr.bf16.mxu0 %v1612
    %1942 = vmatpush1.bf16.msra.mxu0 %v1611
    %1943 = vmatprep.subr.bf16.mxu0 %v1608
    %1944 = vmatpush1.bf16.msra.mxu0 %v1607
    %1945 = vmatprep.subr.bf16.mxu0 %v1604
    %1946 = vmatpush1.bf16.msra.mxu0 %v1603
    %1947 = vmatprep.subr.bf16.mxu0 %v1600
    %1948 = vmatpush1.bf16.msra.mxu0 %v1599
    %1949 = vmatprep.subr.bf16.mxu0 %v1596
    %1950 = vmatpush1.bf16.msra.mxu0 %v1595
    %1951 = vmatprep.subr.bf16.mxu0 %v1656
    %1952 = vmatpush2.bf16.msra.mxu0 %v1655
    %1953 = vmatprep.subr.bf16.mxu0 %v1652
    %1954 = vmatpush2.bf16.msra.mxu0 %v1651
    %1955 = vmatprep.subr.bf16.mxu0 %v1648
    %1956 = vmatpush2.bf16.msra.mxu0 %v1647
    %1957 = vmatprep.subr.bf16.mxu0 %v1644
    %1958 = vmatpush2.bf16.msra.mxu0 %v1643
    %1959 = vmatprep.subr.bf16.mxu0 %v1640
    %1960 = vmatpush2.bf16.msra.mxu0 %v1639
    %1961 = vmatprep.subr.bf16.mxu0 %v1636
    %1962 = vmatpush2.bf16.msra.mxu0 %v1635
    %1963 = vmatprep.subr.bf16.mxu0 %v1632
    %1964 = vmatpush2.bf16.msra.mxu0 %v1631
    %1965 = vmatprep.subr.bf16.mxu0 %v1628
    %1966 = vmatpush2.bf16.msra.mxu0 %v1627
    %1967 = vmatprep.mubr.bf16.mxu0 %v1202
    %1968 = vmatmul.mubr.bf16.gmra.mxu0 %v1201
    %v1969 = vpop.f32.mrf.mxu0
    %v1970 = vadd.f32 %v1180, %v1969
    %v1971 = vpop.f32.mrf.mxu0
    %v1972 = vadd.f32 %v1184, %v1971
    %v1973 = vpop.f32.mrf.mxu0
    %v1974 = vadd.f32 %v1180, %v1973
    %v1975 = vpop.f32.mrf.mxu0
    %v1976 = vadd.f32 %v1184, %v1975
    %1977 = vdwg.mxu0
    %1978 = vmatprep.subr.bf16.mxu0 %v1688
    %1979 = vmatpush1.bf16.msra.mxu0 %v1687
    %1980 = vmatprep.subr.bf16.mxu0 %v1684
    %1981 = vmatpush1.bf16.msra.mxu0 %v1683
    %1982 = vmatprep.subr.bf16.mxu0 %v1680
    %1983 = vmatpush1.bf16.msra.mxu0 %v1679
    %1984 = vmatprep.subr.bf16.mxu0 %v1676
    %1985 = vmatpush1.bf16.msra.mxu0 %v1675
    %1986 = vmatprep.subr.bf16.mxu0 %v1672
    %1987 = vmatpush1.bf16.msra.mxu0 %v1671
    %1988 = vmatprep.subr.bf16.mxu0 %v1668
    %1989 = vmatpush1.bf16.msra.mxu0 %v1667
    %1990 = vmatprep.subr.bf16.mxu0 %v1664
    %1991 = vmatpush1.bf16.msra.mxu0 %v1663
    %1992 = vmatprep.subr.bf16.mxu0 %v1660
    %1993 = vmatpush1.bf16.msra.mxu0 %v1659
    %1994 = vmatprep.subr.bf16.mxu0 %v1720
    %1995 = vmatpush2.bf16.msra.mxu0 %v1719
    %1996 = vmatprep.subr.bf16.mxu0 %v1716
    %1997 = vmatpush2.bf16.msra.mxu0 %v1715
    %1998 = vmatprep.subr.bf16.mxu0 %v1712
    %1999 = vmatpush2.bf16.msra.mxu0 %v1711
    %2000 = vmatprep.subr.bf16.mxu0 %v1708
    %2001 = vmatpush2.bf16.msra.mxu0 %v1707
    %2002 = vmatprep.subr.bf16.mxu0 %v1704
    %2003 = vmatpush2.bf16.msra.mxu0 %v1703
    %2004 = vmatprep.subr.bf16.mxu0 %v1700
    %2005 = vmatpush2.bf16.msra.mxu0 %v1699
    %2006 = vmatprep.subr.bf16.mxu0 %v1696
    %2007 = vmatpush2.bf16.msra.mxu0 %v1695
    %2008 = vmatprep.subr.bf16.mxu0 %v1692
    %2009 = vmatpush2.bf16.msra.mxu0 %v1691
    %2010 = vmatprep.mubr.bf16.mxu0 %v1204
    %2011 = vmatmul.mubr.bf16.gmra.mxu0 %v1203
    %v2012 = vpop.f32.mrf.mxu0
    %v2013 = vadd.f32 %v1970, %v2012
    %v2014 = vpop.f32.mrf.mxu0
    %v2015 = vadd.f32 %v1972, %v2014
    %v2016 = vpop.f32.mrf.mxu0
    %v2017 = vadd.f32 %v1974, %v2016
    %v2018 = vpop.f32.mrf.mxu0
    %v2019 = vadd.f32 %v1976, %v2018
    %2020 = vdwg.mxu0
    %v2021 = vld [vmem:[%s2] sm:$0xff]
    %v2022 = vld [vmem:[%s2 + $0x8] sm:$0xff]
    %v2023 = vld [vmem:[%s2 + $0x10] sm:$0xff]
    %v2024 = vld [vmem:[%s2 + $0x18] sm:$0xff]
    %v2025 = vld [vmem:[%s8] sm:$0xff]
    %v2026 = vld [vmem:[%s8 + $0x8] sm:$0xff]
    %v2027 = vld [vmem:[%s8 + $0x10] sm:$0xff]
    %v2028 = vld [vmem:[%s8 + $0x18] sm:$0xff]
    %v2029 = vld [vmem:[%s8 + $0x20] sm:$0xff]
    %v2030 = vld [vmem:[%s8 + $0x28] sm:$0xff]
    %v2031 = vld [vmem:[%s8 + $0x30] sm:$0xff]
    %v2032 = vld [vmem:[%s8 + $0x38] sm:$0xff]
    %v2033 = vld [vmem:[%s8 + $0x40] sm:$0xff]
    %v2034 = vld [vmem:[%s8 + $0x48] sm:$0xff]
    %v2035 = vld [vmem:[%s8 + $0x50] sm:$0xff]
    %v2036 = vld [vmem:[%s8 + $0x58] sm:$0xff]
    %v2037 = vld [vmem:[%s8 + $0x60] sm:$0xff]
    %v2038 = vld [vmem:[%s8 + $0x68] sm:$0xff]
    %v2039 = vld [vmem:[%s8 + $0x70] sm:$0xff]
    %v2040 = vld [vmem:[%s8 + $0x78] sm:$0xff]
    %v2041 = vld [vmem:[%s8 + $0x80] sm:$0xff]
    %v2042 = vld [vmem:[%s8 + $0x88] sm:$0xff]
    %v2043 = vld [vmem:[%s8 + $0x90] sm:$0xff]
    %v2044 = vld [vmem:[%s8 + $0x98] sm:$0xff]
    %v2045 = vld [vmem:[%s8 + $0xa0] sm:$0xff]
    %v2046 = vld [vmem:[%s8 + $0xa8] sm:$0xff]
    %v2047 = vld [vmem:[%s8 + $0xb0] sm:$0xff]
    %v2048 = vld [vmem:[%s8 + $0xb8] sm:$0xff]
    %v2049 = vld [vmem:[%s8 + $0xc0] sm:$0xff]
    %v2050 = vld [vmem:[%s8 + $0xc8] sm:$0xff]
    %v2051 = vld [vmem:[%s8 + $0xd0] sm:$0xff]
    %v2052 = vld [vmem:[%s8 + $0xd8] sm:$0xff]
    %v2053 = vld [vmem:[%s8 + $0xe0] sm:$0xff]
    %v2054 = vld [vmem:[%s8 + $0xe8] sm:$0xff]
    %v2055 = vld [vmem:[%s8 + $0xf0] sm:$0xff]
    %v2056 = vld [vmem:[%s8 + $0xf8] sm:$0xff]
    %v2057 = vld [vmem:[%s8 + $0x100] sm:$0xff]
    %v2058 = vld [vmem:[%s8 + $0x108] sm:$0xff]
    %v2059 = vld [vmem:[%s8 + $0x110] sm:$0xff]
    %v2060 = vld [vmem:[%s8 + $0x118] sm:$0xff]
    %v2061 = vld [vmem:[%s8 + $0x120] sm:$0xff]
    %v2062 = vld [vmem:[%s8 + $0x128] sm:$0xff]
    %v2063 = vld [vmem:[%s8 + $0x130] sm:$0xff]
    %v2064 = vld [vmem:[%s8 + $0x138] sm:$0xff]
    %v2065 = vld [vmem:[%s8 + $0x140] sm:$0xff]
    %v2066 = vld [vmem:[%s8 + $0x148] sm:$0xff]
    %v2067 = vld [vmem:[%s8 + $0x150] sm:$0xff]
    %v2068 = vld [vmem:[%s8 + $0x158] sm:$0xff]
    %v2069 = vld [vmem:[%s8 + $0x160] sm:$0xff]
    %v2070 = vld [vmem:[%s8 + $0x168] sm:$0xff]
    %v2071 = vld [vmem:[%s8 + $0x170] sm:$0xff]
    %v2072 = vld [vmem:[%s8 + $0x178] sm:$0xff]
    %v2073 = vld [vmem:[%s8 + $0x180] sm:$0xff]
    %v2074 = vld [vmem:[%s8 + $0x188] sm:$0xff]
    %v2075 = vld [vmem:[%s8 + $0x190] sm:$0xff]
    %v2076 = vld [vmem:[%s8 + $0x198] sm:$0xff]
    %v2077 = vld [vmem:[%s8 + $0x1a0] sm:$0xff]
    %v2078 = vld [vmem:[%s8 + $0x1a8] sm:$0xff]
    %v2079 = vld [vmem:[%s8 + $0x1b0] sm:$0xff]
    %v2080 = vld [vmem:[%s8 + $0x1b8] sm:$0xff]
    %v2081 = vld [vmem:[%s8 + $0x1c0] sm:$0xff]
    %v2082 = vld [vmem:[%s8 + $0x1c8] sm:$0xff]
    %v2083 = vld [vmem:[%s8 + $0x1d0] sm:$0xff]
    %v2084 = vld [vmem:[%s8 + $0x1d8] sm:$0xff]
    %v2085 = vld [vmem:[%s8 + $0x1e0] sm:$0xff]
    %v2086 = vld [vmem:[%s8 + $0x1e8] sm:$0xff]
    %v2087 = vld [vmem:[%s8 + $0x1f0] sm:$0xff]
    %v2088 = vld [vmem:[%s8 + $0x1f8] sm:$0xff]
    %v2089 = vld [vmem:[%s8 + $0x200] sm:$0xff]
    %v2090 = vld [vmem:[%s8 + $0x208] sm:$0xff]
    %v2091 = vld [vmem:[%s8 + $0x210] sm:$0xff]
    %v2092 = vld [vmem:[%s8 + $0x218] sm:$0xff]
    %v2093 = vld [vmem:[%s8 + $0x220] sm:$0xff]
    %v2094 = vld [vmem:[%s8 + $0x228] sm:$0xff]
    %v2095 = vld [vmem:[%s8 + $0x230] sm:$0xff]
    %v2096 = vld [vmem:[%s8 + $0x238] sm:$0xff]
    %v2097 = vld [vmem:[%s8 + $0x240] sm:$0xff]
    %v2098 = vld [vmem:[%s8 + $0x248] sm:$0xff]
    %v2099 = vld [vmem:[%s8 + $0x250] sm:$0xff]
    %v2100 = vld [vmem:[%s8 + $0x258] sm:$0xff]
    %v2101 = vld [vmem:[%s8 + $0x260] sm:$0xff]
    %v2102 = vld [vmem:[%s8 + $0x268] sm:$0xff]
    %v2103 = vld [vmem:[%s8 + $0x270] sm:$0xff]
    %v2104 = vld [vmem:[%s8 + $0x278] sm:$0xff]
    %v2105 = vld [vmem:[%s8 + $0x280] sm:$0xff]
    %v2106 = vld [vmem:[%s8 + $0x288] sm:$0xff]
    %v2107 = vld [vmem:[%s8 + $0x290] sm:$0xff]
    %v2108 = vld [vmem:[%s8 + $0x298] sm:$0xff]
    %v2109 = vld [vmem:[%s8 + $0x2a0] sm:$0xff]
    %v2110 = vld [vmem:[%s8 + $0x2a8] sm:$0xff]
    %v2111 = vld [vmem:[%s8 + $0x2b0] sm:$0xff]
    %v2112 = vld [vmem:[%s8 + $0x2b8] sm:$0xff]
    %v2113 = vld [vmem:[%s8 + $0x2c0] sm:$0xff]
    %v2114 = vld [vmem:[%s8 + $0x2c8] sm:$0xff]
    %v2115 = vld [vmem:[%s8 + $0x2d0] sm:$0xff]
    %v2116 = vld [vmem:[%s8 + $0x2d8] sm:$0xff]
    %v2117 = vld [vmem:[%s8 + $0x2e0] sm:$0xff]
    %v2118 = vld [vmem:[%s8 + $0x2e8] sm:$0xff]
    %v2119 = vld [vmem:[%s8 + $0x2f0] sm:$0xff]
    %v2120 = vld [vmem:[%s8 + $0x2f8] sm:$0xff]
    %v2121 = vld [vmem:[%s8 + $0x300] sm:$0xff]
    %v2122 = vld [vmem:[%s8 + $0x308] sm:$0xff]
    %v2123 = vld [vmem:[%s8 + $0x310] sm:$0xff]
    %v2124 = vld [vmem:[%s8 + $0x318] sm:$0xff]
    %v2125 = vld [vmem:[%s8 + $0x320] sm:$0xff]
    %v2126 = vld [vmem:[%s8 + $0x328] sm:$0xff]
    %v2127 = vld [vmem:[%s8 + $0x330] sm:$0xff]
    %v2128 = vld [vmem:[%s8 + $0x338] sm:$0xff]
    %v2129 = vld [vmem:[%s8 + $0x340] sm:$0xff]
    %v2130 = vld [vmem:[%s8 + $0x348] sm:$0xff]
    %v2131 = vld [vmem:[%s8 + $0x350] sm:$0xff]
    %v2132 = vld [vmem:[%s8 + $0x358] sm:$0xff]
    %v2133 = vld [vmem:[%s8 + $0x360] sm:$0xff]
    %v2134 = vld [vmem:[%s8 + $0x368] sm:$0xff]
    %v2135 = vld [vmem:[%s8 + $0x370] sm:$0xff]
    %v2136 = vld [vmem:[%s8 + $0x378] sm:$0xff]
    %v2137 = vld [vmem:[%s8 + $0x380] sm:$0xff]
    %v2138 = vld [vmem:[%s8 + $0x388] sm:$0xff]
    %v2139 = vld [vmem:[%s8 + $0x390] sm:$0xff]
    %v2140 = vld [vmem:[%s8 + $0x398] sm:$0xff]
    %v2141 = vld [vmem:[%s8 + $0x3a0] sm:$0xff]
    %v2142 = vld [vmem:[%s8 + $0x3a8] sm:$0xff]
    %v2143 = vld [vmem:[%s8 + $0x3b0] sm:$0xff]
    %v2144 = vld [vmem:[%s8 + $0x3b8] sm:$0xff]
    %v2145 = vld [vmem:[%s8 + $0x3c0] sm:$0xff]
    %v2146 = vld [vmem:[%s8 + $0x3c8] sm:$0xff]
    %v2147 = vld [vmem:[%s8 + $0x3d0] sm:$0xff]
    %v2148 = vld [vmem:[%s8 + $0x3d8] sm:$0xff]
    %v2149 = vld [vmem:[%s8 + $0x3e0] sm:$0xff]
    %v2150 = vld [vmem:[%s8 + $0x3e8] sm:$0xff]
    %v2151 = vld [vmem:[%s8 + $0x3f0] sm:$0xff]
    %v2152 = vld [vmem:[%s8 + $0x3f8] sm:$0xff]
    %v2153 = vld [vmem:[%s9] sm:$0xf]
    %v2155 = vlaneseq
    %v2156 = vshrl.u32 %v2155, 7
    %v2157 = vsub.s32 0, %v2156
    %v2158 = vrot.slane %v2153, %v2157
    %v2159 = vlaneseq
    %v2160 = vshrl.u32 %v2159, 7
    %v2161 = vsub.s32 1, %v2160
    %v2162 = vrot.slane %v2153, %v2161
    %v2163 = vlaneseq
    %v2164 = vshrl.u32 %v2163, 7
    %v2165 = vsub.s32 2, %v2164
    %v2166 = vrot.slane %v2153, %v2165
    %v2167 = vlaneseq
    %v2168 = vshrl.u32 %v2167, 7
    %v2169 = vsub.s32 3, %v2168
    %v2170 = vrot.slane %v2153, %v2169
    %v2179 = vunpack.c.l.b16 %v2021
    %v2180 = vunpack.c.h.b16 %v2021
    %v2181 = vunpack.c.l.b16 %v2022
    %v2182 = vunpack.c.h.b16 %v2022
    %v2183 = vunpack.c.l.b16 %v2023
    %v2184 = vunpack.c.h.b16 %v2023
    %v2185 = vunpack.c.l.b16 %v2024
    %v2186 = vunpack.c.h.b16 %v2024
    %v2187 = vpack.c.b16 %v2183, %v2179
    %v2188 = vpack.c.b16 %v2184, %v2180
    %v2189 = vpack.c.b16 %v2185, %v2181
    %v2190 = vpack.c.b16 %v2186, %v2182
    %v2323 = vunpack.c.l.b16 %v2025
    %v2324 = vunpack.c.h.b16 %v2025
    %v2325 = vunpack.c.l.b16 %v2026
    %v2326 = vunpack.c.h.b16 %v2026
    %v2327 = vunpack.c.l.b16 %v2027
    %v2328 = vunpack.c.h.b16 %v2027
    %v2329 = vunpack.c.l.b16 %v2028
    %v2330 = vunpack.c.h.b16 %v2028
    %v2331 = vunpack.c.l.b16 %v2029
    %v2332 = vunpack.c.h.b16 %v2029
    %v2333 = vunpack.c.l.b16 %v2030
    %v2334 = vunpack.c.h.b16 %v2030
    %v2335 = vunpack.c.l.b16 %v2031
    %v2336 = vunpack.c.h.b16 %v2031
    %v2337 = vunpack.c.l.b16 %v2032
    %v2338 = vunpack.c.h.b16 %v2032
    %v2339 = vunpack.c.l.b16 %v2033
    %v2340 = vunpack.c.h.b16 %v2033
    %v2341 = vunpack.c.l.b16 %v2034
    %v2342 = vunpack.c.h.b16 %v2034
    %v2343 = vunpack.c.l.b16 %v2035
    %v2344 = vunpack.c.h.b16 %v2035
    %v2345 = vunpack.c.l.b16 %v2036
    %v2346 = vunpack.c.h.b16 %v2036
    %v2347 = vunpack.c.l.b16 %v2037
    %v2348 = vunpack.c.h.b16 %v2037
    %v2349 = vunpack.c.l.b16 %v2038
    %v2350 = vunpack.c.h.b16 %v2038
    %v2351 = vunpack.c.l.b16 %v2039
    %v2352 = vunpack.c.h.b16 %v2039
    %v2353 = vunpack.c.l.b16 %v2040
    %v2354 = vunpack.c.h.b16 %v2040
    %v2355 = vunpack.c.l.b16 %v2041
    %v2356 = vunpack.c.h.b16 %v2041
    %v2357 = vunpack.c.l.b16 %v2042
    %v2358 = vunpack.c.h.b16 %v2042
    %v2359 = vunpack.c.l.b16 %v2043
    %v2360 = vunpack.c.h.b16 %v2043
    %v2361 = vunpack.c.l.b16 %v2044
    %v2362 = vunpack.c.h.b16 %v2044
    %v2363 = vunpack.c.l.b16 %v2045
    %v2364 = vunpack.c.h.b16 %v2045
    %v2365 = vunpack.c.l.b16 %v2046
    %v2366 = vunpack.c.h.b16 %v2046
    %v2367 = vunpack.c.l.b16 %v2047
    %v2368 = vunpack.c.h.b16 %v2047
    %v2369 = vunpack.c.l.b16 %v2048
    %v2370 = vunpack.c.h.b16 %v2048
    %v2371 = vunpack.c.l.b16 %v2049
    %v2372 = vunpack.c.h.b16 %v2049
    %v2373 = vunpack.c.l.b16 %v2050
    %v2374 = vunpack.c.h.b16 %v2050
    %v2375 = vunpack.c.l.b16 %v2051
    %v2376 = vunpack.c.h.b16 %v2051
    %v2377 = vunpack.c.l.b16 %v2052
    %v2378 = vunpack.c.h.b16 %v2052
    %v2379 = vunpack.c.l.b16 %v2053
    %v2380 = vunpack.c.h.b16 %v2053
    %v2381 = vunpack.c.l.b16 %v2054
    %v2382 = vunpack.c.h.b16 %v2054
    %v2383 = vunpack.c.l.b16 %v2055
    %v2384 = vunpack.c.h.b16 %v2055
    %v2385 = vunpack.c.l.b16 %v2056
    %v2386 = vunpack.c.h.b16 %v2056
    %v2387 = vunpack.c.l.b16 %v2057
    %v2388 = vunpack.c.h.b16 %v2057
    %v2389 = vunpack.c.l.b16 %v2058
    %v2390 = vunpack.c.h.b16 %v2058
    %v2391 = vunpack.c.l.b16 %v2059
    %v2392 = vunpack.c.h.b16 %v2059
    %v2393 = vunpack.c.l.b16 %v2060
    %v2394 = vunpack.c.h.b16 %v2060
    %v2395 = vunpack.c.l.b16 %v2061
    %v2396 = vunpack.c.h.b16 %v2061
    %v2397 = vunpack.c.l.b16 %v2062
    %v2398 = vunpack.c.h.b16 %v2062
    %v2399 = vunpack.c.l.b16 %v2063
    %v2400 = vunpack.c.h.b16 %v2063
    %v2401 = vunpack.c.l.b16 %v2064
    %v2402 = vunpack.c.h.b16 %v2064
    %v2403 = vunpack.c.l.b16 %v2065
    %v2404 = vunpack.c.h.b16 %v2065
    %v2405 = vunpack.c.l.b16 %v2066
    %v2406 = vunpack.c.h.b16 %v2066
    %v2407 = vunpack.c.l.b16 %v2067
    %v2408 = vunpack.c.h.b16 %v2067
    %v2409 = vunpack.c.l.b16 %v2068
    %v2410 = vunpack.c.h.b16 %v2068
    %v2411 = vunpack.c.l.b16 %v2069
    %v2412 = vunpack.c.h.b16 %v2069
    %v2413 = vunpack.c.l.b16 %v2070
    %v2414 = vunpack.c.h.b16 %v2070
    %v2415 = vunpack.c.l.b16 %v2071
    %v2416 = vunpack.c.h.b16 %v2071
    %v2417 = vunpack.c.l.b16 %v2072
    %v2418 = vunpack.c.h.b16 %v2072
    %v2419 = vunpack.c.l.b16 %v2073
    %v2420 = vunpack.c.h.b16 %v2073
    %v2421 = vunpack.c.l.b16 %v2074
    %v2422 = vunpack.c.h.b16 %v2074
    %v2423 = vunpack.c.l.b16 %v2075
    %v2424 = vunpack.c.h.b16 %v2075
    %v2425 = vunpack.c.l.b16 %v2076
    %v2426 = vunpack.c.h.b16 %v2076
    %v2427 = vunpack.c.l.b16 %v2077
    %v2428 = vunpack.c.h.b16 %v2077
    %v2429 = vunpack.c.l.b16 %v2078
    %v2430 = vunpack.c.h.b16 %v2078
    %v2431 = vunpack.c.l.b16 %v2079
    %v2432 = vunpack.c.h.b16 %v2079
    %v2433 = vunpack.c.l.b16 %v2080
    %v2434 = vunpack.c.h.b16 %v2080
    %v2435 = vunpack.c.l.b16 %v2081
    %v2436 = vunpack.c.h.b16 %v2081
    %v2437 = vunpack.c.l.b16 %v2082
    %v2438 = vunpack.c.h.b16 %v2082
    %v2439 = vunpack.c.l.b16 %v2083
    %v2440 = vunpack.c.h.b16 %v2083
    %v2441 = vunpack.c.l.b16 %v2084
    %v2442 = vunpack.c.h.b16 %v2084
    %v2443 = vunpack.c.l.b16 %v2085
    %v2444 = vunpack.c.h.b16 %v2085
    %v2445 = vunpack.c.l.b16 %v2086
    %v2446 = vunpack.c.h.b16 %v2086
    %v2447 = vunpack.c.l.b16 %v2087
    %v2448 = vunpack.c.h.b16 %v2087
    %v2449 = vunpack.c.l.b16 %v2088
    %v2450 = vunpack.c.h.b16 %v2088
    %v2451 = vunpack.c.l.b16 %v2089
    %v2452 = vunpack.c.h.b16 %v2089
    %v2453 = vunpack.c.l.b16 %v2090
    %v2454 = vunpack.c.h.b16 %v2090
    %v2455 = vunpack.c.l.b16 %v2091
    %v2456 = vunpack.c.h.b16 %v2091
    %v2457 = vunpack.c.l.b16 %v2092
    %v2458 = vunpack.c.h.b16 %v2092
    %v2459 = vunpack.c.l.b16 %v2093
    %v2460 = vunpack.c.h.b16 %v2093
    %v2461 = vunpack.c.l.b16 %v2094
    %v2462 = vunpack.c.h.b16 %v2094
    %v2463 = vunpack.c.l.b16 %v2095
    %v2464 = vunpack.c.h.b16 %v2095
    %v2465 = vunpack.c.l.b16 %v2096
    %v2466 = vunpack.c.h.b16 %v2096
    %v2467 = vunpack.c.l.b16 %v2097
    %v2468 = vunpack.c.h.b16 %v2097
    %v2469 = vunpack.c.l.b16 %v2098
    %v2470 = vunpack.c.h.b16 %v2098
    %v2471 = vunpack.c.l.b16 %v2099
    %v2472 = vunpack.c.h.b16 %v2099
    %v2473 = vunpack.c.l.b16 %v2100
    %v2474 = vunpack.c.h.b16 %v2100
    %v2475 = vunpack.c.l.b16 %v2101
    %v2476 = vunpack.c.h.b16 %v2101
    %v2477 = vunpack.c.l.b16 %v2102
    %v2478 = vunpack.c.h.b16 %v2102
    %v2479 = vunpack.c.l.b16 %v2103
    %v2480 = vunpack.c.h.b16 %v2103
    %v2481 = vunpack.c.l.b16 %v2104
    %v2482 = vunpack.c.h.b16 %v2104
    %v2483 = vunpack.c.l.b16 %v2105
    %v2484 = vunpack.c.h.b16 %v2105
    %v2485 = vunpack.c.l.b16 %v2106
    %v2486 = vunpack.c.h.b16 %v2106
    %v2487 = vunpack.c.l.b16 %v2107
    %v2488 = vunpack.c.h.b16 %v2107
    %v2489 = vunpack.c.l.b16 %v2108
    %v2490 = vunpack.c.h.b16 %v2108
    %v2491 = vunpack.c.l.b16 %v2109
    %v2492 = vunpack.c.h.b16 %v2109
    %v2493 = vunpack.c.l.b16 %v2110
    %v2494 = vunpack.c.h.b16 %v2110
    %v2495 = vunpack.c.l.b16 %v2111
    %v2496 = vunpack.c.h.b16 %v2111
    %v2497 = vunpack.c.l.b16 %v2112
    %v2498 = vunpack.c.h.b16 %v2112
    %v2499 = vunpack.c.l.b16 %v2113
    %v2500 = vunpack.c.h.b16 %v2113
    %v2501 = vunpack.c.l.b16 %v2114
    %v2502 = vunpack.c.h.b16 %v2114
    %v2503 = vunpack.c.l.b16 %v2115
    %v2504 = vunpack.c.h.b16 %v2115
    %v2505 = vunpack.c.l.b16 %v2116
    %v2506 = vunpack.c.h.b16 %v2116
    %v2507 = vunpack.c.l.b16 %v2117
    %v2508 = vunpack.c.h.b16 %v2117
    %v2509 = vunpack.c.l.b16 %v2118
    %v2510 = vunpack.c.h.b16 %v2118
    %v2511 = vunpack.c.l.b16 %v2119
    %v2512 = vunpack.c.h.b16 %v2119
    %v2513 = vunpack.c.l.b16 %v2120
    %v2514 = vunpack.c.h.b16 %v2120
    %v2515 = vunpack.c.l.b16 %v2121
    %v2516 = vunpack.c.h.b16 %v2121
    %v2517 = vunpack.c.l.b16 %v2122
    %v2518 = vunpack.c.h.b16 %v2122
    %v2519 = vunpack.c.l.b16 %v2123
    %v2520 = vunpack.c.h.b16 %v2123
    %v2521 = vunpack.c.l.b16 %v2124
    %v2522 = vunpack.c.h.b16 %v2124
    %v2523 = vunpack.c.l.b16 %v2125
    %v2524 = vunpack.c.h.b16 %v2125
    %v2525 = vunpack.c.l.b16 %v2126
    %v2526 = vunpack.c.h.b16 %v2126
    %v2527 = vunpack.c.l.b16 %v2127
    %v2528 = vunpack.c.h.b16 %v2127
    %v2529 = vunpack.c.l.b16 %v2128
    %v2530 = vunpack.c.h.b16 %v2128
    %v2531 = vunpack.c.l.b16 %v2129
    %v2532 = vunpack.c.h.b16 %v2129
    %v2533 = vunpack.c.l.b16 %v2130
    %v2534 = vunpack.c.h.b16 %v2130
    %v2535 = vunpack.c.l.b16 %v2131
    %v2536 = vunpack.c.h.b16 %v2131
    %v2537 = vunpack.c.l.b16 %v2132
    %v2538 = vunpack.c.h.b16 %v2132
    %v2539 = vunpack.c.l.b16 %v2133
    %v2540 = vunpack.c.h.b16 %v2133
    %v2541 = vunpack.c.l.b16 %v2134
    %v2542 = vunpack.c.h.b16 %v2134
    %v2543 = vunpack.c.l.b16 %v2135
    %v2544 = vunpack.c.h.b16 %v2135
    %v2545 = vunpack.c.l.b16 %v2136
    %v2546 = vunpack.c.h.b16 %v2136
    %v2547 = vunpack.c.l.b16 %v2137
    %v2548 = vunpack.c.h.b16 %v2137
    %v2549 = vunpack.c.l.b16 %v2138
    %v2550 = vunpack.c.h.b16 %v2138
    %v2551 = vunpack.c.l.b16 %v2139
    %v2552 = vunpack.c.h.b16 %v2139
    %v2553 = vunpack.c.l.b16 %v2140
    %v2554 = vunpack.c.h.b16 %v2140
    %v2555 = vunpack.c.l.b16 %v2141
    %v2556 = vunpack.c.h.b16 %v2141
    %v2557 = vunpack.c.l.b16 %v2142
    %v2558 = vunpack.c.h.b16 %v2142
    %v2559 = vunpack.c.l.b16 %v2143
    %v2560 = vunpack.c.h.b16 %v2143
    %v2561 = vunpack.c.l.b16 %v2144
    %v2562 = vunpack.c.h.b16 %v2144
    %v2563 = vunpack.c.l.b16 %v2145
    %v2564 = vunpack.c.h.b16 %v2145
    %v2565 = vunpack.c.l.b16 %v2146
    %v2566 = vunpack.c.h.b16 %v2146
    %v2567 = vunpack.c.l.b16 %v2147
    %v2568 = vunpack.c.h.b16 %v2147
    %v2569 = vunpack.c.l.b16 %v2148
    %v2570 = vunpack.c.h.b16 %v2148
    %v2571 = vunpack.c.l.b16 %v2149
    %v2572 = vunpack.c.h.b16 %v2149
    %v2573 = vunpack.c.l.b16 %v2150
    %v2574 = vunpack.c.h.b16 %v2150
    %v2575 = vunpack.c.l.b16 %v2151
    %v2576 = vunpack.c.h.b16 %v2151
    %v2577 = vunpack.c.l.b16 %v2152
    %v2578 = vunpack.c.h.b16 %v2152
    %v2579 = vpack.c.b16 %v2327, %v2323
    %v2580 = vpack.c.b16 %v2328, %v2324
    %v2581 = vpack.c.b16 %v2329, %v2325
    %v2582 = vpack.c.b16 %v2330, %v2326
    %v2583 = vpack.c.b16 %v2335, %v2331
    %v2584 = vpack.c.b16 %v2336, %v2332
    %v2585 = vpack.c.b16 %v2337, %v2333
    %v2586 = vpack.c.b16 %v2338, %v2334
    %v2587 = vpack.c.b16 %v2343, %v2339
    %v2588 = vpack.c.b16 %v2344, %v2340
    %v2589 = vpack.c.b16 %v2345, %v2341
    %v2590 = vpack.c.b16 %v2346, %v2342
    %v2591 = vpack.c.b16 %v2351, %v2347
    %v2592 = vpack.c.b16 %v2352, %v2348
    %v2593 = vpack.c.b16 %v2353, %v2349
    %v2594 = vpack.c.b16 %v2354, %v2350
    %v2595 = vpack.c.b16 %v2359, %v2355
    %v2596 = vpack.c.b16 %v2360, %v2356
    %v2597 = vpack.c.b16 %v2361, %v2357
    %v2598 = vpack.c.b16 %v2362, %v2358
    %v2599 = vpack.c.b16 %v2367, %v2363
    %v2600 = vpack.c.b16 %v2368, %v2364
    %v2601 = vpack.c.b16 %v2369, %v2365
    %v2602 = vpack.c.b16 %v2370, %v2366
    %v2603 = vpack.c.b16 %v2375, %v2371
    %v2604 = vpack.c.b16 %v2376, %v2372
    %v2605 = vpack.c.b16 %v2377, %v2373
    %v2606 = vpack.c.b16 %v2378, %v2374
    %v2607 = vpack.c.b16 %v2383, %v2379
    %v2608 = vpack.c.b16 %v2384, %v2380
    %v2609 = vpack.c.b16 %v2385, %v2381
    %v2610 = vpack.c.b16 %v2386, %v2382
    %v2611 = vpack.c.b16 %v2391, %v2387
    %v2612 = vpack.c.b16 %v2392, %v2388
    %v2613 = vpack.c.b16 %v2393, %v2389
    %v2614 = vpack.c.b16 %v2394, %v2390
    %v2615 = vpack.c.b16 %v2399, %v2395
    %v2616 = vpack.c.b16 %v2400, %v2396
    %v2617 = vpack.c.b16 %v2401, %v2397
    %v2618 = vpack.c.b16 %v2402, %v2398
    %v2619 = vpack.c.b16 %v2407, %v2403
    %v2620 = vpack.c.b16 %v2408, %v2404
    %v2621 = vpack.c.b16 %v2409, %v2405
    %v2622 = vpack.c.b16 %v2410, %v2406
    %v2623 = vpack.c.b16 %v2415, %v2411
    %v2624 = vpack.c.b16 %v2416, %v2412
    %v2625 = vpack.c.b16 %v2417, %v2413
    %v2626 = vpack.c.b16 %v2418, %v2414
    %v2627 = vpack.c.b16 %v2423, %v2419
    %v2628 = vpack.c.b16 %v2424, %v2420
    %v2629 = vpack.c.b16 %v2425, %v2421
    %v2630 = vpack.c.b16 %v2426, %v2422
    %v2631 = vpack.c.b16 %v2431, %v2427
    %v2632 = vpack.c.b16 %v2432, %v2428
    %v2633 = vpack.c.b16 %v2433, %v2429
    %v2634 = vpack.c.b16 %v2434, %v2430
    %v2635 = vpack.c.b16 %v2439, %v2435
    %v2636 = vpack.c.b16 %v2440, %v2436
    %v2637 = vpack.c.b16 %v2441, %v2437
    %v2638 = vpack.c.b16 %v2442, %v2438
    %v2639 = vpack.c.b16 %v2447, %v2443
    %v2640 = vpack.c.b16 %v2448, %v2444
    %v2641 = vpack.c.b16 %v2449, %v2445
    %v2642 = vpack.c.b16 %v2450, %v2446
    %v2643 = vpack.c.b16 %v2455, %v2451
    %v2644 = vpack.c.b16 %v2456, %v2452
    %v2645 = vpack.c.b16 %v2457, %v2453
    %v2646 = vpack.c.b16 %v2458, %v2454
    %v2647 = vpack.c.b16 %v2463, %v2459
    %v2648 = vpack.c.b16 %v2464, %v2460
    %v2649 = vpack.c.b16 %v2465, %v2461
    %v2650 = vpack.c.b16 %v2466, %v2462
    %v2651 = vpack.c.b16 %v2471, %v2467
    %v2652 = vpack.c.b16 %v2472, %v2468
    %v2653 = vpack.c.b16 %v2473, %v2469
    %v2654 = vpack.c.b16 %v2474, %v2470
    %v2655 = vpack.c.b16 %v2479, %v2475
    %v2656 = vpack.c.b16 %v2480, %v2476
    %v2657 = vpack.c.b16 %v2481, %v2477
    %v2658 = vpack.c.b16 %v2482, %v2478
    %v2659 = vpack.c.b16 %v2487, %v2483
    %v2660 = vpack.c.b16 %v2488, %v2484
    %v2661 = vpack.c.b16 %v2489, %v2485
    %v2662 = vpack.c.b16 %v2490, %v2486
    %v2663 = vpack.c.b16 %v2495, %v2491
    %v2664 = vpack.c.b16 %v2496, %v2492
    %v2665 = vpack.c.b16 %v2497, %v2493
    %v2666 = vpack.c.b16 %v2498, %v2494
    %v2667 = vpack.c.b16 %v2503, %v2499
    %v2668 = vpack.c.b16 %v2504, %v2500
    %v2669 = vpack.c.b16 %v2505, %v2501
    %v2670 = vpack.c.b16 %v2506, %v2502
    %v2671 = vpack.c.b16 %v2511, %v2507
    %v2672 = vpack.c.b16 %v2512, %v2508
    %v2673 = vpack.c.b16 %v2513, %v2509
    %v2674 = vpack.c.b16 %v2514, %v2510
    %v2675 = vpack.c.b16 %v2519, %v2515
    %v2676 = vpack.c.b16 %v2520, %v2516
    %v2677 = vpack.c.b16 %v2521, %v2517
    %v2678 = vpack.c.b16 %v2522, %v2518
    %v2679 = vpack.c.b16 %v2527, %v2523
    %v2680 = vpack.c.b16 %v2528, %v2524
    %v2681 = vpack.c.b16 %v2529, %v2525
    %v2682 = vpack.c.b16 %v2530, %v2526
    %v2683 = vpack.c.b16 %v2535, %v2531
    %v2684 = vpack.c.b16 %v2536, %v2532
    %v2685 = vpack.c.b16 %v2537, %v2533
    %v2686 = vpack.c.b16 %v2538, %v2534
    %v2687 = vpack.c.b16 %v2543, %v2539
    %v2688 = vpack.c.b16 %v2544, %v2540
    %v2689 = vpack.c.b16 %v2545, %v2541
    %v2690 = vpack.c.b16 %v2546, %v2542
    %v2691 = vpack.c.b16 %v2551, %v2547
    %v2692 = vpack.c.b16 %v2552, %v2548
    %v2693 = vpack.c.b16 %v2553, %v2549
    %v2694 = vpack.c.b16 %v2554, %v2550
    %v2695 = vpack.c.b16 %v2559, %v2555
    %v2696 = vpack.c.b16 %v2560, %v2556
    %v2697 = vpack.c.b16 %v2561, %v2557
    %v2698 = vpack.c.b16 %v2562, %v2558
    %v2699 = vpack.c.b16 %v2567, %v2563
    %v2700 = vpack.c.b16 %v2568, %v2564
    %v2701 = vpack.c.b16 %v2569, %v2565
    %v2702 = vpack.c.b16 %v2570, %v2566
    %v2703 = vpack.c.b16 %v2575, %v2571
    %v2704 = vpack.c.b16 %v2576, %v2572
    %v2705 = vpack.c.b16 %v2577, %v2573
    %v2706 = vpack.c.b16 %v2578, %v2574
    %2835 = vmatprep.subr.bf16.mxu0 %v2608
    %2836 = vmatpush1.bf16.msra.mxu0 %v2607
    %2837 = vmatprep.subr.bf16.mxu0 %v2604
    %2838 = vmatpush1.bf16.msra.mxu0 %v2603
    %2839 = vmatprep.subr.bf16.mxu0 %v2600
    %2840 = vmatpush1.bf16.msra.mxu0 %v2599
    %2841 = vmatprep.subr.bf16.mxu0 %v2596
    %2842 = vmatpush1.bf16.msra.mxu0 %v2595
    %2843 = vmatprep.subr.bf16.mxu0 %v2592
    %2844 = vmatpush1.bf16.msra.mxu0 %v2591
    %2845 = vmatprep.subr.bf16.mxu0 %v2588
    %2846 = vmatpush1.bf16.msra.mxu0 %v2587
    %2847 = vmatprep.subr.bf16.mxu0 %v2584
    %2848 = vmatpush1.bf16.msra.mxu0 %v2583
    %2849 = vmatprep.subr.bf16.mxu0 %v2580
    %2850 = vmatpush1.bf16.msra.mxu0 %v2579
    %2851 = vmatprep.subr.bf16.mxu0 %v2640
    %2852 = vmatpush2.bf16.msra.mxu0 %v2639
    %2853 = vmatprep.subr.bf16.mxu0 %v2636
    %2854 = vmatpush2.bf16.msra.mxu0 %v2635
    %2855 = vmatprep.subr.bf16.mxu0 %v2632
    %2856 = vmatpush2.bf16.msra.mxu0 %v2631
    %2857 = vmatprep.subr.bf16.mxu0 %v2628
    %2858 = vmatpush2.bf16.msra.mxu0 %v2627
    %2859 = vmatprep.subr.bf16.mxu0 %v2624
    %2860 = vmatpush2.bf16.msra.mxu0 %v2623
    %2861 = vmatprep.subr.bf16.mxu0 %v2620
    %2862 = vmatpush2.bf16.msra.mxu0 %v2619
    %2863 = vmatprep.subr.bf16.mxu0 %v2616
    %2864 = vmatpush2.bf16.msra.mxu0 %v2615
    %2865 = vmatprep.subr.bf16.mxu0 %v2612
    %2866 = vmatpush2.bf16.msra.mxu0 %v2611
    %2867 = vmatprep.mubr.bf16.mxu0 %v2188
    %2868 = vmatmul.mubr.bf16.gmra.mxu0 %v2187
    %v2869 = vpop.f32.mrf.mxu0
    %v2870 = vadd.f32 %v2158, %v2869
    %v2871 = vpop.f32.mrf.mxu0
    %v2872 = vadd.f32 %v2162, %v2871
    %v2873 = vpop.f32.mrf.mxu0
    %v2874 = vadd.f32 %v2158, %v2873
    %v2875 = vpop.f32.mrf.mxu0
    %v2876 = vadd.f32 %v2162, %v2875
    %2877 = vdwg.mxu0
    %2878 = vmatprep.subr.bf16.mxu0 %v2672
    %2879 = vmatpush1.bf16.msra.mxu0 %v2671
    %2880 = vmatprep.subr.bf16.mxu0 %v2668
    %2881 = vmatpush1.bf16.msra.mxu0 %v2667
    %2882 = vmatprep.subr.bf16.mxu0 %v2664
    %2883 = vmatpush1.bf16.msra.mxu0 %v2663
    %2884 = vmatprep.subr.bf16.mxu0 %v2660
    %2885 = vmatpush1.bf16.msra.mxu0 %v2659
    %2886 = vmatprep.subr.bf16.mxu0 %v2656
    %2887 = vmatpush1.bf16.msra.mxu0 %v2655
    %2888 = vmatprep.subr.bf16.mxu0 %v2652
    %2889 = vmatpush1.bf16.msra.mxu0 %v2651
    %2890 = vmatprep.subr.bf16.mxu0 %v2648
    %2891 = vmatpush1.bf16.msra.mxu0 %v2647
    %2892 = vmatprep.subr.bf16.mxu0 %v2644
    %2893 = vmatpush1.bf16.msra.mxu0 %v2643
    %2894 = vmatprep.subr.bf16.mxu0 %v2704
    %2895 = vmatpush2.bf16.msra.mxu0 %v2703
    %2896 = vmatprep.subr.bf16.mxu0 %v2700
    %2897 = vmatpush2.bf16.msra.mxu0 %v2699
    %2898 = vmatprep.subr.bf16.mxu0 %v2696
    %2899 = vmatpush2.bf16.msra.mxu0 %v2695
    %2900 = vmatprep.subr.bf16.mxu0 %v2692
    %2901 = vmatpush2.bf16.msra.mxu0 %v2691
    %2902 = vmatprep.subr.bf16.mxu0 %v2688
    %2903 = vmatpush2.bf16.msra.mxu0 %v2687
    %2904 = vmatprep.subr.bf16.mxu0 %v2684
    %2905 = vmatpush2.bf16.msra.mxu0 %v2683
    %2906 = vmatprep.subr.bf16.mxu0 %v2680
    %2907 = vmatpush2.bf16.msra.mxu0 %v2679
    %2908 = vmatprep.subr.bf16.mxu0 %v2676
    %2909 = vmatpush2.bf16.msra.mxu0 %v2675
    %2910 = vmatprep.mubr.bf16.mxu0 %v2190
    %2911 = vmatmul.mubr.bf16.gmra.mxu0 %v2189
    %v2912 = vpop.f32.mrf.mxu0
    %v2913 = vadd.f32 %v2870, %v2912
    %v2914 = vpop.f32.mrf.mxu0
    %v2915 = vadd.f32 %v2872, %v2914
    %v2916 = vpop.f32.mrf.mxu0
    %v2917 = vadd.f32 %v2874, %v2916
    %v2918 = vpop.f32.mrf.mxu0
    %v2919 = vadd.f32 %v2876, %v2918
    %2920 = vdwg.mxu0
    %2921 = vmatprep.subr.bf16.mxu0 %v2610
    %2922 = vmatpush1.bf16.msra.mxu0 %v2609
    %2923 = vmatprep.subr.bf16.mxu0 %v2606
    %2924 = vmatpush1.bf16.msra.mxu0 %v2605
    %2925 = vmatprep.subr.bf16.mxu0 %v2602
    %2926 = vmatpush1.bf16.msra.mxu0 %v2601
    %2927 = vmatprep.subr.bf16.mxu0 %v2598
    %2928 = vmatpush1.bf16.msra.mxu0 %v2597
    %2929 = vmatprep.subr.bf16.mxu0 %v2594
    %2930 = vmatpush1.bf16.msra.mxu0 %v2593
    %2931 = vmatprep.subr.bf16.mxu0 %v2590
    %2932 = vmatpush1.bf16.msra.mxu0 %v2589
    %2933 = vmatprep.subr.bf16.mxu0 %v2586
    %2934 = vmatpush1.bf16.msra.mxu0 %v2585
    %2935 = vmatprep.subr.bf16.mxu0 %v2582
    %2936 = vmatpush1.bf16.msra.mxu0 %v2581
    %2937 = vmatprep.subr.bf16.mxu0 %v2642
    %2938 = vmatpush2.bf16.msra.mxu0 %v2641
    %2939 = vmatprep.subr.bf16.mxu0 %v2638
    %2940 = vmatpush2.bf16.msra.mxu0 %v2637
    %2941 = vmatprep.subr.bf16.mxu0 %v2634
    %2942 = vmatpush2.bf16.msra.mxu0 %v2633
    %2943 = vmatprep.subr.bf16.mxu0 %v2630
    %2944 = vmatpush2.bf16.msra.mxu0 %v2629
    %2945 = vmatprep.subr.bf16.mxu0 %v2626
    %2946 = vmatpush2.bf16.msra.mxu0 %v2625
    %2947 = vmatprep.subr.bf16.mxu0 %v2622
    %2948 = vmatpush2.bf16.msra.mxu0 %v2621
    %2949 = vmatprep.subr.bf16.mxu0 %v2618
    %2950 = vmatpush2.bf16.msra.mxu0 %v2617
    %2951 = vmatprep.subr.bf16.mxu0 %v2614
    %2952 = vmatpush2.bf16.msra.mxu0 %v2613
    %2953 = vmatprep.mubr.bf16.mxu0 %v2188
    %2954 = vmatmul.mubr.bf16.gmra.mxu0 %v2187
    %v2955 = vpop.f32.mrf.mxu0
    %v2956 = vadd.f32 %v2166, %v2955
    %v2957 = vpop.f32.mrf.mxu0
    %v2958 = vadd.f32 %v2170, %v2957
    %v2959 = vpop.f32.mrf.mxu0
    %v2960 = vadd.f32 %v2166, %v2959
    %v2961 = vpop.f32.mrf.mxu0
    %v2962 = vadd.f32 %v2170, %v2961
    %2963 = vdwg.mxu0
    %2964 = vmatprep.subr.bf16.mxu0 %v2674
    %2965 = vmatpush1.bf16.msra.mxu0 %v2673
    %2966 = vmatprep.subr.bf16.mxu0 %v2670
    %2967 = vmatpush1.bf16.msra.mxu0 %v2669
    %2968 = vmatprep.subr.bf16.mxu0 %v2666
    %2969 = vmatpush1.bf16.msra.mxu0 %v2665
    %2970 = vmatprep.subr.bf16.mxu0 %v2662
    %2971 = vmatpush1.bf16.msra.mxu0 %v2661
    %2972 = vmatprep.subr.bf16.mxu0 %v2658
    %2973 = vmatpush1.bf16.msra.mxu0 %v2657
    %2974 = vmatprep.subr.bf16.mxu0 %v2654
    %2975 = vmatpush1.bf16.msra.mxu0 %v2653
    %2976 = vmatprep.subr.bf16.mxu0 %v2650
    %2977 = vmatpush1.bf16.msra.mxu0 %v2649
    %2978 = vmatprep.subr.bf16.mxu0 %v2646
    %2979 = vmatpush1.bf16.msra.mxu0 %v2645
    %2980 = vmatprep.subr.bf16.mxu0 %v2706
    %2981 = vmatpush2.bf16.msra.mxu0 %v2705
    %2982 = vmatprep.subr.bf16.mxu0 %v2702
    %2983 = vmatpush2.bf16.msra.mxu0 %v2701
    %2984 = vmatprep.subr.bf16.mxu0 %v2698
    %2985 = vmatpush2.bf16.msra.mxu0 %v2697
    %2986 = vmatprep.subr.bf16.mxu0 %v2694
    %2987 = vmatpush2.bf16.msra.mxu0 %v2693
    %2988 = vmatprep.subr.bf16.mxu0 %v2690
    %2989 = vmatpush2.bf16.msra.mxu0 %v2689
    %2990 = vmatprep.subr.bf16.mxu0 %v2686
    %2991 = vmatpush2.bf16.msra.mxu0 %v2685
    %2992 = vmatprep.subr.bf16.mxu0 %v2682
    %2993 = vmatpush2.bf16.msra.mxu0 %v2681
    %2994 = vmatprep.subr.bf16.mxu0 %v2678
    %2995 = vmatpush2.bf16.msra.mxu0 %v2677
    %2996 = vmatprep.mubr.bf16.mxu0 %v2190
    %2997 = vmatmul.mubr.bf16.gmra.mxu0 %v2189
    %v2998 = vpop.f32.mrf.mxu0
    %v2999 = vadd.f32 %v2956, %v2998
    %v3000 = vpop.f32.mrf.mxu0
    %v3001 = vadd.f32 %v2958, %v3000
    %v3002 = vpop.f32.mrf.mxu0
    %v3003 = vadd.f32 %v2960, %v3002
    %v3004 = vpop.f32.mrf.mxu0
    %v3005 = vadd.f32 %v2962, %v3004
    %3006 = vdwg.mxu0
    %v3007 = vld [vmem:[%s3] sm:$0x3]
    %v3008 = vld [vmem:[%s3 + $0x2] sm:$0x3]
    %v3009 = vunpack.c.0.s8 %v3007
    %v3010 = vunpack.c.0.s8 %v3008
    %v3011 = vcvt.s32.f32 %v3009
    %v3012 = vcvt.s32.f32 %v3010
    %vm3013 = vcmp.gt.f32.partialorder %v3011, 0.5
    %vm3014 = vcmp.gt.f32.partialorder %v3012, 0.5
    %v3015 = vpack.c.bf16 %v941, %v941
    %v3016 = vpack.c.bf16 %v945, %v945
    %v3017 = vpack.c.bf16 %v1927, %v1927
    %v3018 = vpack.c.bf16 %v1931, %v1931
    %v3019 = vpack.c.bf16 %v2913, %v2913
    %v3020 = vpack.c.bf16 %v2917, %v2917
    %vm3021 = vcmask 523264
    %v3023 = vsel %vm3021, %v3015, 0
    %v3026 = vsel %vm3021, %v3017, 0
    %3028 = vmatprep.subr.bf16.mxu0 0
    %3029 = vmatpush1.bf16.xpose.msra.mxu0 0
    %3030 = vmatprep.subr.bf16.mxu0 0
    %3031 = vmatpush1.bf16.xpose.msra.mxu0 0
    %3032 = vmatprep.subr.bf16.mxu0 0
    %3033 = vmatpush1.bf16.xpose.msra.mxu0 0
    %3034 = vmatprep.subr.bf16.mxu0 0
    %3035 = vmatpush1.bf16.xpose.msra.mxu0 0
    %3036 = vmatprep.subr.bf16.mxu0 0
    %3037 = vmatpush1.bf16.xpose.msra.mxu0 0
    %3038 = vmatprep.subr.bf16.mxu0 0
    %3039 = vmatpush1.bf16.xpose.msra.mxu0 0
    %3040 = vmatprep.subr.bf16.mxu0 0
    %3041 = vmatpush1.bf16.xpose.msra.mxu0 0
    %3042 = vmatprep.subr.bf16.mxu0 0
    %3043 = vmatpush1.bf16.xpose.msra.mxu0 %v3026
    %3044 = vmatprep.subr.bf16.mxu0 0
    %3045 = vmatpush2.bf16.xpose.msra.mxu0 0
    %3046 = vmatprep.subr.bf16.mxu0 0
    %3047 = vmatpush2.bf16.xpose.msra.mxu0 0
    %3048 = vmatprep.subr.bf16.mxu0 0
    %3049 = vmatpush2.bf16.xpose.msra.mxu0 0
    %3050 = vmatprep.subr.bf16.mxu0 0
    %3051 = vmatpush2.bf16.xpose.msra.mxu0 0
    %3052 = vmatprep.subr.bf16.mxu0 0
    %3053 = vmatpush2.bf16.xpose.msra.mxu0 0
    %3054 = vmatprep.subr.bf16.mxu0 0
    %3055 = vmatpush2.bf16.xpose.msra.mxu0 0
    %3056 = vmatprep.subr.bf16.mxu0 0
    %3057 = vmatpush2.bf16.xpose.msra.mxu0 0
    %3058 = vmatprep.subr.bf16.mxu0 0
    %3059 = vmatpush2.bf16.xpose.msra.mxu0 0
    %3060 = vmatprep.mubr.bf16.mxu0 0
    %3061 = vmatmul.mubr.bf16.gmra.mxu0 %v3023
    %v3062 = vpop.f32.mrf.mxu0
    %v3063 = vadd.f32 0.0, %v3062
    %v3064 = vpop.f32.mrf.mxu0
    %v3065 = vpop.f32.mrf.mxu0
    %v3066 = vpop.f32.mrf.mxu0
    %3067 = vdwg.mxu0
    %v3069 = vsel %vm3021, %v3016, 0
    %v3072 = vsel %vm3021, %v3018, 0
    %3074 = vmatprep.subr.bf16.mxu0 0
    %3075 = vmatpush1.bf16.xpose.msra.mxu0 0
    %3076 = vmatprep.subr.bf16.mxu0 0
    %3077 = vmatpush1.bf16.xpose.msra.mxu0 0
    %3078 = vmatprep.subr.bf16.mxu0 0
    %3079 = vmatpush1.bf16.xpose.msra.mxu0 0
    %3080 = vmatprep.subr.bf16.mxu0 0
    %3081 = vmatpush1.bf16.xpose.msra.mxu0 0
    %3082 = vmatprep.subr.bf16.mxu0 0
    %3083 = vmatpush1.bf16.xpose.msra.mxu0 0
    %3084 = vmatprep.subr.bf16.mxu0 0
    %3085 = vmatpush1.bf16.xpose.msra.mxu0 0
    %3086 = vmatprep.subr.bf16.mxu0 0
    %3087 = vmatpush1.bf16.xpose.msra.mxu0 0
    %3088 = vmatprep.subr.bf16.mxu0 0
    %3089 = vmatpush1.bf16.xpose.msra.mxu0 %v3072
    %3090 = vmatprep.subr.bf16.mxu0 0
    %3091 = vmatpush2.bf16.xpose.msra.mxu0 0
    %3092 = vmatprep.subr.bf16.mxu0 0
    %3093 = vmatpush2.bf16.xpose.msra.mxu0 0
    %3094 = vmatprep.subr.bf16.mxu0 0
    %3095 = vmatpush2.bf16.xpose.msra.mxu0 0
    %3096 = vmatprep.subr.bf16.mxu0 0
    %3097 = vmatpush2.bf16.xpose.msra.mxu0 0
    %3098 = vmatprep.subr.bf16.mxu0 0
    %3099 = vmatpush2.bf16.xpose.msra.mxu0 0
    %3100 = vmatprep.subr.bf16.mxu0 0
    %3101 = vmatpush2.bf16.xpose.msra.mxu0 0
    %3102 = vmatprep.subr.bf16.mxu0 0
    %3103 = vmatpush2.bf16.xpose.msra.mxu0 0
    %3104 = vmatprep.subr.bf16.mxu0 0
    %3105 = vmatpush2.bf16.xpose.msra.mxu0 0
    %3106 = vmatprep.mubr.bf16.mxu0 0
    %3107 = vmatmul.mubr.bf16.gmra.mxu0 %v3069
    %v3108 = vpop.f32.mrf.mxu0
    %v3109 = vadd.f32 0.0, %v3108
    %v3110 = vpop.f32.mrf.mxu0
    %v3111 = vpop.f32.mrf.mxu0
    %v3112 = vpop.f32.mrf.mxu0
    %3113 = vdwg.mxu0
    %v3114 = vsel %vm3013, -1e+09, %v3063
    %v3115 = vsel %vm3014, -1e+09, %v3109
    %vm3116 = vcmask 64512
    %v3117 = vsel %vm3116, %v3114, -inf
    %3118 = vmax.xlane.f32.xlu0 %v3117
    %v3119 = vpop.xlane.xlu0 %3118
    %v3120 = vsel %vm3116, %v3115, -inf
    %3121 = vmax.xlane.f32.xlu0 %v3120
    %v3122 = vpop.xlane.xlu0 %3121
    %v3123 = vsub.f32 %v3114, %v3119
    %v3124 = vsub.f32 %v3115, %v3122
    %v3125 = vmul.f32 %v3123, 1.442695
    %v3126 = vpow.pop %v3125
    %v3127 = vmul.f32 %v3124, 1.442695
    %v3128 = vpow.pop %v3127
    %v3129 = vsel %vm3116, %v3126, 0.0
    %3130 = vadd.xlane.f32.xlu0 %v3129
    %v3131 = vpop.xlane.xlu0 %3130
    %v3132 = vsel %vm3116, %v3128, 0.0
    %3133 = vadd.xlane.f32.xlu0 %v3132
    %v3134 = vpop.xlane.xlu0 %3133
    %v3135 = vrcp.pop %v3131
    %v3136 = vrcp.pop %v3134
    %v3137 = vmul.f32 %v3126, %v3135
    %v3138 = vmul.f32 %v3128, %v3136
    %v3139 = vpack.c.bf16 %v3137, %v3137
    %v3140 = vpack.c.bf16 %v3138, %v3138
    %v3142 = vsel %vm3116, %v3139, 0
    %vm3144 = vcmask 1043456
    %v3146 = vsel %vm3144, %v3019, 0
    %3148 = vmatprep.subr.bf16.mxu0 0
    %3149 = vmatpush1.bf16.msra.mxu0 0
    %3150 = vmatprep.subr.bf16.mxu0 0
    %3151 = vmatpush1.bf16.msra.mxu0 0
    %3152 = vmatprep.subr.bf16.mxu0 0
    %3153 = vmatpush1.bf16.msra.mxu0 0
    %3154 = vmatprep.subr.bf16.mxu0 0
    %3155 = vmatpush1.bf16.msra.mxu0 0
    %3156 = vmatprep.subr.bf16.mxu0 0
    %3157 = vmatpush1.bf16.msra.mxu0 0
    %3158 = vmatprep.subr.bf16.mxu0 0
    %3159 = vmatpush1.bf16.msra.mxu0 0
    %3160 = vmatprep.subr.bf16.mxu0 0
    %3161 = vmatpush1.bf16.msra.mxu0 0
    %3162 = vmatprep.subr.bf16.mxu0 0
    %3163 = vmatpush1.bf16.msra.mxu0 %v3146
    %3164 = vmatprep.subr.bf16.mxu0 0
    %3165 = vmatpush2.bf16.msra.mxu0 0
    %3166 = vmatprep.subr.bf16.mxu0 0
    %3167 = vmatpush2.bf16.msra.mxu0 0
    %3168 = vmatprep.subr.bf16.mxu0 0
    %3169 = vmatpush2.bf16.msra.mxu0 0
    %3170 = vmatprep.subr.bf16.mxu0 0
    %3171 = vmatpush2.bf16.msra.mxu0 0
    %3172 = vmatprep.subr.bf16.mxu0 0
    %3173 = vmatpush2.bf16.msra.mxu0 0
    %3174 = vmatprep.subr.bf16.mxu0 0
    %3175 = vmatpush2.bf16.msra.mxu0 0
    %3176 = vmatprep.subr.bf16.mxu0 0
    %3177 = vmatpush2.bf16.msra.mxu0 0
    %3178 = vmatprep.subr.bf16.mxu0 0
    %3179 = vmatpush2.bf16.msra.mxu0 0
    %3180 = vmatprep.mubr.bf16.mxu0 0
    %3181 = vmatmul.mubr.bf16.gmra.mxu0 %v3142
    %v3182 = vpop.f32.mrf.mxu0
    %v3183 = vadd.f32 0.0, %v3182
    %v3184 = vpop.f32.mrf.mxu0
    %v3185 = vpop.f32.mrf.mxu0
    %v3186 = vpop.f32.mrf.mxu0
    %3187 = vdwg.mxu0
    %v3189 = vsel %vm3116, %v3140, 0
    %v3192 = vsel %vm3144, %v3020, 0
    %3194 = vmatprep.subr.bf16.mxu0 0
    %3195 = vmatpush1.bf16.msra.mxu0 0
    %3196 = vmatprep.subr.bf16.mxu0 0
    %3197 = vmatpush1.bf16.msra.mxu0 0
    %3198 = vmatprep.subr.bf16.mxu0 0
    %3199 = vmatpush1.bf16.msra.mxu0 0
    %3200 = vmatprep.subr.bf16.mxu0 0
    %3201 = vmatpush1.bf16.msra.mxu0 0
    %3202 = vmatprep.subr.bf16.mxu0 0
    %3203 = vmatpush1.bf16.msra.mxu0 0
    %3204 = vmatprep.subr.bf16.mxu0 0
    %3205 = vmatpush1.bf16.msra.mxu0 0
    %3206 = vmatprep.subr.bf16.mxu0 0
    %3207 = vmatpush1.bf16.msra.mxu0 0
    %3208 = vmatprep.subr.bf16.mxu0 0
    %3209 = vmatpush1.bf16.msra.mxu0 %v3192
    %3210 = vmatprep.subr.bf16.mxu0 0
    %3211 = vmatpush2.bf16.msra.mxu0 0
    %3212 = vmatprep.subr.bf16.mxu0 0
    %3213 = vmatpush2.bf16.msra.mxu0 0
    %3214 = vmatprep.subr.bf16.mxu0 0
    %3215 = vmatpush2.bf16.msra.mxu0 0
    %3216 = vmatprep.subr.bf16.mxu0 0
    %3217 = vmatpush2.bf16.msra.mxu0 0
    %3218 = vmatprep.subr.bf16.mxu0 0
    %3219 = vmatpush2.bf16.msra.mxu0 0
    %3220 = vmatprep.subr.bf16.mxu0 0
    %3221 = vmatpush2.bf16.msra.mxu0 0
    %3222 = vmatprep.subr.bf16.mxu0 0
    %3223 = vmatpush2.bf16.msra.mxu0 0
    %3224 = vmatprep.subr.bf16.mxu0 0
    %3225 = vmatpush2.bf16.msra.mxu0 0
    %3226 = vmatprep.mubr.bf16.mxu0 0
    %3227 = vmatmul.mubr.bf16.gmra.mxu0 %v3189
    %v3228 = vpop.f32.mrf.mxu0
    %v3229 = vadd.f32 0.0, %v3228
    %v3230 = vpop.f32.mrf.mxu0
    %v3231 = vpop.f32.mrf.mxu0
    %v3232 = vpop.f32.mrf.mxu0
    %3233 = vdwg.mxu0
    %v3234 = vpack.c.bf16 %v3229, %v3183
    %3236 = vrot.lane.b32.xlu0 %v3015, 64
    %v3237 = vpop.permute.xlu0 %3236
    %3239 = vrot.lane.b32.xlu0 %v3017, 64
    %v3240 = vpop.permute.xlu0 %3239
    %v3242 = vsel %vm3021, %v3237, 0
    %v3245 = vsel %vm3021, %v3240, 0
    %3247 = vmatprep.subr.bf16.mxu0 0
    %3248 = vmatpush1.bf16.xpose.msra.mxu0 0
    %3249 = vmatprep.subr.bf16.mxu0 0
    %3250 = vmatpush1.bf16.xpose.msra.mxu0 0
    %3251 = vmatprep.subr.bf16.mxu0 0
    %3252 = vmatpush1.bf16.xpose.msra.mxu0 0
    %3253 = vmatprep.subr.bf16.mxu0 0
    %3254 = vmatpush1.bf16.xpose.msra.mxu0 0
    %3255 = vmatprep.subr.bf16.mxu0 0
    %3256 = vmatpush1.bf16.xpose.msra.mxu0 0
    %3257 = vmatprep.subr.bf16.mxu0 0
    %3258 = vmatpush1.bf16.xpose.msra.mxu0 0
    %3259 = vmatprep.subr.bf16.mxu0 0
    %3260 = vmatpush1.bf16.xpose.msra.mxu0 0
    %3261 = vmatprep.subr.bf16.mxu0 0
    %3262 = vmatpush1.bf16.xpose.msra.mxu0 %v3245
    %3263 = vmatprep.subr.bf16.mxu0 0
    %3264 = vmatpush2.bf16.xpose.msra.mxu0 0
    %3265 = vmatprep.subr.bf16.mxu0 0
    %3266 = vmatpush2.bf16.xpose.msra.mxu0 0
    %3267 = vmatprep.subr.bf16.mxu0 0
    %3268 = vmatpush2.bf16.xpose.msra.mxu0 0
    %3269 = vmatprep.subr.bf16.mxu0 0
    %3270 = vmatpush2.bf16.xpose.msra.mxu0 0
    %3271 = vmatprep.subr.bf16.mxu0 0
    %3272 = vmatpush2.bf16.xpose.msra.mxu0 0
    %3273 = vmatprep.subr.bf16.mxu0 0
    %3274 = vmatpush2.bf16.xpose.msra.mxu0 0
    %3275 = vmatprep.subr.bf16.mxu0 0
    %3276 = vmatpush2.bf16.xpose.msra.mxu0 0
    %3277 = vmatprep.subr.bf16.mxu0 0
    %3278 = vmatpush2.bf16.xpose.msra.mxu0 0
    %3279 = vmatprep.mubr.bf16.mxu0 0
    %3280 = vmatmul.mubr.bf16.gmra.mxu0 %v3242
    %v3281 = vpop.f32.mrf.mxu0
    %v3282 = vadd.f32 0.0, %v3281
    %v3283 = vpop.f32.mrf.mxu0
    %v3284 = vpop.f32.mrf.mxu0
    %v3285 = vpop.f32.mrf.mxu0
    %3286 = vdwg.mxu0
    %3288 = vrot.lane.b32.xlu0 %v3016, 64
    %v3289 = vpop.permute.xlu0 %3288
    %3291 = vrot.lane.b32.xlu0 %v3018, 64
    %v3292 = vpop.permute.xlu0 %3291
    %v3294 = vsel %vm3021, %v3289, 0
    %v3297 = vsel %vm3021, %v3292, 0
    %3299 = vmatprep.subr.bf16.mxu0 0
    %3300 = vmatpush1.bf16.xpose.msra.mxu0 0
    %3301 = vmatprep.subr.bf16.mxu0 0
    %3302 = vmatpush1.bf16.xpose.msra.mxu0 0
    %3303 = vmatprep.subr.bf16.mxu0 0
    %3304 = vmatpush1.bf16.xpose.msra.mxu0 0
    %3305 = vmatprep.subr.bf16.mxu0 0
    %3306 = vmatpush1.bf16.xpose.msra.mxu0 0
    %3307 = vmatprep.subr.bf16.mxu0 0
    %3308 = vmatpush1.bf16.xpose.msra.mxu0 0
    %3309 = vmatprep.subr.bf16.mxu0 0
    %3310 = vmatpush1.bf16.xpose.msra.mxu0 0
    %3311 = vmatprep.subr.bf16.mxu0 0
    %3312 = vmatpush1.bf16.xpose.msra.mxu0 0
    %3313 = vmatprep.subr.bf16.mxu0 0
    %3314 = vmatpush1.bf16.xpose.msra.mxu0 %v3297
    %3315 = vmatprep.subr.bf16.mxu0 0
    %3316 = vmatpush2.bf16.xpose.msra.mxu0 0
    %3317 = vmatprep.subr.bf16.mxu0 0
    %3318 = vmatpush2.bf16.xpose.msra.mxu0 0
    %3319 = vmatprep.subr.bf16.mxu0 0
    %3320 = vmatpush2.bf16.xpose.msra.mxu0 0
    %3321 = vmatprep.subr.bf16.mxu0 0
    %3322 = vmatpush2.bf16.xpose.msra.mxu0 0
    %3323 = vmatprep.subr.bf16.mxu0 0
    %3324 = vmatpush2.bf16.xpose.msra.mxu0 0
    %3325 = vmatprep.subr.bf16.mxu0 0
    %3326 = vmatpush2.bf16.xpose.msra.mxu0 0
    %3327 = vmatprep.subr.bf16.mxu0 0
    %3328 = vmatpush2.bf16.xpose.msra.mxu0 0
    %3329 = vmatprep.subr.bf16.mxu0 0
    %3330 = vmatpush2.bf16.xpose.msra.mxu0 0
    %3331 = vmatprep.mubr.bf16.mxu0 0
    %3332 = vmatmul.mubr.bf16.gmra.mxu0 %v3294
    %v3333 = vpop.f32.mrf.mxu0
    %v3334 = vadd.f32 0.0, %v3333
    %v3335 = vpop.f32.mrf.mxu0
    %v3336 = vpop.f32.mrf.mxu0
    %v3337 = vpop.f32.mrf.mxu0
    %3338 = vdwg.mxu0
    %v3339 = vsel %vm3013, -1e+09, %v3282
    %v3340 = vsel %vm3014, -1e+09, %v3334
    %v3341 = vsel %vm3116, %v3339, -inf
    %3342 = vmax.xlane.f32.xlu0 %v3341
    %v3343 = vpop.xlane.xlu0 %3342
    %v3344 = vsel %vm3116, %v3340, -inf
    %3345 = vmax.xlane.f32.xlu0 %v3344
    %v3346 = vpop.xlane.xlu0 %3345
    %v3347 = vsub.f32 %v3339, %v3343
    %v3348 = vsub.f32 %v3340, %v3346
    %v3349 = vmul.f32 %v3347, 1.442695
    %v3350 = vpow.pop %v3349
    %v3351 = vmul.f32 %v3348, 1.442695
    %v3352 = vpow.pop %v3351
    %v3353 = vsel %vm3116, %v3350, 0.0
    %3354 = vadd.xlane.f32.xlu0 %v3353
    %v3355 = vpop.xlane.xlu0 %3354
    %v3356 = vsel %vm3116, %v3352, 0.0
    %3357 = vadd.xlane.f32.xlu0 %v3356
    %v3358 = vpop.xlane.xlu0 %3357
    %v3359 = vrcp.pop %v3355
    %v3360 = vrcp.pop %v3358
    %v3361 = vmul.f32 %v3350, %v3359
    %v3362 = vmul.f32 %v3352, %v3360
    %v3363 = vpack.c.bf16 %v3361, %v3361
    %v3364 = vpack.c.bf16 %v3362, %v3362
    %3366 = vrot.lane.b32.xlu0 %v3019, 64
    %v3367 = vpop.permute.xlu0 %3366
    %v3369 = vsel %vm3116, %v3363, 0
    %v3372 = vsel %vm3144, %v3367, 0
    %3374 = vmatprep.subr.bf16.mxu0 0
    %3375 = vmatpush1.bf16.msra.mxu0 0
    %3376 = vmatprep.subr.bf16.mxu0 0
    %3377 = vmatpush1.bf16.msra.mxu0 0
    %3378 = vmatprep.subr.bf16.mxu0 0
    %3379 = vmatpush1.bf16.msra.mxu0 0
    %3380 = vmatprep.subr.bf16.mxu0 0
    %3381 = vmatpush1.bf16.msra.mxu0 0
    %3382 = vmatprep.subr.bf16.mxu0 0
    %3383 = vmatpush1.bf16.msra.mxu0 0
    %3384 = vmatprep.subr.bf16.mxu0 0
    %3385 = vmatpush1.bf16.msra.mxu0 0
    %3386 = vmatprep.subr.bf16.mxu0 0
    %3387 = vmatpush1.bf16.msra.mxu0 0
    %3388 = vmatprep.subr.bf16.mxu0 0
    %3389 = vmatpush1.bf16.msra.mxu0 %v3372
    %3390 = vmatprep.subr.bf16.mxu0 0
    %3391 = vmatpush2.bf16.msra.mxu0 0
    %3392 = vmatprep.subr.bf16.mxu0 0
    %3393 = vmatpush2.bf16.msra.mxu0 0
    %3394 = vmatprep.subr.bf16.mxu0 0
    %3395 = vmatpush2.bf16.msra.mxu0 0
    %3396 = vmatprep.subr.bf16.mxu0 0
    %3397 = vmatpush2.bf16.msra.mxu0 0
    %3398 = vmatprep.subr.bf16.mxu0 0
    %3399 = vmatpush2.bf16.msra.mxu0 0
    %3400 = vmatprep.subr.bf16.mxu0 0
    %3401 = vmatpush2.bf16.msra.mxu0 0
    %3402 = vmatprep.subr.bf16.mxu0 0
    %3403 = vmatpush2.bf16.msra.mxu0 0
    %3404 = vmatprep.subr.bf16.mxu0 0
    %3405 = vmatpush2.bf16.msra.mxu0 0
    %3406 = vmatprep.mubr.bf16.mxu0 0
    %3407 = vmatmul.mubr.bf16.gmra.mxu0 %v3369
    %v3408 = vpop.f32.mrf.mxu0
    %v3409 = vadd.f32 0.0, %v3408
    %v3410 = vpop.f32.mrf.mxu0
    %v3411 = vpop.f32.mrf.mxu0
    %v3412 = vpop.f32.mrf.mxu0
    %3413 = vdwg.mxu0
    %3415 = vrot.lane.b32.xlu0 %v3020, 64
    %v3416 = vpop.permute.xlu0 %3415
    %v3418 = vsel %vm3116, %v3364, 0
    %v3421 = vsel %vm3144, %v3416, 0
    %3423 = vmatprep.subr.bf16.mxu0 0
    %3424 = vmatpush1.bf16.msra.mxu0 0
    %3425 = vmatprep.subr.bf16.mxu0 0
    %3426 = vmatpush1.bf16.msra.mxu0 0
    %3427 = vmatprep.subr.bf16.mxu0 0
    %3428 = vmatpush1.bf16.msra.mxu0 0
    %3429 = vmatprep.subr.bf16.mxu0 0
    %3430 = vmatpush1.bf16.msra.mxu0 0
    %3431 = vmatprep.subr.bf16.mxu0 0
    %3432 = vmatpush1.bf16.msra.mxu0 0
    %3433 = vmatprep.subr.bf16.mxu0 0
    %3434 = vmatpush1.bf16.msra.mxu0 0
    %3435 = vmatprep.subr.bf16.mxu0 0
    %3436 = vmatpush1.bf16.msra.mxu0 0
    %3437 = vmatprep.subr.bf16.mxu0 0
    %3438 = vmatpush1.bf16.msra.mxu0 %v3421
    %3439 = vmatprep.subr.bf16.mxu0 0
    %3440 = vmatpush2.bf16.msra.mxu0 0
    %3441 = vmatprep.subr.bf16.mxu0 0
    %3442 = vmatpush2.bf16.msra.mxu0 0
    %3443 = vmatprep.subr.bf16.mxu0 0
    %3444 = vmatpush2.bf16.msra.mxu0 0
    %3445 = vmatprep.subr.bf16.mxu0 0
    %3446 = vmatpush2.bf16.msra.mxu0 0
    %3447 = vmatprep.subr.bf16.mxu0 0
    %3448 = vmatpush2.bf16.msra.mxu0 0
    %3449 = vmatprep.subr.bf16.mxu0 0
    %3450 = vmatpush2.bf16.msra.mxu0 0
    %3451 = vmatprep.subr.bf16.mxu0 0
    %3452 = vmatpush2.bf16.msra.mxu0 0
    %3453 = vmatprep.subr.bf16.mxu0 0
    %3454 = vmatpush2.bf16.msra.mxu0 0
    %3455 = vmatprep.mubr.bf16.mxu0 0
    %3456 = vmatmul.mubr.bf16.gmra.mxu0 %v3418
    %v3457 = vpop.f32.mrf.mxu0
    %v3458 = vadd.f32 0.0, %v3457
    %v3459 = vpop.f32.mrf.mxu0
    %v3460 = vpop.f32.mrf.mxu0
    %v3461 = vpop.f32.mrf.mxu0
    %3462 = vdwg.mxu0
    %v3463 = vpack.c.bf16 %v3458, %v3409
    %v3464 = vpack.c.bf16 %v943, %v943
    %v3465 = vpack.c.bf16 %v947, %v947
    %v3466 = vpack.c.bf16 %v1929, %v1929
    %v3467 = vpack.c.bf16 %v1933, %v1933
    %v3468 = vpack.c.bf16 %v2915, %v2915
    %v3469 = vpack.c.bf16 %v2919, %v2919
    %v3471 = vsel %vm3021, %v3464, 0
    %v3474 = vsel %vm3021, %v3466, 0
    %3476 = vmatprep.subr.bf16.mxu0 0
    %3477 = vmatpush1.bf16.xpose.msra.mxu0 0
    %3478 = vmatprep.subr.bf16.mxu0 0
    %3479 = vmatpush1.bf16.xpose.msra.mxu0 0
    %3480 = vmatprep.subr.bf16.mxu0 0
    %3481 = vmatpush1.bf16.xpose.msra.mxu0 0
    %3482 = vmatprep.subr.bf16.mxu0 0
    %3483 = vmatpush1.bf16.xpose.msra.mxu0 0
    %3484 = vmatprep.subr.bf16.mxu0 0
    %3485 = vmatpush1.bf16.xpose.msra.mxu0 0
    %3486 = vmatprep.subr.bf16.mxu0 0
    %3487 = vmatpush1.bf16.xpose.msra.mxu0 0
    %3488 = vmatprep.subr.bf16.mxu0 0
    %3489 = vmatpush1.bf16.xpose.msra.mxu0 0
    %3490 = vmatprep.subr.bf16.mxu0 0
    %3491 = vmatpush1.bf16.xpose.msra.mxu0 %v3474
    %3492 = vmatprep.subr.bf16.mxu0 0
    %3493 = vmatpush2.bf16.xpose.msra.mxu0 0
    %3494 = vmatprep.subr.bf16.mxu0 0
    %3495 = vmatpush2.bf16.xpose.msra.mxu0 0
    %3496 = vmatprep.subr.bf16.mxu0 0
    %3497 = vmatpush2.bf16.xpose.msra.mxu0 0
    %3498 = vmatprep.subr.bf16.mxu0 0
    %3499 = vmatpush2.bf16.xpose.msra.mxu0 0
    %3500 = vmatprep.subr.bf16.mxu0 0
    %3501 = vmatpush2.bf16.xpose.msra.mxu0 0
    %3502 = vmatprep.subr.bf16.mxu0 0
    %3503 = vmatpush2.bf16.xpose.msra.mxu0 0
    %3504 = vmatprep.subr.bf16.mxu0 0
    %3505 = vmatpush2.bf16.xpose.msra.mxu0 0
    %3506 = vmatprep.subr.bf16.mxu0 0
    %3507 = vmatpush2.bf16.xpose.msra.mxu0 0
    %3508 = vmatprep.mubr.bf16.mxu0 0
    %3509 = vmatmul.mubr.bf16.gmra.mxu0 %v3471
    %v3510 = vpop.f32.mrf.mxu0
    %v3511 = vadd.f32 0.0, %v3510
    %v3512 = vpop.f32.mrf.mxu0
    %v3513 = vpop.f32.mrf.mxu0
    %v3514 = vpop.f32.mrf.mxu0
    %3515 = vdwg.mxu0
    %v3517 = vsel %vm3021, %v3465, 0
    %v3520 = vsel %vm3021, %v3467, 0
    %3522 = vmatprep.subr.bf16.mxu0 0
    %3523 = vmatpush1.bf16.xpose.msra.mxu0 0
    %3524 = vmatprep.subr.bf16.mxu0 0
    %3525 = vmatpush1.bf16.xpose.msra.mxu0 0
    %3526 = vmatprep.subr.bf16.mxu0 0
    %3527 = vmatpush1.bf16.xpose.msra.mxu0 0
    %3528 = vmatprep.subr.bf16.mxu0 0
    %3529 = vmatpush1.bf16.xpose.msra.mxu0 0
    %3530 = vmatprep.subr.bf16.mxu0 0
    %3531 = vmatpush1.bf16.xpose.msra.mxu0 0
    %3532 = vmatprep.subr.bf16.mxu0 0
    %3533 = vmatpush1.bf16.xpose.msra.mxu0 0
    %3534 = vmatprep.subr.bf16.mxu0 0
    %3535 = vmatpush1.bf16.xpose.msra.mxu0 0
    %3536 = vmatprep.subr.bf16.mxu0 0
    %3537 = vmatpush1.bf16.xpose.msra.mxu0 %v3520
    %3538 = vmatprep.subr.bf16.mxu0 0
    %3539 = vmatpush2.bf16.xpose.msra.mxu0 0
    %3540 = vmatprep.subr.bf16.mxu0 0
    %3541 = vmatpush2.bf16.xpose.msra.mxu0 0
    %3542 = vmatprep.subr.bf16.mxu0 0
    %3543 = vmatpush2.bf16.xpose.msra.mxu0 0
    %3544 = vmatprep.subr.bf16.mxu0 0
    %3545 = vmatpush2.bf16.xpose.msra.mxu0 0
    %3546 = vmatprep.subr.bf16.mxu0 0
    %3547 = vmatpush2.bf16.xpose.msra.mxu0 0
    %3548 = vmatprep.subr.bf16.mxu0 0
    %3549 = vmatpush2.bf16.xpose.msra.mxu0 0
    %3550 = vmatprep.subr.bf16.mxu0 0
    %3551 = vmatpush2.bf16.xpose.msra.mxu0 0
    %3552 = vmatprep.subr.bf16.mxu0 0
    %3553 = vmatpush2.bf16.xpose.msra.mxu0 0
    %3554 = vmatprep.mubr.bf16.mxu0 0
    %3555 = vmatmul.mubr.bf16.gmra.mxu0 %v3517
    %v3556 = vpop.f32.mrf.mxu0
    %v3557 = vadd.f32 0.0, %v3556
    %v3558 = vpop.f32.mrf.mxu0
    %v3559 = vpop.f32.mrf.mxu0
    %v3560 = vpop.f32.mrf.mxu0
    %3561 = vdwg.mxu0
    %v3562 = vsel %vm3013, -1e+09, %v3511
    %v3563 = vsel %vm3014, -1e+09, %v3557
    %v3564 = vsel %vm3116, %v3562, -inf
    %3565 = vmax.xlane.f32.xlu0 %v3564
    %v3566 = vpop.xlane.xlu0 %3565
    %v3567 = vsel %vm3116, %v3563, -inf
    %3568 = vmax.xlane.f32.xlu0 %v3567
    %v3569 = vpop.xlane.xlu0 %3568
    %v3570 = vsub.f32 %v3562, %v3566
    %v3571 = vsub.f32 %v3563, %v3569
    %v3572 = vmul.f32 %v3570, 1.442695
    %v3573 = vpow.pop %v3572
    %v3574 = vmul.f32 %v3571, 1.442695
    %v3575 = vpow.pop %v3574
    %v3576 = vsel %vm3116, %v3573, 0.0
    %3577 = vadd.xlane.f32.xlu0 %v3576
    %v3578 = vpop.xlane.xlu0 %3577
    %v3579 = vsel %vm3116, %v3575, 0.0
    %3580 = vadd.xlane.f32.xlu0 %v3579
    %v3581 = vpop.xlane.xlu0 %3580
    %v3582 = vrcp.pop %v3578
    %v3583 = vrcp.pop %v3581
    %v3584 = vmul.f32 %v3573, %v3582
    %v3585 = vmul.f32 %v3575, %v3583
    %v3586 = vpack.c.bf16 %v3584, %v3584
    %v3587 = vpack.c.bf16 %v3585, %v3585
    %v3589 = vsel %vm3116, %v3586, 0
    %v3592 = vsel %vm3144, %v3468, 0
    %3594 = vmatprep.subr.bf16.mxu0 0
    %3595 = vmatpush1.bf16.msra.mxu0 0
    %3596 = vmatprep.subr.bf16.mxu0 0
    %3597 = vmatpush1.bf16.msra.mxu0 0
    %3598 = vmatprep.subr.bf16.mxu0 0
    %3599 = vmatpush1.bf16.msra.mxu0 0
    %3600 = vmatprep.subr.bf16.mxu0 0
    %3601 = vmatpush1.bf16.msra.mxu0 0
    %3602 = vmatprep.subr.bf16.mxu0 0
    %3603 = vmatpush1.bf16.msra.mxu0 0
    %3604 = vmatprep.subr.bf16.mxu0 0
    %3605 = vmatpush1.bf16.msra.mxu0 0
    %3606 = vmatprep.subr.bf16.mxu0 0
    %3607 = vmatpush1.bf16.msra.mxu0 0
    %3608 = vmatprep.subr.bf16.mxu0 0
    %3609 = vmatpush1.bf16.msra.mxu0 %v3592
    %3610 = vmatprep.subr.bf16.mxu0 0
    %3611 = vmatpush2.bf16.msra.mxu0 0
    %3612 = vmatprep.subr.bf16.mxu0 0
    %3613 = vmatpush2.bf16.msra.mxu0 0
    %3614 = vmatprep.subr.bf16.mxu0 0
    %3615 = vmatpush2.bf16.msra.mxu0 0
    %3616 = vmatprep.subr.bf16.mxu0 0
    %3617 = vmatpush2.bf16.msra.mxu0 0
    %3618 = vmatprep.subr.bf16.mxu0 0
    %3619 = vmatpush2.bf16.msra.mxu0 0
    %3620 = vmatprep.subr.bf16.mxu0 0
    %3621 = vmatpush2.bf16.msra.mxu0 0
    %3622 = vmatprep.subr.bf16.mxu0 0
    %3623 = vmatpush2.bf16.msra.mxu0 0
    %3624 = vmatprep.subr.bf16.mxu0 0
    %3625 = vmatpush2.bf16.msra.mxu0 0
    %3626 = vmatprep.mubr.bf16.mxu0 0
    %3627 = vmatmul.mubr.bf16.gmra.mxu0 %v3589
    %v3628 = vpop.f32.mrf.mxu0
    %v3629 = vadd.f32 0.0, %v3628
    %v3630 = vpop.f32.mrf.mxu0
    %v3631 = vpop.f32.mrf.mxu0
    %v3632 = vpop.f32.mrf.mxu0
    %3633 = vdwg.mxu0
    %v3635 = vsel %vm3116, %v3587, 0
    %v3638 = vsel %vm3144, %v3469, 0
    %3640 = vmatprep.subr.bf16.mxu0 0
    %3641 = vmatpush1.bf16.msra.mxu0 0
    %3642 = vmatprep.subr.bf16.mxu0 0
    %3643 = vmatpush1.bf16.msra.mxu0 0
    %3644 = vmatprep.subr.bf16.mxu0 0
    %3645 = vmatpush1.bf16.msra.mxu0 0
    %3646 = vmatprep.subr.bf16.mxu0 0
    %3647 = vmatpush1.bf16.msra.mxu0 0
    %3648 = vmatprep.subr.bf16.mxu0 0
    %3649 = vmatpush1.bf16.msra.mxu0 0
    %3650 = vmatprep.subr.bf16.mxu0 0
    %3651 = vmatpush1.bf16.msra.mxu0 0
    %3652 = vmatprep.subr.bf16.mxu0 0
    %3653 = vmatpush1.bf16.msra.mxu0 0
    %3654 = vmatprep.subr.bf16.mxu0 0
    %3655 = vmatpush1.bf16.msra.mxu0 %v3638
    %3656 = vmatprep.subr.bf16.mxu0 0
    %3657 = vmatpush2.bf16.msra.mxu0 0
    %3658 = vmatprep.subr.bf16.mxu0 0
    %3659 = vmatpush2.bf16.msra.mxu0 0
    %3660 = vmatprep.subr.bf16.mxu0 0
    %3661 = vmatpush2.bf16.msra.mxu0 0
    %3662 = vmatprep.subr.bf16.mxu0 0
    %3663 = vmatpush2.bf16.msra.mxu0 0
    %3664 = vmatprep.subr.bf16.mxu0 0
    %3665 = vmatpush2.bf16.msra.mxu0 0
    %3666 = vmatprep.subr.bf16.mxu0 0
    %3667 = vmatpush2.bf16.msra.mxu0 0
    %3668 = vmatprep.subr.bf16.mxu0 0
    %3669 = vmatpush2.bf16.msra.mxu0 0
    %3670 = vmatprep.subr.bf16.mxu0 0
    %3671 = vmatpush2.bf16.msra.mxu0 0
    %3672 = vmatprep.mubr.bf16.mxu0 0
    %3673 = vmatmul.mubr.bf16.gmra.mxu0 %v3635
    %v3674 = vpop.f32.mrf.mxu0
    %v3675 = vadd.f32 0.0, %v3674
    %v3676 = vpop.f32.mrf.mxu0
    %v3677 = vpop.f32.mrf.mxu0
    %v3678 = vpop.f32.mrf.mxu0
    %3679 = vdwg.mxu0
    %v3680 = vpack.c.bf16 %v3675, %v3629
    %3682 = vrot.lane.b32.xlu0 %v3464, 64
    %v3683 = vpop.permute.xlu0 %3682
    %3685 = vrot.lane.b32.xlu0 %v3466, 64
    %v3686 = vpop.permute.xlu0 %3685
    %v3688 = vsel %vm3021, %v3683, 0
    %v3691 = vsel %vm3021, %v3686, 0
    %3693 = vmatprep.subr.bf16.mxu0 0
    %3694 = vmatpush1.bf16.xpose.msra.mxu0 0
    %3695 = vmatprep.subr.bf16.mxu0 0
    %3696 = vmatpush1.bf16.xpose.msra.mxu0 0
    %3697 = vmatprep.subr.bf16.mxu0 0
    %3698 = vmatpush1.bf16.xpose.msra.mxu0 0
    %3699 = vmatprep.subr.bf16.mxu0 0
    %3700 = vmatpush1.bf16.xpose.msra.mxu0 0
    %3701 = vmatprep.subr.bf16.mxu0 0
    %3702 = vmatpush1.bf16.xpose.msra.mxu0 0
    %3703 = vmatprep.subr.bf16.mxu0 0
    %3704 = vmatpush1.bf16.xpose.msra.mxu0 0
    %3705 = vmatprep.subr.bf16.mxu0 0
    %3706 = vmatpush1.bf16.xpose.msra.mxu0 0
    %3707 = vmatprep.subr.bf16.mxu0 0
    %3708 = vmatpush1.bf16.xpose.msra.mxu0 %v3691
    %3709 = vmatprep.subr.bf16.mxu0 0
    %3710 = vmatpush2.bf16.xpose.msra.mxu0 0
    %3711 = vmatprep.subr.bf16.mxu0 0
    %3712 = vmatpush2.bf16.xpose.msra.mxu0 0
    %3713 = vmatprep.subr.bf16.mxu0 0
    %3714 = vmatpush2.bf16.xpose.msra.mxu0 0
    %3715 = vmatprep.subr.bf16.mxu0 0
    %3716 = vmatpush2.bf16.xpose.msra.mxu0 0
    %3717 = vmatprep.subr.bf16.mxu0 0
    %3718 = vmatpush2.bf16.xpose.msra.mxu0 0
    %3719 = vmatprep.subr.bf16.mxu0 0
    %3720 = vmatpush2.bf16.xpose.msra.mxu0 0
    %3721 = vmatprep.subr.bf16.mxu0 0
    %3722 = vmatpush2.bf16.xpose.msra.mxu0 0
    %3723 = vmatprep.subr.bf16.mxu0 0
    %3724 = vmatpush2.bf16.xpose.msra.mxu0 0
    %3725 = vmatprep.mubr.bf16.mxu0 0
    %3726 = vmatmul.mubr.bf16.gmra.mxu0 %v3688
    %v3727 = vpop.f32.mrf.mxu0
    %v3728 = vadd.f32 0.0, %v3727
    %v3729 = vpop.f32.mrf.mxu0
    %v3730 = vpop.f32.mrf.mxu0
    %v3731 = vpop.f32.mrf.mxu0
    %3732 = vdwg.mxu0
    %3734 = vrot.lane.b32.xlu0 %v3465, 64
    %v3735 = vpop.permute.xlu0 %3734
    %3737 = vrot.lane.b32.xlu0 %v3467, 64
    %v3738 = vpop.permute.xlu0 %3737
    %v3740 = vsel %vm3021, %v3735, 0
    %v3743 = vsel %vm3021, %v3738, 0
    %3745 = vmatprep.subr.bf16.mxu0 0
    %3746 = vmatpush1.bf16.xpose.msra.mxu0 0
    %3747 = vmatprep.subr.bf16.mxu0 0
    %3748 = vmatpush1.bf16.xpose.msra.mxu0 0
    %3749 = vmatprep.subr.bf16.mxu0 0
    %3750 = vmatpush1.bf16.xpose.msra.mxu0 0
    %3751 = vmatprep.subr.bf16.mxu0 0
    %3752 = vmatpush1.bf16.xpose.msra.mxu0 0
    %3753 = vmatprep.subr.bf16.mxu0 0
    %3754 = vmatpush1.bf16.xpose.msra.mxu0 0
    %3755 = vmatprep.subr.bf16.mxu0 0
    %3756 = vmatpush1.bf16.xpose.msra.mxu0 0
    %3757 = vmatprep.subr.bf16.mxu0 0
    %3758 = vmatpush1.bf16.xpose.msra.mxu0 0
    %3759 = vmatprep.subr.bf16.mxu0 0
    %3760 = vmatpush1.bf16.xpose.msra.mxu0 %v3743
    %3761 = vmatprep.subr.bf16.mxu0 0
    %3762 = vmatpush2.bf16.xpose.msra.mxu0 0
    %3763 = vmatprep.subr.bf16.mxu0 0
    %3764 = vmatpush2.bf16.xpose.msra.mxu0 0
    %3765 = vmatprep.subr.bf16.mxu0 0
    %3766 = vmatpush2.bf16.xpose.msra.mxu0 0
    %3767 = vmatprep.subr.bf16.mxu0 0
    %3768 = vmatpush2.bf16.xpose.msra.mxu0 0
    %3769 = vmatprep.subr.bf16.mxu0 0
    %3770 = vmatpush2.bf16.xpose.msra.mxu0 0
    %3771 = vmatprep.subr.bf16.mxu0 0
    %3772 = vmatpush2.bf16.xpose.msra.mxu0 0
    %3773 = vmatprep.subr.bf16.mxu0 0
    %3774 = vmatpush2.bf16.xpose.msra.mxu0 0
    %3775 = vmatprep.subr.bf16.mxu0 0
    %3776 = vmatpush2.bf16.xpose.msra.mxu0 0
    %3777 = vmatprep.mubr.bf16.mxu0 0
    %3778 = vmatmul.mubr.bf16.gmra.mxu0 %v3740
    %v3779 = vpop.f32.mrf.mxu0
    %v3780 = vadd.f32 0.0, %v3779
    %v3781 = vpop.f32.mrf.mxu0
    %v3782 = vpop.f32.mrf.mxu0
    %v3783 = vpop.f32.mrf.mxu0
    %3784 = vdwg.mxu0
    %v3785 = vsel %vm3013, -1e+09, %v3728
    %v3786 = vsel %vm3014, -1e+09, %v3780
    %v3787 = vsel %vm3116, %v3785, -inf
    %3788 = vmax.xlane.f32.xlu0 %v3787
    %v3789 = vpop.xlane.xlu0 %3788
    %v3790 = vsel %vm3116, %v3786, -inf
    %3791 = vmax.xlane.f32.xlu0 %v3790
    %v3792 = vpop.xlane.xlu0 %3791
    %v3793 = vsub.f32 %v3785, %v3789
    %v3794 = vsub.f32 %v3786, %v3792
    %v3795 = vmul.f32 %v3793, 1.442695
    %v3796 = vpow.pop %v3795
    %v3797 = vmul.f32 %v3794, 1.442695
    %v3798 = vpow.pop %v3797
    %v3799 = vsel %vm3116, %v3796, 0.0
    %3800 = vadd.xlane.f32.xlu0 %v3799
    %v3801 = vpop.xlane.xlu0 %3800
    %v3802 = vsel %vm3116, %v3798, 0.0
    %3803 = vadd.xlane.f32.xlu0 %v3802
    %v3804 = vpop.xlane.xlu0 %3803
    %v3805 = vrcp.pop %v3801
    %v3806 = vrcp.pop %v3804
    %v3807 = vmul.f32 %v3796, %v3805
    %v3808 = vmul.f32 %v3798, %v3806
    %v3809 = vpack.c.bf16 %v3807, %v3807
    %v3810 = vpack.c.bf16 %v3808, %v3808
    %3812 = vrot.lane.b32.xlu0 %v3468, 64
    %v3813 = vpop.permute.xlu0 %3812
    %v3815 = vsel %vm3116, %v3809, 0
    %v3818 = vsel %vm3144, %v3813, 0
    %3820 = vmatprep.subr.bf16.mxu0 0
    %3821 = vmatpush1.bf16.msra.mxu0 0
    %3822 = vmatprep.subr.bf16.mxu0 0
    %3823 = vmatpush1.bf16.msra.mxu0 0
    %3824 = vmatprep.subr.bf16.mxu0 0
    %3825 = vmatpush1.bf16.msra.mxu0 0
    %3826 = vmatprep.subr.bf16.mxu0 0
    %3827 = vmatpush1.bf16.msra.mxu0 0
    %3828 = vmatprep.subr.bf16.mxu0 0
    %3829 = vmatpush1.bf16.msra.mxu0 0
    %3830 = vmatprep.subr.bf16.mxu0 0
    %3831 = vmatpush1.bf16.msra.mxu0 0
    %3832 = vmatprep.subr.bf16.mxu0 0
    %3833 = vmatpush1.bf16.msra.mxu0 0
    %3834 = vmatprep.subr.bf16.mxu0 0
    %3835 = vmatpush1.bf16.msra.mxu0 %v3818
    %3836 = vmatprep.subr.bf16.mxu0 0
    %3837 = vmatpush2.bf16.msra.mxu0 0
    %3838 = vmatprep.subr.bf16.mxu0 0
    %3839 = vmatpush2.bf16.msra.mxu0 0
    %3840 = vmatprep.subr.bf16.mxu0 0
    %3841 = vmatpush2.bf16.msra.mxu0 0
    %3842 = vmatprep.subr.bf16.mxu0 0
    %3843 = vmatpush2.bf16.msra.mxu0 0
    %3844 = vmatprep.subr.bf16.mxu0 0
    %3845 = vmatpush2.bf16.msra.mxu0 0
    %3846 = vmatprep.subr.bf16.mxu0 0
    %3847 = vmatpush2.bf16.msra.mxu0 0
    %3848 = vmatprep.subr.bf16.mxu0 0
    %3849 = vmatpush2.bf16.msra.mxu0 0
    %3850 = vmatprep.subr.bf16.mxu0 0
    %3851 = vmatpush2.bf16.msra.mxu0 0
    %3852 = vmatprep.mubr.bf16.mxu0 0
    %3853 = vmatmul.mubr.bf16.gmra.mxu0 %v3815
    %v3854 = vpop.f32.mrf.mxu0
    %v3855 = vadd.f32 0.0, %v3854
    %v3856 = vpop.f32.mrf.mxu0
    %v3857 = vpop.f32.mrf.mxu0
    %v3858 = vpop.f32.mrf.mxu0
    %3859 = vdwg.mxu0
    %3861 = vrot.lane.b32.xlu0 %v3469, 64
    %v3862 = vpop.permute.xlu0 %3861
    %v3864 = vsel %vm3116, %v3810, 0
    %v3867 = vsel %vm3144, %v3862, 0
    %3869 = vmatprep.subr.bf16.mxu0 0
    %3870 = vmatpush1.bf16.msra.mxu0 0
    %3871 = vmatprep.subr.bf16.mxu0 0
    %3872 = vmatpush1.bf16.msra.mxu0 0
    %3873 = vmatprep.subr.bf16.mxu0 0
    %3874 = vmatpush1.bf16.msra.mxu0 0
    %3875 = vmatprep.subr.bf16.mxu0 0
    %3876 = vmatpush1.bf16.msra.mxu0 0
    %3877 = vmatprep.subr.bf16.mxu0 0
    %3878 = vmatpush1.bf16.msra.mxu0 0
    %3879 = vmatprep.subr.bf16.mxu0 0
    %3880 = vmatpush1.bf16.msra.mxu0 0
    %3881 = vmatprep.subr.bf16.mxu0 0
    %3882 = vmatpush1.bf16.msra.mxu0 0
    %3883 = vmatprep.subr.bf16.mxu0 0
    %3884 = vmatpush1.bf16.msra.mxu0 %v3867
    %3885 = vmatprep.subr.bf16.mxu0 0
    %3886 = vmatpush2.bf16.msra.mxu0 0
    %3887 = vmatprep.subr.bf16.mxu0 0
    %3888 = vmatpush2.bf16.msra.mxu0 0
    %3889 = vmatprep.subr.bf16.mxu0 0
    %3890 = vmatpush2.bf16.msra.mxu0 0
    %3891 = vmatprep.subr.bf16.mxu0 0
    %3892 = vmatpush2.bf16.msra.mxu0 0
    %3893 = vmatprep.subr.bf16.mxu0 0
    %3894 = vmatpush2.bf16.msra.mxu0 0
    %3895 = vmatprep.subr.bf16.mxu0 0
    %3896 = vmatpush2.bf16.msra.mxu0 0
    %3897 = vmatprep.subr.bf16.mxu0 0
    %3898 = vmatpush2.bf16.msra.mxu0 0
    %3899 = vmatprep.subr.bf16.mxu0 0
    %3900 = vmatpush2.bf16.msra.mxu0 0
    %3901 = vmatprep.mubr.bf16.mxu0 0
    %3902 = vmatmul.mubr.bf16.gmra.mxu0 %v3864
    %v3903 = vpop.f32.mrf.mxu0
    %v3904 = vadd.f32 0.0, %v3903
    %v3905 = vpop.f32.mrf.mxu0
    %v3906 = vpop.f32.mrf.mxu0
    %v3907 = vpop.f32.mrf.mxu0
    %3908 = vdwg.mxu0
    %v3909 = vpack.c.bf16 %v3904, %v3855
    %v3910 = vpack.c.bf16 %v1027, %v1027
    %v3911 = vpack.c.bf16 %v1031, %v1031
    %v3912 = vpack.c.bf16 %v2013, %v2013
    %v3913 = vpack.c.bf16 %v2017, %v2017
    %v3914 = vpack.c.bf16 %v2999, %v2999
    %v3915 = vpack.c.bf16 %v3003, %v3003
    %v3917 = vsel %vm3021, %v3910, 0
    %v3920 = vsel %vm3021, %v3912, 0
    %3922 = vmatprep.subr.bf16.mxu0 0
    %3923 = vmatpush1.bf16.xpose.msra.mxu0 0
    %3924 = vmatprep.subr.bf16.mxu0 0
    %3925 = vmatpush1.bf16.xpose.msra.mxu0 0
    %3926 = vmatprep.subr.bf16.mxu0 0
    %3927 = vmatpush1.bf16.xpose.msra.mxu0 0
    %3928 = vmatprep.subr.bf16.mxu0 0
    %3929 = vmatpush1.bf16.xpose.msra.mxu0 0
    %3930 = vmatprep.subr.bf16.mxu0 0
    %3931 = vmatpush1.bf16.xpose.msra.mxu0 0
    %3932 = vmatprep.subr.bf16.mxu0 0
    %3933 = vmatpush1.bf16.xpose.msra.mxu0 0
    %3934 = vmatprep.subr.bf16.mxu0 0
    %3935 = vmatpush1.bf16.xpose.msra.mxu0 0
    %3936 = vmatprep.subr.bf16.mxu0 0
    %3937 = vmatpush1.bf16.xpose.msra.mxu0 %v3920
    %3938 = vmatprep.subr.bf16.mxu0 0
    %3939 = vmatpush2.bf16.xpose.msra.mxu0 0
    %3940 = vmatprep.subr.bf16.mxu0 0
    %3941 = vmatpush2.bf16.xpose.msra.mxu0 0
    %3942 = vmatprep.subr.bf16.mxu0 0
    %3943 = vmatpush2.bf16.xpose.msra.mxu0 0
    %3944 = vmatprep.subr.bf16.mxu0 0
    %3945 = vmatpush2.bf16.xpose.msra.mxu0 0
    %3946 = vmatprep.subr.bf16.mxu0 0
    %3947 = vmatpush2.bf16.xpose.msra.mxu0 0
    %3948 = vmatprep.subr.bf16.mxu0 0
    %3949 = vmatpush2.bf16.xpose.msra.mxu0 0
    %3950 = vmatprep.subr.bf16.mxu0 0
    %3951 = vmatpush2.bf16.xpose.msra.mxu0 0
    %3952 = vmatprep.subr.bf16.mxu0 0
    %3953 = vmatpush2.bf16.xpose.msra.mxu0 0
    %3954 = vmatprep.mubr.bf16.mxu0 0
    %3955 = vmatmul.mubr.bf16.gmra.mxu0 %v3917
    %v3956 = vpop.f32.mrf.mxu0
    %v3957 = vadd.f32 0.0, %v3956
    %v3958 = vpop.f32.mrf.mxu0
    %v3959 = vpop.f32.mrf.mxu0
    %v3960 = vpop.f32.mrf.mxu0
    %3961 = vdwg.mxu0
    %v3963 = vsel %vm3021, %v3911, 0
    %v3966 = vsel %vm3021, %v3913, 0
    %3968 = vmatprep.subr.bf16.mxu0 0
    %3969 = vmatpush1.bf16.xpose.msra.mxu0 0
    %3970 = vmatprep.subr.bf16.mxu0 0
    %3971 = vmatpush1.bf16.xpose.msra.mxu0 0
    %3972 = vmatprep.subr.bf16.mxu0 0
    %3973 = vmatpush1.bf16.xpose.msra.mxu0 0
    %3974 = vmatprep.subr.bf16.mxu0 0
    %3975 = vmatpush1.bf16.xpose.msra.mxu0 0
    %3976 = vmatprep.subr.bf16.mxu0 0
    %3977 = vmatpush1.bf16.xpose.msra.mxu0 0
    %3978 = vmatprep.subr.bf16.mxu0 0
    %3979 = vmatpush1.bf16.xpose.msra.mxu0 0
    %3980 = vmatprep.subr.bf16.mxu0 0
    %3981 = vmatpush1.bf16.xpose.msra.mxu0 0
    %3982 = vmatprep.subr.bf16.mxu0 0
    %3983 = vmatpush1.bf16.xpose.msra.mxu0 %v3966
    %3984 = vmatprep.subr.bf16.mxu0 0
    %3985 = vmatpush2.bf16.xpose.msra.mxu0 0
    %3986 = vmatprep.subr.bf16.mxu0 0
    %3987 = vmatpush2.bf16.xpose.msra.mxu0 0
    %3988 = vmatprep.subr.bf16.mxu0 0
    %3989 = vmatpush2.bf16.xpose.msra.mxu0 0
    %3990 = vmatprep.subr.bf16.mxu0 0
    %3991 = vmatpush2.bf16.xpose.msra.mxu0 0
    %3992 = vmatprep.subr.bf16.mxu0 0
    %3993 = vmatpush2.bf16.xpose.msra.mxu0 0
    %3994 = vmatprep.subr.bf16.mxu0 0
    %3995 = vmatpush2.bf16.xpose.msra.mxu0 0
    %3996 = vmatprep.subr.bf16.mxu0 0
    %3997 = vmatpush2.bf16.xpose.msra.mxu0 0
    %3998 = vmatprep.subr.bf16.mxu0 0
    %3999 = vmatpush2.bf16.xpose.msra.mxu0 0
    %4000 = vmatprep.mubr.bf16.mxu0 0
    %4001 = vmatmul.mubr.bf16.gmra.mxu0 %v3963
    %v4002 = vpop.f32.mrf.mxu0
    %v4003 = vadd.f32 0.0, %v4002
    %v4004 = vpop.f32.mrf.mxu0
    %v4005 = vpop.f32.mrf.mxu0
    %v4006 = vpop.f32.mrf.mxu0
    %4007 = vdwg.mxu0
    %v4008 = vsel %vm3013, -1e+09, %v3957
    %v4009 = vsel %vm3014, -1e+09, %v4003
    %v4010 = vsel %vm3116, %v4008, -inf
    %4011 = vmax.xlane.f32.xlu0 %v4010
    %v4012 = vpop.xlane.xlu0 %4011
    %v4013 = vsel %vm3116, %v4009, -inf
    %4014 = vmax.xlane.f32.xlu0 %v4013
    %v4015 = vpop.xlane.xlu0 %4014
    %v4016 = vsub.f32 %v4008, %v4012
    %v4017 = vsub.f32 %v4009, %v4015
    %v4018 = vmul.f32 %v4016, 1.442695
    %v4019 = vpow.pop %v4018
    %v4020 = vmul.f32 %v4017, 1.442695
    %v4021 = vpow.pop %v4020
    %v4022 = vsel %vm3116, %v4019, 0.0
    %4023 = vadd.xlane.f32.xlu0 %v4022
    %v4024 = vpop.xlane.xlu0 %4023
    %v4025 = vsel %vm3116, %v4021, 0.0
    %4026 = vadd.xlane.f32.xlu0 %v4025
    %v4027 = vpop.xlane.xlu0 %4026
    %v4028 = vrcp.pop %v4024
    %v4029 = vrcp.pop %v4027
    %v4030 = vmul.f32 %v4019, %v4028
    %v4031 = vmul.f32 %v4021, %v4029
    %v4032 = vpack.c.bf16 %v4030, %v4030
    %v4033 = vpack.c.bf16 %v4031, %v4031
    %v4035 = vsel %vm3116, %v4032, 0
    %v4038 = vsel %vm3144, %v3914, 0
    %4040 = vmatprep.subr.bf16.mxu0 0
    %4041 = vmatpush1.bf16.msra.mxu0 0
    %4042 = vmatprep.subr.bf16.mxu0 0
    %4043 = vmatpush1.bf16.msra.mxu0 0
    %4044 = vmatprep.subr.bf16.mxu0 0
    %4045 = vmatpush1.bf16.msra.mxu0 0
    %4046 = vmatprep.subr.bf16.mxu0 0
    %4047 = vmatpush1.bf16.msra.mxu0 0
    %4048 = vmatprep.subr.bf16.mxu0 0
    %4049 = vmatpush1.bf16.msra.mxu0 0
    %4050 = vmatprep.subr.bf16.mxu0 0
    %4051 = vmatpush1.bf16.msra.mxu0 0
    %4052 = vmatprep.subr.bf16.mxu0 0
    %4053 = vmatpush1.bf16.msra.mxu0 0
    %4054 = vmatprep.subr.bf16.mxu0 0
    %4055 = vmatpush1.bf16.msra.mxu0 %v4038
    %4056 = vmatprep.subr.bf16.mxu0 0
    %4057 = vmatpush2.bf16.msra.mxu0 0
    %4058 = vmatprep.subr.bf16.mxu0 0
    %4059 = vmatpush2.bf16.msra.mxu0 0
    %4060 = vmatprep.subr.bf16.mxu0 0
    %4061 = vmatpush2.bf16.msra.mxu0 0
    %4062 = vmatprep.subr.bf16.mxu0 0
    %4063 = vmatpush2.bf16.msra.mxu0 0
    %4064 = vmatprep.subr.bf16.mxu0 0
    %4065 = vmatpush2.bf16.msra.mxu0 0
    %4066 = vmatprep.subr.bf16.mxu0 0
    %4067 = vmatpush2.bf16.msra.mxu0 0
    %4068 = vmatprep.subr.bf16.mxu0 0
    %4069 = vmatpush2.bf16.msra.mxu0 0
    %4070 = vmatprep.subr.bf16.mxu0 0
    %4071 = vmatpush2.bf16.msra.mxu0 0
    %4072 = vmatprep.mubr.bf16.mxu0 0
    %4073 = vmatmul.mubr.bf16.gmra.mxu0 %v4035
    %v4074 = vpop.f32.mrf.mxu0
    %v4075 = vadd.f32 0.0, %v4074
    %v4076 = vpop.f32.mrf.mxu0
    %v4077 = vpop.f32.mrf.mxu0
    %v4078 = vpop.f32.mrf.mxu0
    %4079 = vdwg.mxu0
    %v4081 = vsel %vm3116, %v4033, 0
    %v4084 = vsel %vm3144, %v3915, 0
    %4086 = vmatprep.subr.bf16.mxu0 0
    %4087 = vmatpush1.bf16.msra.mxu0 0
    %4088 = vmatprep.subr.bf16.mxu0 0
    %4089 = vmatpush1.bf16.msra.mxu0 0
    %4090 = vmatprep.subr.bf16.mxu0 0
    %4091 = vmatpush1.bf16.msra.mxu0 0
    %4092 = vmatprep.subr.bf16.mxu0 0
    %4093 = vmatpush1.bf16.msra.mxu0 0
    %4094 = vmatprep.subr.bf16.mxu0 0
    %4095 = vmatpush1.bf16.msra.mxu0 0
    %4096 = vmatprep.subr.bf16.mxu0 0
    %4097 = vmatpush1.bf16.msra.mxu0 0
    %4098 = vmatprep.subr.bf16.mxu0 0
    %4099 = vmatpush1.bf16.msra.mxu0 0
    %4100 = vmatprep.subr.bf16.mxu0 0
    %4101 = vmatpush1.bf16.msra.mxu0 %v4084
    %4102 = vmatprep.subr.bf16.mxu0 0
    %4103 = vmatpush2.bf16.msra.mxu0 0
    %4104 = vmatprep.subr.bf16.mxu0 0
    %4105 = vmatpush2.bf16.msra.mxu0 0
    %4106 = vmatprep.subr.bf16.mxu0 0
    %4107 = vmatpush2.bf16.msra.mxu0 0
    %4108 = vmatprep.subr.bf16.mxu0 0
    %4109 = vmatpush2.bf16.msra.mxu0 0
    %4110 = vmatprep.subr.bf16.mxu0 0
    %4111 = vmatpush2.bf16.msra.mxu0 0
    %4112 = vmatprep.subr.bf16.mxu0 0
    %4113 = vmatpush2.bf16.msra.mxu0 0
    %4114 = vmatprep.subr.bf16.mxu0 0
    %4115 = vmatpush2.bf16.msra.mxu0 0
    %4116 = vmatprep.subr.bf16.mxu0 0
    %4117 = vmatpush2.bf16.msra.mxu0 0
    %4118 = vmatprep.mubr.bf16.mxu0 0
    %4119 = vmatmul.mubr.bf16.gmra.mxu0 %v4081
    %v4120 = vpop.f32.mrf.mxu0
    %v4121 = vadd.f32 0.0, %v4120
    %v4122 = vpop.f32.mrf.mxu0
    %v4123 = vpop.f32.mrf.mxu0
    %v4124 = vpop.f32.mrf.mxu0
    %4125 = vdwg.mxu0
    %v4126 = vpack.c.bf16 %v4121, %v4075
    %4128 = vrot.lane.b32.xlu0 %v3910, 64
    %v4129 = vpop.permute.xlu0 %4128
    %4131 = vrot.lane.b32.xlu0 %v3912, 64
    %v4132 = vpop.permute.xlu0 %4131
    %v4134 = vsel %vm3021, %v4129, 0
    %v4137 = vsel %vm3021, %v4132, 0
    %4139 = vmatprep.subr.bf16.mxu0 0
    %4140 = vmatpush1.bf16.xpose.msra.mxu0 0
    %4141 = vmatprep.subr.bf16.mxu0 0
    %4142 = vmatpush1.bf16.xpose.msra.mxu0 0
    %4143 = vmatprep.subr.bf16.mxu0 0
    %4144 = vmatpush1.bf16.xpose.msra.mxu0 0
    %4145 = vmatprep.subr.bf16.mxu0 0
    %4146 = vmatpush1.bf16.xpose.msra.mxu0 0
    %4147 = vmatprep.subr.bf16.mxu0 0
    %4148 = vmatpush1.bf16.xpose.msra.mxu0 0
    %4149 = vmatprep.subr.bf16.mxu0 0
    %4150 = vmatpush1.bf16.xpose.msra.mxu0 0
    %4151 = vmatprep.subr.bf16.mxu0 0
    %4152 = vmatpush1.bf16.xpose.msra.mxu0 0
    %4153 = vmatprep.subr.bf16.mxu0 0
    %4154 = vmatpush1.bf16.xpose.msra.mxu0 %v4137
    %4155 = vmatprep.subr.bf16.mxu0 0
    %4156 = vmatpush2.bf16.xpose.msra.mxu0 0
    %4157 = vmatprep.subr.bf16.mxu0 0
    %4158 = vmatpush2.bf16.xpose.msra.mxu0 0
    %4159 = vmatprep.subr.bf16.mxu0 0
    %4160 = vmatpush2.bf16.xpose.msra.mxu0 0
    %4161 = vmatprep.subr.bf16.mxu0 0
    %4162 = vmatpush2.bf16.xpose.msra.mxu0 0
    %4163 = vmatprep.subr.bf16.mxu0 0
    %4164 = vmatpush2.bf16.xpose.msra.mxu0 0
    %4165 = vmatprep.subr.bf16.mxu0 0
    %4166 = vmatpush2.bf16.xpose.msra.mxu0 0
    %4167 = vmatprep.subr.bf16.mxu0 0
    %4168 = vmatpush2.bf16.xpose.msra.mxu0 0
    %4169 = vmatprep.subr.bf16.mxu0 0
    %4170 = vmatpush2.bf16.xpose.msra.mxu0 0
    %4171 = vmatprep.mubr.bf16.mxu0 0
    %4172 = vmatmul.mubr.bf16.gmra.mxu0 %v4134
    %v4173 = vpop.f32.mrf.mxu0
    %v4174 = vadd.f32 0.0, %v4173
    %v4175 = vpop.f32.mrf.mxu0
    %v4176 = vpop.f32.mrf.mxu0
    %v4177 = vpop.f32.mrf.mxu0
    %4178 = vdwg.mxu0
    %4180 = vrot.lane.b32.xlu0 %v3911, 64
    %v4181 = vpop.permute.xlu0 %4180
    %4183 = vrot.lane.b32.xlu0 %v3913, 64
    %v4184 = vpop.permute.xlu0 %4183
    %v4186 = vsel %vm3021, %v4181, 0
    %v4189 = vsel %vm3021, %v4184, 0
    %4191 = vmatprep.subr.bf16.mxu0 0
    %4192 = vmatpush1.bf16.xpose.msra.mxu0 0
    %4193 = vmatprep.subr.bf16.mxu0 0
    %4194 = vmatpush1.bf16.xpose.msra.mxu0 0
    %4195 = vmatprep.subr.bf16.mxu0 0
    %4196 = vmatpush1.bf16.xpose.msra.mxu0 0
    %4197 = vmatprep.subr.bf16.mxu0 0
    %4198 = vmatpush1.bf16.xpose.msra.mxu0 0
    %4199 = vmatprep.subr.bf16.mxu0 0
    %4200 = vmatpush1.bf16.xpose.msra.mxu0 0
    %4201 = vmatprep.subr.bf16.mxu0 0
    %4202 = vmatpush1.bf16.xpose.msra.mxu0 0
    %4203 = vmatprep.subr.bf16.mxu0 0
    %4204 = vmatpush1.bf16.xpose.msra.mxu0 0
    %4205 = vmatprep.subr.bf16.mxu0 0
    %4206 = vmatpush1.bf16.xpose.msra.mxu0 %v4189
    %4207 = vmatprep.subr.bf16.mxu0 0
    %4208 = vmatpush2.bf16.xpose.msra.mxu0 0
    %4209 = vmatprep.subr.bf16.mxu0 0
    %4210 = vmatpush2.bf16.xpose.msra.mxu0 0
    %4211 = vmatprep.subr.bf16.mxu0 0
    %4212 = vmatpush2.bf16.xpose.msra.mxu0 0
    %4213 = vmatprep.subr.bf16.mxu0 0
    %4214 = vmatpush2.bf16.xpose.msra.mxu0 0
    %4215 = vmatprep.subr.bf16.mxu0 0
    %4216 = vmatpush2.bf16.xpose.msra.mxu0 0
    %4217 = vmatprep.subr.bf16.mxu0 0
    %4218 = vmatpush2.bf16.xpose.msra.mxu0 0
    %4219 = vmatprep.subr.bf16.mxu0 0
    %4220 = vmatpush2.bf16.xpose.msra.mxu0 0
    %4221 = vmatprep.subr.bf16.mxu0 0
    %4222 = vmatpush2.bf16.xpose.msra.mxu0 0
    %4223 = vmatprep.mubr.bf16.mxu0 0
    %4224 = vmatmul.mubr.bf16.gmra.mxu0 %v4186
    %v4225 = vpop.f32.mrf.mxu0
    %v4226 = vadd.f32 0.0, %v4225
    %v4227 = vpop.f32.mrf.mxu0
    %v4228 = vpop.f32.mrf.mxu0
    %v4229 = vpop.f32.mrf.mxu0
    %4230 = vdwg.mxu0
    %v4231 = vsel %vm3013, -1e+09, %v4174
    %v4232 = vsel %vm3014, -1e+09, %v4226
    %v4233 = vsel %vm3116, %v4231, -inf
    %4234 = vmax.xlane.f32.xlu0 %v4233
    %v4235 = vpop.xlane.xlu0 %4234
    %v4236 = vsel %vm3116, %v4232, -inf
    %4237 = vmax.xlane.f32.xlu0 %v4236
    %v4238 = vpop.xlane.xlu0 %4237
    %v4239 = vsub.f32 %v4231, %v4235
    %v4240 = vsub.f32 %v4232, %v4238
    %v4241 = vmul.f32 %v4239, 1.442695
    %v4242 = vpow.pop %v4241
    %v4243 = vmul.f32 %v4240, 1.442695
    %v4244 = vpow.pop %v4243
    %v4245 = vsel %vm3116, %v4242, 0.0
    %4246 = vadd.xlane.f32.xlu0 %v4245
    %v4247 = vpop.xlane.xlu0 %4246
    %v4248 = vsel %vm3116, %v4244, 0.0
    %4249 = vadd.xlane.f32.xlu0 %v4248
    %v4250 = vpop.xlane.xlu0 %4249
    %v4251 = vrcp.pop %v4247
    %v4252 = vrcp.pop %v4250
    %v4253 = vmul.f32 %v4242, %v4251
    %v4254 = vmul.f32 %v4244, %v4252
    %v4255 = vpack.c.bf16 %v4253, %v4253
    %v4256 = vpack.c.bf16 %v4254, %v4254
    %4258 = vrot.lane.b32.xlu0 %v3914, 64
    %v4259 = vpop.permute.xlu0 %4258
    %v4261 = vsel %vm3116, %v4255, 0
    %v4264 = vsel %vm3144, %v4259, 0
    %4266 = vmatprep.subr.bf16.mxu0 0
    %4267 = vmatpush1.bf16.msra.mxu0 0
    %4268 = vmatprep.subr.bf16.mxu0 0
    %4269 = vmatpush1.bf16.msra.mxu0 0
    %4270 = vmatprep.subr.bf16.mxu0 0
    %4271 = vmatpush1.bf16.msra.mxu0 0
    %4272 = vmatprep.subr.bf16.mxu0 0
    %4273 = vmatpush1.bf16.msra.mxu0 0
    %4274 = vmatprep.subr.bf16.mxu0 0
    %4275 = vmatpush1.bf16.msra.mxu0 0
    %4276 = vmatprep.subr.bf16.mxu0 0
    %4277 = vmatpush1.bf16.msra.mxu0 0
    %4278 = vmatprep.subr.bf16.mxu0 0
    %4279 = vmatpush1.bf16.msra.mxu0 0
    %4280 = vmatprep.subr.bf16.mxu0 0
    %4281 = vmatpush1.bf16.msra.mxu0 %v4264
    %4282 = vmatprep.subr.bf16.mxu0 0
    %4283 = vmatpush2.bf16.msra.mxu0 0
    %4284 = vmatprep.subr.bf16.mxu0 0
    %4285 = vmatpush2.bf16.msra.mxu0 0
    %4286 = vmatprep.subr.bf16.mxu0 0
    %4287 = vmatpush2.bf16.msra.mxu0 0
    %4288 = vmatprep.subr.bf16.mxu0 0
    %4289 = vmatpush2.bf16.msra.mxu0 0
    %4290 = vmatprep.subr.bf16.mxu0 0
    %4291 = vmatpush2.bf16.msra.mxu0 0
    %4292 = vmatprep.subr.bf16.mxu0 0
    %4293 = vmatpush2.bf16.msra.mxu0 0
    %4294 = vmatprep.subr.bf16.mxu0 0
    %4295 = vmatpush2.bf16.msra.mxu0 0
    %4296 = vmatprep.subr.bf16.mxu0 0
    %4297 = vmatpush2.bf16.msra.mxu0 0
    %4298 = vmatprep.mubr.bf16.mxu0 0
    %4299 = vmatmul.mubr.bf16.gmra.mxu0 %v4261
    %v4300 = vpop.f32.mrf.mxu0
    %v4301 = vadd.f32 0.0, %v4300
    %v4302 = vpop.f32.mrf.mxu0
    %v4303 = vpop.f32.mrf.mxu0
    %v4304 = vpop.f32.mrf.mxu0
    %4305 = vdwg.mxu0
    %4307 = vrot.lane.b32.xlu0 %v3915, 64
    %v4308 = vpop.permute.xlu0 %4307
    %v4310 = vsel %vm3116, %v4256, 0
    %v4313 = vsel %vm3144, %v4308, 0
    %4315 = vmatprep.subr.bf16.mxu0 0
    %4316 = vmatpush1.bf16.msra.mxu0 0
    %4317 = vmatprep.subr.bf16.mxu0 0
    %4318 = vmatpush1.bf16.msra.mxu0 0
    %4319 = vmatprep.subr.bf16.mxu0 0
    %4320 = vmatpush1.bf16.msra.mxu0 0
    %4321 = vmatprep.subr.bf16.mxu0 0
    %4322 = vmatpush1.bf16.msra.mxu0 0
    %4323 = vmatprep.subr.bf16.mxu0 0
    %4324 = vmatpush1.bf16.msra.mxu0 0
    %4325 = vmatprep.subr.bf16.mxu0 0
    %4326 = vmatpush1.bf16.msra.mxu0 0
    %4327 = vmatprep.subr.bf16.mxu0 0
    %4328 = vmatpush1.bf16.msra.mxu0 0
    %4329 = vmatprep.subr.bf16.mxu0 0
    %4330 = vmatpush1.bf16.msra.mxu0 %v4313
    %4331 = vmatprep.subr.bf16.mxu0 0
    %4332 = vmatpush2.bf16.msra.mxu0 0
    %4333 = vmatprep.subr.bf16.mxu0 0
    %4334 = vmatpush2.bf16.msra.mxu0 0
    %4335 = vmatprep.subr.bf16.mxu0 0
    %4336 = vmatpush2.bf16.msra.mxu0 0
    %4337 = vmatprep.subr.bf16.mxu0 0
    %4338 = vmatpush2.bf16.msra.mxu0 0
    %4339 = vmatprep.subr.bf16.mxu0 0
    %4340 = vmatpush2.bf16.msra.mxu0 0
    %4341 = vmatprep.subr.bf16.mxu0 0
    %4342 = vmatpush2.bf16.msra.mxu0 0
    %4343 = vmatprep.subr.bf16.mxu0 0
    %4344 = vmatpush2.bf16.msra.mxu0 0
    %4345 = vmatprep.subr.bf16.mxu0 0
    %4346 = vmatpush2.bf16.msra.mxu0 0
    %4347 = vmatprep.mubr.bf16.mxu0 0
    %4348 = vmatmul.mubr.bf16.gmra.mxu0 %v4310
    %v4349 = vpop.f32.mrf.mxu0
    %v4350 = vadd.f32 0.0, %v4349
    %v4351 = vpop.f32.mrf.mxu0
    %v4352 = vpop.f32.mrf.mxu0
    %v4353 = vpop.f32.mrf.mxu0
    %4354 = vdwg.mxu0
    %v4355 = vpack.c.bf16 %v4350, %v4301
    %v4356 = vpack.c.bf16 %v1029, %v1029
    %v4357 = vpack.c.bf16 %v1033, %v1033
    %v4358 = vpack.c.bf16 %v2015, %v2015
    %v4359 = vpack.c.bf16 %v2019, %v2019
    %v4360 = vpack.c.bf16 %v3001, %v3001
    %v4361 = vpack.c.bf16 %v3005, %v3005
    %v4363 = vsel %vm3021, %v4356, 0
    %v4366 = vsel %vm3021, %v4358, 0
    %4368 = vmatprep.subr.bf16.mxu0 0
    %4369 = vmatpush1.bf16.xpose.msra.mxu0 0
    %4370 = vmatprep.subr.bf16.mxu0 0
    %4371 = vmatpush1.bf16.xpose.msra.mxu0 0
    %4372 = vmatprep.subr.bf16.mxu0 0
    %4373 = vmatpush1.bf16.xpose.msra.mxu0 0
    %4374 = vmatprep.subr.bf16.mxu0 0
    %4375 = vmatpush1.bf16.xpose.msra.mxu0 0
    %4376 = vmatprep.subr.bf16.mxu0 0
    %4377 = vmatpush1.bf16.xpose.msra.mxu0 0
    %4378 = vmatprep.subr.bf16.mxu0 0
    %4379 = vmatpush1.bf16.xpose.msra.mxu0 0
    %4380 = vmatprep.subr.bf16.mxu0 0
    %4381 = vmatpush1.bf16.xpose.msra.mxu0 0
    %4382 = vmatprep.subr.bf16.mxu0 0
    %4383 = vmatpush1.bf16.xpose.msra.mxu0 %v4366
    %4384 = vmatprep.subr.bf16.mxu0 0
    %4385 = vmatpush2.bf16.xpose.msra.mxu0 0
    %4386 = vmatprep.subr.bf16.mxu0 0
    %4387 = vmatpush2.bf16.xpose.msra.mxu0 0
    %4388 = vmatprep.subr.bf16.mxu0 0
    %4389 = vmatpush2.bf16.xpose.msra.mxu0 0
    %4390 = vmatprep.subr.bf16.mxu0 0
    %4391 = vmatpush2.bf16.xpose.msra.mxu0 0
    %4392 = vmatprep.subr.bf16.mxu0 0
    %4393 = vmatpush2.bf16.xpose.msra.mxu0 0
    %4394 = vmatprep.subr.bf16.mxu0 0
    %4395 = vmatpush2.bf16.xpose.msra.mxu0 0
    %4396 = vmatprep.subr.bf16.mxu0 0
    %4397 = vmatpush2.bf16.xpose.msra.mxu0 0
    %4398 = vmatprep.subr.bf16.mxu0 0
    %4399 = vmatpush2.bf16.xpose.msra.mxu0 0
    %4400 = vmatprep.mubr.bf16.mxu0 0
    %4401 = vmatmul.mubr.bf16.gmra.mxu0 %v4363
    %v4402 = vpop.f32.mrf.mxu0
    %v4403 = vadd.f32 0.0, %v4402
    %v4404 = vpop.f32.mrf.mxu0
    %v4405 = vpop.f32.mrf.mxu0
    %v4406 = vpop.f32.mrf.mxu0
    %4407 = vdwg.mxu0
    %v4409 = vsel %vm3021, %v4357, 0
    %v4412 = vsel %vm3021, %v4359, 0
    %4414 = vmatprep.subr.bf16.mxu0 0
    %4415 = vmatpush1.bf16.xpose.msra.mxu0 0
    %4416 = vmatprep.subr.bf16.mxu0 0
    %4417 = vmatpush1.bf16.xpose.msra.mxu0 0
    %4418 = vmatprep.subr.bf16.mxu0 0
    %4419 = vmatpush1.bf16.xpose.msra.mxu0 0
    %4420 = vmatprep.subr.bf16.mxu0 0
    %4421 = vmatpush1.bf16.xpose.msra.mxu0 0
    %4422 = vmatprep.subr.bf16.mxu0 0
    %4423 = vmatpush1.bf16.xpose.msra.mxu0 0
    %4424 = vmatprep.subr.bf16.mxu0 0
    %4425 = vmatpush1.bf16.xpose.msra.mxu0 0
    %4426 = vmatprep.subr.bf16.mxu0 0
    %4427 = vmatpush1.bf16.xpose.msra.mxu0 0
    %4428 = vmatprep.subr.bf16.mxu0 0
    %4429 = vmatpush1.bf16.xpose.msra.mxu0 %v4412
    %4430 = vmatprep.subr.bf16.mxu0 0
    %4431 = vmatpush2.bf16.xpose.msra.mxu0 0
    %4432 = vmatprep.subr.bf16.mxu0 0
    %4433 = vmatpush2.bf16.xpose.msra.mxu0 0
    %4434 = vmatprep.subr.bf16.mxu0 0
    %4435 = vmatpush2.bf16.xpose.msra.mxu0 0
    %4436 = vmatprep.subr.bf16.mxu0 0
    %4437 = vmatpush2.bf16.xpose.msra.mxu0 0
    %4438 = vmatprep.subr.bf16.mxu0 0
    %4439 = vmatpush2.bf16.xpose.msra.mxu0 0
    %4440 = vmatprep.subr.bf16.mxu0 0
    %4441 = vmatpush2.bf16.xpose.msra.mxu0 0
    %4442 = vmatprep.subr.bf16.mxu0 0
    %4443 = vmatpush2.bf16.xpose.msra.mxu0 0
    %4444 = vmatprep.subr.bf16.mxu0 0
    %4445 = vmatpush2.bf16.xpose.msra.mxu0 0
    %4446 = vmatprep.mubr.bf16.mxu0 0
    %4447 = vmatmul.mubr.bf16.gmra.mxu0 %v4409
    %v4448 = vpop.f32.mrf.mxu0
    %v4449 = vadd.f32 0.0, %v4448
    %v4450 = vpop.f32.mrf.mxu0
    %v4451 = vpop.f32.mrf.mxu0
    %v4452 = vpop.f32.mrf.mxu0
    %4453 = vdwg.mxu0
    %v4454 = vsel %vm3013, -1e+09, %v4403
    %v4455 = vsel %vm3014, -1e+09, %v4449
    %v4456 = vsel %vm3116, %v4454, -inf
    %4457 = vmax.xlane.f32.xlu0 %v4456
    %v4458 = vpop.xlane.xlu0 %4457
    %v4459 = vsel %vm3116, %v4455, -inf
    %4460 = vmax.xlane.f32.xlu0 %v4459
    %v4461 = vpop.xlane.xlu0 %4460
    %v4462 = vsub.f32 %v4454, %v4458
    %v4463 = vsub.f32 %v4455, %v4461
    %v4464 = vmul.f32 %v4462, 1.442695
    %v4465 = vpow.pop %v4464
    %v4466 = vmul.f32 %v4463, 1.442695
    %v4467 = vpow.pop %v4466
    %v4468 = vsel %vm3116, %v4465, 0.0
    %4469 = vadd.xlane.f32.xlu0 %v4468
    %v4470 = vpop.xlane.xlu0 %4469
    %v4471 = vsel %vm3116, %v4467, 0.0
    %4472 = vadd.xlane.f32.xlu0 %v4471
    %v4473 = vpop.xlane.xlu0 %4472
    %v4474 = vrcp.pop %v4470
    %v4475 = vrcp.pop %v4473
    %v4476 = vmul.f32 %v4465, %v4474
    %v4477 = vmul.f32 %v4467, %v4475
    %v4478 = vpack.c.bf16 %v4476, %v4476
    %v4479 = vpack.c.bf16 %v4477, %v4477
    %v4481 = vsel %vm3116, %v4478, 0
    %v4484 = vsel %vm3144, %v4360, 0
    %4486 = vmatprep.subr.bf16.mxu0 0
    %4487 = vmatpush1.bf16.msra.mxu0 0
    %4488 = vmatprep.subr.bf16.mxu0 0
    %4489 = vmatpush1.bf16.msra.mxu0 0
    %4490 = vmatprep.subr.bf16.mxu0 0
    %4491 = vmatpush1.bf16.msra.mxu0 0
    %4492 = vmatprep.subr.bf16.mxu0 0
    %4493 = vmatpush1.bf16.msra.mxu0 0
    %4494 = vmatprep.subr.bf16.mxu0 0
    %4495 = vmatpush1.bf16.msra.mxu0 0
    %4496 = vmatprep.subr.bf16.mxu0 0
    %4497 = vmatpush1.bf16.msra.mxu0 0
    %4498 = vmatprep.subr.bf16.mxu0 0
    %4499 = vmatpush1.bf16.msra.mxu0 0
    %4500 = vmatprep.subr.bf16.mxu0 0
    %4501 = vmatpush1.bf16.msra.mxu0 %v4484
    %4502 = vmatprep.subr.bf16.mxu0 0
    %4503 = vmatpush2.bf16.msra.mxu0 0
    %4504 = vmatprep.subr.bf16.mxu0 0
    %4505 = vmatpush2.bf16.msra.mxu0 0
    %4506 = vmatprep.subr.bf16.mxu0 0
    %4507 = vmatpush2.bf16.msra.mxu0 0
    %4508 = vmatprep.subr.bf16.mxu0 0
    %4509 = vmatpush2.bf16.msra.mxu0 0
    %4510 = vmatprep.subr.bf16.mxu0 0
    %4511 = vmatpush2.bf16.msra.mxu0 0
    %4512 = vmatprep.subr.bf16.mxu0 0
    %4513 = vmatpush2.bf16.msra.mxu0 0
    %4514 = vmatprep.subr.bf16.mxu0 0
    %4515 = vmatpush2.bf16.msra.mxu0 0
    %4516 = vmatprep.subr.bf16.mxu0 0
    %4517 = vmatpush2.bf16.msra.mxu0 0
    %4518 = vmatprep.mubr.bf16.mxu0 0
    %4519 = vmatmul.mubr.bf16.gmra.mxu0 %v4481
    %v4520 = vpop.f32.mrf.mxu0
    %v4521 = vadd.f32 0.0, %v4520
    %v4522 = vpop.f32.mrf.mxu0
    %v4523 = vpop.f32.mrf.mxu0
    %v4524 = vpop.f32.mrf.mxu0
    %4525 = vdwg.mxu0
    %v4527 = vsel %vm3116, %v4479, 0
    %v4530 = vsel %vm3144, %v4361, 0
    %4532 = vmatprep.subr.bf16.mxu0 0
    %4533 = vmatpush1.bf16.msra.mxu0 0
    %4534 = vmatprep.subr.bf16.mxu0 0
    %4535 = vmatpush1.bf16.msra.mxu0 0
    %4536 = vmatprep.subr.bf16.mxu0 0
    %4537 = vmatpush1.bf16.msra.mxu0 0
    %4538 = vmatprep.subr.bf16.mxu0 0
    %4539 = vmatpush1.bf16.msra.mxu0 0
    %4540 = vmatprep.subr.bf16.mxu0 0
    %4541 = vmatpush1.bf16.msra.mxu0 0
    %4542 = vmatprep.subr.bf16.mxu0 0
    %4543 = vmatpush1.bf16.msra.mxu0 0
    %4544 = vmatprep.subr.bf16.mxu0 0
    %4545 = vmatpush1.bf16.msra.mxu0 0
    %4546 = vmatprep.subr.bf16.mxu0 0
    %4547 = vmatpush1.bf16.msra.mxu0 %v4530
    %4548 = vmatprep.subr.bf16.mxu0 0
    %4549 = vmatpush2.bf16.msra.mxu0 0
    %4550 = vmatprep.subr.bf16.mxu0 0
    %4551 = vmatpush2.bf16.msra.mxu0 0
    %4552 = vmatprep.subr.bf16.mxu0 0
    %4553 = vmatpush2.bf16.msra.mxu0 0
    %4554 = vmatprep.subr.bf16.mxu0 0
    %4555 = vmatpush2.bf16.msra.mxu0 0
    %4556 = vmatprep.subr.bf16.mxu0 0
    %4557 = vmatpush2.bf16.msra.mxu0 0
    %4558 = vmatprep.subr.bf16.mxu0 0
    %4559 = vmatpush2.bf16.msra.mxu0 0
    %4560 = vmatprep.subr.bf16.mxu0 0
    %4561 = vmatpush2.bf16.msra.mxu0 0
    %4562 = vmatprep.subr.bf16.mxu0 0
    %4563 = vmatpush2.bf16.msra.mxu0 0
    %4564 = vmatprep.mubr.bf16.mxu0 0
    %4565 = vmatmul.mubr.bf16.gmra.mxu0 %v4527
    %v4566 = vpop.f32.mrf.mxu0
    %v4567 = vadd.f32 0.0, %v4566
    %v4568 = vpop.f32.mrf.mxu0
    %v4569 = vpop.f32.mrf.mxu0
    %v4570 = vpop.f32.mrf.mxu0
    %4571 = vdwg.mxu0
    %v4572 = vpack.c.bf16 %v4567, %v4521
    %4574 = vrot.lane.b32.xlu0 %v4356, 64
    %v4575 = vpop.permute.xlu0 %4574
    %4577 = vrot.lane.b32.xlu0 %v4358, 64
    %v4578 = vpop.permute.xlu0 %4577
    %v4580 = vsel %vm3021, %v4575, 0
    %v4583 = vsel %vm3021, %v4578, 0
    %4585 = vmatprep.subr.bf16.mxu0 0
    %4586 = vmatpush1.bf16.xpose.msra.mxu0 0
    %4587 = vmatprep.subr.bf16.mxu0 0
    %4588 = vmatpush1.bf16.xpose.msra.mxu0 0
    %4589 = vmatprep.subr.bf16.mxu0 0
    %4590 = vmatpush1.bf16.xpose.msra.mxu0 0
    %4591 = vmatprep.subr.bf16.mxu0 0
    %4592 = vmatpush1.bf16.xpose.msra.mxu0 0
    %4593 = vmatprep.subr.bf16.mxu0 0
    %4594 = vmatpush1.bf16.xpose.msra.mxu0 0
    %4595 = vmatprep.subr.bf16.mxu0 0
    %4596 = vmatpush1.bf16.xpose.msra.mxu0 0
    %4597 = vmatprep.subr.bf16.mxu0 0
    %4598 = vmatpush1.bf16.xpose.msra.mxu0 0
    %4599 = vmatprep.subr.bf16.mxu0 0
    %4600 = vmatpush1.bf16.xpose.msra.mxu0 %v4583
    %4601 = vmatprep.subr.bf16.mxu0 0
    %4602 = vmatpush2.bf16.xpose.msra.mxu0 0
    %4603 = vmatprep.subr.bf16.mxu0 0
    %4604 = vmatpush2.bf16.xpose.msra.mxu0 0
    %4605 = vmatprep.subr.bf16.mxu0 0
    %4606 = vmatpush2.bf16.xpose.msra.mxu0 0
    %4607 = vmatprep.subr.bf16.mxu0 0
    %4608 = vmatpush2.bf16.xpose.msra.mxu0 0
    %4609 = vmatprep.subr.bf16.mxu0 0
    %4610 = vmatpush2.bf16.xpose.msra.mxu0 0
    %4611 = vmatprep.subr.bf16.mxu0 0
    %4612 = vmatpush2.bf16.xpose.msra.mxu0 0
    %4613 = vmatprep.subr.bf16.mxu0 0
    %4614 = vmatpush2.bf16.xpose.msra.mxu0 0
    %4615 = vmatprep.subr.bf16.mxu0 0
    %4616 = vmatpush2.bf16.xpose.msra.mxu0 0
    %4617 = vmatprep.mubr.bf16.mxu0 0
    %4618 = vmatmul.mubr.bf16.gmra.mxu0 %v4580
    %v4619 = vpop.f32.mrf.mxu0
    %v4620 = vadd.f32 0.0, %v4619
    %v4621 = vpop.f32.mrf.mxu0
    %v4622 = vpop.f32.mrf.mxu0
    %v4623 = vpop.f32.mrf.mxu0
    %4624 = vdwg.mxu0
    %4626 = vrot.lane.b32.xlu0 %v4357, 64
    %v4627 = vpop.permute.xlu0 %4626
    %4629 = vrot.lane.b32.xlu0 %v4359, 64
    %v4630 = vpop.permute.xlu0 %4629
    %v4632 = vsel %vm3021, %v4627, 0
    %v4635 = vsel %vm3021, %v4630, 0
    %4637 = vmatprep.subr.bf16.mxu0 0
    %4638 = vmatpush1.bf16.xpose.msra.mxu0 0
    %4639 = vmatprep.subr.bf16.mxu0 0
    %4640 = vmatpush1.bf16.xpose.msra.mxu0 0
    %4641 = vmatprep.subr.bf16.mxu0 0
    %4642 = vmatpush1.bf16.xpose.msra.mxu0 0
    %4643 = vmatprep.subr.bf16.mxu0 0
    %4644 = vmatpush1.bf16.xpose.msra.mxu0 0
    %4645 = vmatprep.subr.bf16.mxu0 0
    %4646 = vmatpush1.bf16.xpose.msra.mxu0 0
    %4647 = vmatprep.subr.bf16.mxu0 0
    %4648 = vmatpush1.bf16.xpose.msra.mxu0 0
    %4649 = vmatprep.subr.bf16.mxu0 0
    %4650 = vmatpush1.bf16.xpose.msra.mxu0 0
    %4651 = vmatprep.subr.bf16.mxu0 0
    %4652 = vmatpush1.bf16.xpose.msra.mxu0 %v4635
    %4653 = vmatprep.subr.bf16.mxu0 0
    %4654 = vmatpush2.bf16.xpose.msra.mxu0 0
    %4655 = vmatprep.subr.bf16.mxu0 0
    %4656 = vmatpush2.bf16.xpose.msra.mxu0 0
    %4657 = vmatprep.subr.bf16.mxu0 0
    %4658 = vmatpush2.bf16.xpose.msra.mxu0 0
    %4659 = vmatprep.subr.bf16.mxu0 0
    %4660 = vmatpush2.bf16.xpose.msra.mxu0 0
    %4661 = vmatprep.subr.bf16.mxu0 0
    %4662 = vmatpush2.bf16.xpose.msra.mxu0 0
    %4663 = vmatprep.subr.bf16.mxu0 0
    %4664 = vmatpush2.bf16.xpose.msra.mxu0 0
    %4665 = vmatprep.subr.bf16.mxu0 0
    %4666 = vmatpush2.bf16.xpose.msra.mxu0 0
    %4667 = vmatprep.subr.bf16.mxu0 0
    %4668 = vmatpush2.bf16.xpose.msra.mxu0 0
    %4669 = vmatprep.mubr.bf16.mxu0 0
    %4670 = vmatmul.mubr.bf16.gmra.mxu0 %v4632
    %v4671 = vpop.f32.mrf.mxu0
    %v4672 = vadd.f32 0.0, %v4671
    %v4673 = vpop.f32.mrf.mxu0
    %v4674 = vpop.f32.mrf.mxu0
    %v4675 = vpop.f32.mrf.mxu0
    %4676 = vdwg.mxu0
    %v4677 = vsel %vm3013, -1e+09, %v4620
    %v4678 = vsel %vm3014, -1e+09, %v4672
    %v4679 = vsel %vm3116, %v4677, -inf
    %4680 = vmax.xlane.f32.xlu0 %v4679
    %v4681 = vpop.xlane.xlu0 %4680
    %v4682 = vsel %vm3116, %v4678, -inf
    %4683 = vmax.xlane.f32.xlu0 %v4682
    %v4684 = vpop.xlane.xlu0 %4683
    %v4685 = vsub.f32 %v4677, %v4681
    %v4686 = vsub.f32 %v4678, %v4684
    %v4687 = vmul.f32 %v4685, 1.442695
    %v4688 = vpow.pop %v4687
    %v4689 = vmul.f32 %v4686, 1.442695
    %v4690 = vpow.pop %v4689
    %v4691 = vsel %vm3116, %v4688, 0.0
    %4692 = vadd.xlane.f32.xlu0 %v4691
    %v4693 = vpop.xlane.xlu0 %4692
    %v4694 = vsel %vm3116, %v4690, 0.0
    %4695 = vadd.xlane.f32.xlu0 %v4694
    %v4696 = vpop.xlane.xlu0 %4695
    %v4697 = vrcp.pop %v4693
    %v4698 = vrcp.pop %v4696
    %v4699 = vmul.f32 %v4688, %v4697
    %v4700 = vmul.f32 %v4690, %v4698
    %v4701 = vpack.c.bf16 %v4699, %v4699
    %v4702 = vpack.c.bf16 %v4700, %v4700
    %4704 = vrot.lane.b32.xlu0 %v4360, 64
    %v4705 = vpop.permute.xlu0 %4704
    %v4707 = vsel %vm3116, %v4701, 0
    %v4710 = vsel %vm3144, %v4705, 0
    %4712 = vmatprep.subr.bf16.mxu0 0
    %4713 = vmatpush1.bf16.msra.mxu0 0
    %4714 = vmatprep.subr.bf16.mxu0 0
    %4715 = vmatpush1.bf16.msra.mxu0 0
    %4716 = vmatprep.subr.bf16.mxu0 0
    %4717 = vmatpush1.bf16.msra.mxu0 0
    %4718 = vmatprep.subr.bf16.mxu0 0
    %4719 = vmatpush1.bf16.msra.mxu0 0
    %4720 = vmatprep.subr.bf16.mxu0 0
    %4721 = vmatpush1.bf16.msra.mxu0 0
    %4722 = vmatprep.subr.bf16.mxu0 0
    %4723 = vmatpush1.bf16.msra.mxu0 0
    %4724 = vmatprep.subr.bf16.mxu0 0
    %4725 = vmatpush1.bf16.msra.mxu0 0
    %4726 = vmatprep.subr.bf16.mxu0 0
    %4727 = vmatpush1.bf16.msra.mxu0 %v4710
    %4728 = vmatprep.subr.bf16.mxu0 0
    %4729 = vmatpush2.bf16.msra.mxu0 0
    %4730 = vmatprep.subr.bf16.mxu0 0
    %4731 = vmatpush2.bf16.msra.mxu0 0
    %4732 = vmatprep.subr.bf16.mxu0 0
    %4733 = vmatpush2.bf16.msra.mxu0 0
    %4734 = vmatprep.subr.bf16.mxu0 0
    %4735 = vmatpush2.bf16.msra.mxu0 0
    %4736 = vmatprep.subr.bf16.mxu0 0
    %4737 = vmatpush2.bf16.msra.mxu0 0
    %4738 = vmatprep.subr.bf16.mxu0 0
    %4739 = vmatpush2.bf16.msra.mxu0 0
    %4740 = vmatprep.subr.bf16.mxu0 0
    %4741 = vmatpush2.bf16.msra.mxu0 0
    %4742 = vmatprep.subr.bf16.mxu0 0
    %4743 = vmatpush2.bf16.msra.mxu0 0
    %4744 = vmatprep.mubr.bf16.mxu0 0
    %4745 = vmatmul.mubr.bf16.gmra.mxu0 %v4707
    %v4746 = vpop.f32.mrf.mxu0
    %v4747 = vadd.f32 0.0, %v4746
    %v4748 = vpop.f32.mrf.mxu0
    %v4749 = vpop.f32.mrf.mxu0
    %v4750 = vpop.f32.mrf.mxu0
    %4751 = vdwg.mxu0
    %4753 = vrot.lane.b32.xlu0 %v4361, 64
    %v4754 = vpop.permute.xlu0 %4753
    %v4756 = vsel %vm3116, %v4702, 0
    %v4759 = vsel %vm3144, %v4754, 0
    %4761 = vmatprep.subr.bf16.mxu0 0
    %4762 = vmatpush1.bf16.msra.mxu0 0
    %4763 = vmatprep.subr.bf16.mxu0 0
    %4764 = vmatpush1.bf16.msra.mxu0 0
    %4765 = vmatprep.subr.bf16.mxu0 0
    %4766 = vmatpush1.bf16.msra.mxu0 0
    %4767 = vmatprep.subr.bf16.mxu0 0
    %4768 = vmatpush1.bf16.msra.mxu0 0
    %4769 = vmatprep.subr.bf16.mxu0 0
    %4770 = vmatpush1.bf16.msra.mxu0 0
    %4771 = vmatprep.subr.bf16.mxu0 0
    %4772 = vmatpush1.bf16.msra.mxu0 0
    %4773 = vmatprep.subr.bf16.mxu0 0
    %4774 = vmatpush1.bf16.msra.mxu0 0
    %4775 = vmatprep.subr.bf16.mxu0 0
    %4776 = vmatpush1.bf16.msra.mxu0 %v4759
    %4777 = vmatprep.subr.bf16.mxu0 0
    %4778 = vmatpush2.bf16.msra.mxu0 0
    %4779 = vmatprep.subr.bf16.mxu0 0
    %4780 = vmatpush2.bf16.msra.mxu0 0
    %4781 = vmatprep.subr.bf16.mxu0 0
    %4782 = vmatpush2.bf16.msra.mxu0 0
    %4783 = vmatprep.subr.bf16.mxu0 0
    %4784 = vmatpush2.bf16.msra.mxu0 0
    %4785 = vmatprep.subr.bf16.mxu0 0
    %4786 = vmatpush2.bf16.msra.mxu0 0
    %4787 = vmatprep.subr.bf16.mxu0 0
    %4788 = vmatpush2.bf16.msra.mxu0 0
    %4789 = vmatprep.subr.bf16.mxu0 0
    %4790 = vmatpush2.bf16.msra.mxu0 0
    %4791 = vmatprep.subr.bf16.mxu0 0
    %4792 = vmatpush2.bf16.msra.mxu0 0
    %4793 = vmatprep.mubr.bf16.mxu0 0
    %4794 = vmatmul.mubr.bf16.gmra.mxu0 %v4756
    %v4795 = vpop.f32.mrf.mxu0
    %v4796 = vadd.f32 0.0, %v4795
    %v4797 = vpop.f32.mrf.mxu0
    %v4798 = vpop.f32.mrf.mxu0
    %v4799 = vpop.f32.mrf.mxu0
    %4800 = vdwg.mxu0
    %v4801 = vpack.c.bf16 %v4796, %v4747
    %4803 = vrot.lane.b32.xlu0 %v3463, 64
    %v4804 = vpop.permute.xlu0 %4803
    %4806 = vrot.lane.b32.xlu0 %v3909, 64
    %v4807 = vpop.permute.xlu0 %4806
    %4809 = vrot.lane.b32.xlu0 %v4355, 64
    %v4810 = vpop.permute.xlu0 %4809
    %4812 = vrot.lane.b32.xlu0 %v4801, 64
    %v4813 = vpop.permute.xlu0 %4812
    %v4816 = vsel %vm3021, %v3234, %v4804
    %v4820 = vsel %vm3021, %v3680, %v4807
    %v4824 = vsel %vm3021, %v4126, %v4810
    %v4828 = vsel %vm3021, %v4572, %v4813
    %v4830 = vld [vmem:[%s10] sm:$0xff]
    %v4831 = vld [vmem:[%s10 + $0x8] sm:$0xff]
    %v4832 = vld [vmem:[%s10 + $0x10] sm:$0xff]
    %v4833 = vld [vmem:[%s10 + $0x18] sm:$0xff]
    %v4834 = vld [vmem:[%s10 + $0x20] sm:$0xff]
    %v4835 = vld [vmem:[%s10 + $0x28] sm:$0xff]
    %v4836 = vld [vmem:[%s10 + $0x30] sm:$0xff]
    %v4837 = vld [vmem:[%s10 + $0x38] sm:$0xff]
    %v4838 = vld [vmem:[%s10 + $0x40] sm:$0xff]
    %v4839 = vld [vmem:[%s10 + $0x48] sm:$0xff]
    %v4840 = vld [vmem:[%s10 + $0x50] sm:$0xff]
    %v4841 = vld [vmem:[%s10 + $0x58] sm:$0xff]
    %v4842 = vld [vmem:[%s10 + $0x60] sm:$0xff]
    %v4843 = vld [vmem:[%s10 + $0x68] sm:$0xff]
    %v4844 = vld [vmem:[%s10 + $0x70] sm:$0xff]
    %v4845 = vld [vmem:[%s10 + $0x78] sm:$0xff]
    %v4846 = vld [vmem:[%s10 + $0x80] sm:$0xff]
    %v4847 = vld [vmem:[%s10 + $0x88] sm:$0xff]
    %v4848 = vld [vmem:[%s10 + $0x90] sm:$0xff]
    %v4849 = vld [vmem:[%s10 + $0x98] sm:$0xff]
    %v4850 = vld [vmem:[%s10 + $0xa0] sm:$0xff]
    %v4851 = vld [vmem:[%s10 + $0xa8] sm:$0xff]
    %v4852 = vld [vmem:[%s10 + $0xb0] sm:$0xff]
    %v4853 = vld [vmem:[%s10 + $0xb8] sm:$0xff]
    %v4854 = vld [vmem:[%s10 + $0xc0] sm:$0xff]
    %v4855 = vld [vmem:[%s10 + $0xc8] sm:$0xff]
    %v4856 = vld [vmem:[%s10 + $0xd0] sm:$0xff]
    %v4857 = vld [vmem:[%s10 + $0xd8] sm:$0xff]
    %v4858 = vld [vmem:[%s10 + $0xe0] sm:$0xff]
    %v4859 = vld [vmem:[%s10 + $0xe8] sm:$0xff]
    %v4860 = vld [vmem:[%s10 + $0xf0] sm:$0xff]
    %v4861 = vld [vmem:[%s10 + $0xf8] sm:$0xff]
    %v4862 = vld [vmem:[%s10 + $0x100] sm:$0xff]
    %v4863 = vld [vmem:[%s10 + $0x108] sm:$0xff]
    %v4864 = vld [vmem:[%s10 + $0x110] sm:$0xff]
    %v4865 = vld [vmem:[%s10 + $0x118] sm:$0xff]
    %v4866 = vld [vmem:[%s10 + $0x120] sm:$0xff]
    %v4867 = vld [vmem:[%s10 + $0x128] sm:$0xff]
    %v4868 = vld [vmem:[%s10 + $0x130] sm:$0xff]
    %v4869 = vld [vmem:[%s10 + $0x138] sm:$0xff]
    %v4870 = vld [vmem:[%s10 + $0x140] sm:$0xff]
    %v4871 = vld [vmem:[%s10 + $0x148] sm:$0xff]
    %v4872 = vld [vmem:[%s10 + $0x150] sm:$0xff]
    %v4873 = vld [vmem:[%s10 + $0x158] sm:$0xff]
    %v4874 = vld [vmem:[%s10 + $0x160] sm:$0xff]
    %v4875 = vld [vmem:[%s10 + $0x168] sm:$0xff]
    %v4876 = vld [vmem:[%s10 + $0x170] sm:$0xff]
    %v4877 = vld [vmem:[%s10 + $0x178] sm:$0xff]
    %v4878 = vld [vmem:[%s10 + $0x180] sm:$0xff]
    %v4879 = vld [vmem:[%s10 + $0x188] sm:$0xff]
    %v4880 = vld [vmem:[%s10 + $0x190] sm:$0xff]
    %v4881 = vld [vmem:[%s10 + $0x198] sm:$0xff]
    %v4882 = vld [vmem:[%s10 + $0x1a0] sm:$0xff]
    %v4883 = vld [vmem:[%s10 + $0x1a8] sm:$0xff]
    %v4884 = vld [vmem:[%s10 + $0x1b0] sm:$0xff]
    %v4885 = vld [vmem:[%s10 + $0x1b8] sm:$0xff]
    %v4886 = vld [vmem:[%s10 + $0x1c0] sm:$0xff]
    %v4887 = vld [vmem:[%s10 + $0x1c8] sm:$0xff]
    %v4888 = vld [vmem:[%s10 + $0x1d0] sm:$0xff]
    %v4889 = vld [vmem:[%s10 + $0x1d8] sm:$0xff]
    %v4890 = vld [vmem:[%s10 + $0x1e0] sm:$0xff]
    %v4891 = vld [vmem:[%s10 + $0x1e8] sm:$0xff]
    %v4892 = vld [vmem:[%s10 + $0x1f0] sm:$0xff]
    %v4893 = vld [vmem:[%s10 + $0x1f8] sm:$0xff]
    %v4894 = vld [vmem:[%s10 + $0x200] sm:$0xff]
    %v4895 = vld [vmem:[%s10 + $0x208] sm:$0xff]
    %v4896 = vld [vmem:[%s10 + $0x210] sm:$0xff]
    %v4897 = vld [vmem:[%s10 + $0x218] sm:$0xff]
    %v4898 = vld [vmem:[%s10 + $0x220] sm:$0xff]
    %v4899 = vld [vmem:[%s10 + $0x228] sm:$0xff]
    %v4900 = vld [vmem:[%s10 + $0x230] sm:$0xff]
    %v4901 = vld [vmem:[%s10 + $0x238] sm:$0xff]
    %v4902 = vld [vmem:[%s10 + $0x240] sm:$0xff]
    %v4903 = vld [vmem:[%s10 + $0x248] sm:$0xff]
    %v4904 = vld [vmem:[%s10 + $0x250] sm:$0xff]
    %v4905 = vld [vmem:[%s10 + $0x258] sm:$0xff]
    %v4906 = vld [vmem:[%s10 + $0x260] sm:$0xff]
    %v4907 = vld [vmem:[%s10 + $0x268] sm:$0xff]
    %v4908 = vld [vmem:[%s10 + $0x270] sm:$0xff]
    %v4909 = vld [vmem:[%s10 + $0x278] sm:$0xff]
    %v4910 = vld [vmem:[%s10 + $0x280] sm:$0xff]
    %v4911 = vld [vmem:[%s10 + $0x288] sm:$0xff]
    %v4912 = vld [vmem:[%s10 + $0x290] sm:$0xff]
    %v4913 = vld [vmem:[%s10 + $0x298] sm:$0xff]
    %v4914 = vld [vmem:[%s10 + $0x2a0] sm:$0xff]
    %v4915 = vld [vmem:[%s10 + $0x2a8] sm:$0xff]
    %v4916 = vld [vmem:[%s10 + $0x2b0] sm:$0xff]
    %v4917 = vld [vmem:[%s10 + $0x2b8] sm:$0xff]
    %v4918 = vld [vmem:[%s10 + $0x2c0] sm:$0xff]
    %v4919 = vld [vmem:[%s10 + $0x2c8] sm:$0xff]
    %v4920 = vld [vmem:[%s10 + $0x2d0] sm:$0xff]
    %v4921 = vld [vmem:[%s10 + $0x2d8] sm:$0xff]
    %v4922 = vld [vmem:[%s10 + $0x2e0] sm:$0xff]
    %v4923 = vld [vmem:[%s10 + $0x2e8] sm:$0xff]
    %v4924 = vld [vmem:[%s10 + $0x2f0] sm:$0xff]
    %v4925 = vld [vmem:[%s10 + $0x2f8] sm:$0xff]
    %v4926 = vld [vmem:[%s10 + $0x300] sm:$0xff]
    %v4927 = vld [vmem:[%s10 + $0x308] sm:$0xff]
    %v4928 = vld [vmem:[%s10 + $0x310] sm:$0xff]
    %v4929 = vld [vmem:[%s10 + $0x318] sm:$0xff]
    %v4930 = vld [vmem:[%s10 + $0x320] sm:$0xff]
    %v4931 = vld [vmem:[%s10 + $0x328] sm:$0xff]
    %v4932 = vld [vmem:[%s10 + $0x330] sm:$0xff]
    %v4933 = vld [vmem:[%s10 + $0x338] sm:$0xff]
    %v4934 = vld [vmem:[%s10 + $0x340] sm:$0xff]
    %v4935 = vld [vmem:[%s10 + $0x348] sm:$0xff]
    %v4936 = vld [vmem:[%s10 + $0x350] sm:$0xff]
    %v4937 = vld [vmem:[%s10 + $0x358] sm:$0xff]
    %v4938 = vld [vmem:[%s10 + $0x360] sm:$0xff]
    %v4939 = vld [vmem:[%s10 + $0x368] sm:$0xff]
    %v4940 = vld [vmem:[%s10 + $0x370] sm:$0xff]
    %v4941 = vld [vmem:[%s10 + $0x378] sm:$0xff]
    %v4942 = vld [vmem:[%s10 + $0x380] sm:$0xff]
    %v4943 = vld [vmem:[%s10 + $0x388] sm:$0xff]
    %v4944 = vld [vmem:[%s10 + $0x390] sm:$0xff]
    %v4945 = vld [vmem:[%s10 + $0x398] sm:$0xff]
    %v4946 = vld [vmem:[%s10 + $0x3a0] sm:$0xff]
    %v4947 = vld [vmem:[%s10 + $0x3a8] sm:$0xff]
    %v4948 = vld [vmem:[%s10 + $0x3b0] sm:$0xff]
    %v4949 = vld [vmem:[%s10 + $0x3b8] sm:$0xff]
    %v4950 = vld [vmem:[%s10 + $0x3c0] sm:$0xff]
    %v4951 = vld [vmem:[%s10 + $0x3c8] sm:$0xff]
    %v4952 = vld [vmem:[%s10 + $0x3d0] sm:$0xff]
    %v4953 = vld [vmem:[%s10 + $0x3d8] sm:$0xff]
    %v4954 = vld [vmem:[%s10 + $0x3e0] sm:$0xff]
    %v4955 = vld [vmem:[%s10 + $0x3e8] sm:$0xff]
    %v4956 = vld [vmem:[%s10 + $0x3f0] sm:$0xff]
    %v4957 = vld [vmem:[%s10 + $0x3f8] sm:$0xff]
    %v4958 = vld [vmem:[%s11] sm:$0xf]
    %v4960 = vlaneseq
    %v4961 = vshrl.u32 %v4960, 7
    %v4962 = vsub.s32 0, %v4961
    %v4963 = vrot.slane %v4958, %v4962
    %v4964 = vlaneseq
    %v4965 = vshrl.u32 %v4964, 7
    %v4966 = vsub.s32 1, %v4965
    %v4967 = vrot.slane %v4958, %v4966
    %v4968 = vlaneseq
    %v4969 = vshrl.u32 %v4968, 7
    %v4970 = vsub.s32 2, %v4969
    %v4971 = vrot.slane %v4958, %v4970
    %v4972 = vlaneseq
    %v4973 = vshrl.u32 %v4972, 7
    %v4974 = vsub.s32 3, %v4973
    %v4975 = vrot.slane %v4958, %v4974
    %v5108 = vunpack.c.l.b16 %v4830
    %v5109 = vunpack.c.h.b16 %v4830
    %v5110 = vunpack.c.l.b16 %v4831
    %v5111 = vunpack.c.h.b16 %v4831
    %v5112 = vunpack.c.l.b16 %v4832
    %v5113 = vunpack.c.h.b16 %v4832
    %v5114 = vunpack.c.l.b16 %v4833
    %v5115 = vunpack.c.h.b16 %v4833
    %v5116 = vunpack.c.l.b16 %v4834
    %v5117 = vunpack.c.h.b16 %v4834
    %v5118 = vunpack.c.l.b16 %v4835
    %v5119 = vunpack.c.h.b16 %v4835
    %v5120 = vunpack.c.l.b16 %v4836
    %v5121 = vunpack.c.h.b16 %v4836
    %v5122 = vunpack.c.l.b16 %v4837
    %v5123 = vunpack.c.h.b16 %v4837
    %v5124 = vunpack.c.l.b16 %v4838
    %v5125 = vunpack.c.h.b16 %v4838
    %v5126 = vunpack.c.l.b16 %v4839
    %v5127 = vunpack.c.h.b16 %v4839
    %v5128 = vunpack.c.l.b16 %v4840
    %v5129 = vunpack.c.h.b16 %v4840
    %v5130 = vunpack.c.l.b16 %v4841
    %v5131 = vunpack.c.h.b16 %v4841
    %v5132 = vunpack.c.l.b16 %v4842
    %v5133 = vunpack.c.h.b16 %v4842
    %v5134 = vunpack.c.l.b16 %v4843
    %v5135 = vunpack.c.h.b16 %v4843
    %v5136 = vunpack.c.l.b16 %v4844
    %v5137 = vunpack.c.h.b16 %v4844
    %v5138 = vunpack.c.l.b16 %v4845
    %v5139 = vunpack.c.h.b16 %v4845
    %v5140 = vunpack.c.l.b16 %v4846
    %v5141 = vunpack.c.h.b16 %v4846
    %v5142 = vunpack.c.l.b16 %v4847
    %v5143 = vunpack.c.h.b16 %v4847
    %v5144 = vunpack.c.l.b16 %v4848
    %v5145 = vunpack.c.h.b16 %v4848
    %v5146 = vunpack.c.l.b16 %v4849
    %v5147 = vunpack.c.h.b16 %v4849
    %v5148 = vunpack.c.l.b16 %v4850
    %v5149 = vunpack.c.h.b16 %v4850
    %v5150 = vunpack.c.l.b16 %v4851
    %v5151 = vunpack.c.h.b16 %v4851
    %v5152 = vunpack.c.l.b16 %v4852
    %v5153 = vunpack.c.h.b16 %v4852
    %v5154 = vunpack.c.l.b16 %v4853
    %v5155 = vunpack.c.h.b16 %v4853
    %v5156 = vunpack.c.l.b16 %v4854
    %v5157 = vunpack.c.h.b16 %v4854
    %v5158 = vunpack.c.l.b16 %v4855
    %v5159 = vunpack.c.h.b16 %v4855
    %v5160 = vunpack.c.l.b16 %v4856
    %v5161 = vunpack.c.h.b16 %v4856
    %v5162 = vunpack.c.l.b16 %v4857
    %v5163 = vunpack.c.h.b16 %v4857
    %v5164 = vunpack.c.l.b16 %v4858
    %v5165 = vunpack.c.h.b16 %v4858
    %v5166 = vunpack.c.l.b16 %v4859
    %v5167 = vunpack.c.h.b16 %v4859
    %v5168 = vunpack.c.l.b16 %v4860
    %v5169 = vunpack.c.h.b16 %v4860
    %v5170 = vunpack.c.l.b16 %v4861
    %v5171 = vunpack.c.h.b16 %v4861
    %v5172 = vunpack.c.l.b16 %v4862
    %v5173 = vunpack.c.h.b16 %v4862
    %v5174 = vunpack.c.l.b16 %v4863
    %v5175 = vunpack.c.h.b16 %v4863
    %v5176 = vunpack.c.l.b16 %v4864
    %v5177 = vunpack.c.h.b16 %v4864
    %v5178 = vunpack.c.l.b16 %v4865
    %v5179 = vunpack.c.h.b16 %v4865
    %v5180 = vunpack.c.l.b16 %v4866
    %v5181 = vunpack.c.h.b16 %v4866
    %v5182 = vunpack.c.l.b16 %v4867
    %v5183 = vunpack.c.h.b16 %v4867
    %v5184 = vunpack.c.l.b16 %v4868
    %v5185 = vunpack.c.h.b16 %v4868
    %v5186 = vunpack.c.l.b16 %v4869
    %v5187 = vunpack.c.h.b16 %v4869
    %v5188 = vunpack.c.l.b16 %v4870
    %v5189 = vunpack.c.h.b16 %v4870
    %v5190 = vunpack.c.l.b16 %v4871
    %v5191 = vunpack.c.h.b16 %v4871
    %v5192 = vunpack.c.l.b16 %v4872
    %v5193 = vunpack.c.h.b16 %v4872
    %v5194 = vunpack.c.l.b16 %v4873
    %v5195 = vunpack.c.h.b16 %v4873
    %v5196 = vunpack.c.l.b16 %v4874
    %v5197 = vunpack.c.h.b16 %v4874
    %v5198 = vunpack.c.l.b16 %v4875
    %v5199 = vunpack.c.h.b16 %v4875
    %v5200 = vunpack.c.l.b16 %v4876
    %v5201 = vunpack.c.h.b16 %v4876
    %v5202 = vunpack.c.l.b16 %v4877
    %v5203 = vunpack.c.h.b16 %v4877
    %v5204 = vunpack.c.l.b16 %v4878
    %v5205 = vunpack.c.h.b16 %v4878
    %v5206 = vunpack.c.l.b16 %v4879
    %v5207 = vunpack.c.h.b16 %v4879
    %v5208 = vunpack.c.l.b16 %v4880
    %v5209 = vunpack.c.h.b16 %v4880
    %v5210 = vunpack.c.l.b16 %v4881
    %v5211 = vunpack.c.h.b16 %v4881
    %v5212 = vunpack.c.l.b16 %v4882
    %v5213 = vunpack.c.h.b16 %v4882
    %v5214 = vunpack.c.l.b16 %v4883
    %v5215 = vunpack.c.h.b16 %v4883
    %v5216 = vunpack.c.l.b16 %v4884
    %v5217 = vunpack.c.h.b16 %v4884
    %v5218 = vunpack.c.l.b16 %v4885
    %v5219 = vunpack.c.h.b16 %v4885
    %v5220 = vunpack.c.l.b16 %v4886
    %v5221 = vunpack.c.h.b16 %v4886
    %v5222 = vunpack.c.l.b16 %v4887
    %v5223 = vunpack.c.h.b16 %v4887
    %v5224 = vunpack.c.l.b16 %v4888
    %v5225 = vunpack.c.h.b16 %v4888
    %v5226 = vunpack.c.l.b16 %v4889
    %v5227 = vunpack.c.h.b16 %v4889
    %v5228 = vunpack.c.l.b16 %v4890
    %v5229 = vunpack.c.h.b16 %v4890
    %v5230 = vunpack.c.l.b16 %v4891
    %v5231 = vunpack.c.h.b16 %v4891
    %v5232 = vunpack.c.l.b16 %v4892
    %v5233 = vunpack.c.h.b16 %v4892
    %v5234 = vunpack.c.l.b16 %v4893
    %v5235 = vunpack.c.h.b16 %v4893
    %v5236 = vunpack.c.l.b16 %v4894
    %v5237 = vunpack.c.h.b16 %v4894
    %v5238 = vunpack.c.l.b16 %v4895
    %v5239 = vunpack.c.h.b16 %v4895
    %v5240 = vunpack.c.l.b16 %v4896
    %v5241 = vunpack.c.h.b16 %v4896
    %v5242 = vunpack.c.l.b16 %v4897
    %v5243 = vunpack.c.h.b16 %v4897
    %v5244 = vunpack.c.l.b16 %v4898
    %v5245 = vunpack.c.h.b16 %v4898
    %v5246 = vunpack.c.l.b16 %v4899
    %v5247 = vunpack.c.h.b16 %v4899
    %v5248 = vunpack.c.l.b16 %v4900
    %v5249 = vunpack.c.h.b16 %v4900
    %v5250 = vunpack.c.l.b16 %v4901
    %v5251 = vunpack.c.h.b16 %v4901
    %v5252 = vunpack.c.l.b16 %v4902
    %v5253 = vunpack.c.h.b16 %v4902
    %v5254 = vunpack.c.l.b16 %v4903
    %v5255 = vunpack.c.h.b16 %v4903
    %v5256 = vunpack.c.l.b16 %v4904
    %v5257 = vunpack.c.h.b16 %v4904
    %v5258 = vunpack.c.l.b16 %v4905
    %v5259 = vunpack.c.h.b16 %v4905
    %v5260 = vunpack.c.l.b16 %v4906
    %v5261 = vunpack.c.h.b16 %v4906
    %v5262 = vunpack.c.l.b16 %v4907
    %v5263 = vunpack.c.h.b16 %v4907
    %v5264 = vunpack.c.l.b16 %v4908
    %v5265 = vunpack.c.h.b16 %v4908
    %v5266 = vunpack.c.l.b16 %v4909
    %v5267 = vunpack.c.h.b16 %v4909
    %v5268 = vunpack.c.l.b16 %v4910
    %v5269 = vunpack.c.h.b16 %v4910
    %v5270 = vunpack.c.l.b16 %v4911
    %v5271 = vunpack.c.h.b16 %v4911
    %v5272 = vunpack.c.l.b16 %v4912
    %v5273 = vunpack.c.h.b16 %v4912
    %v5274 = vunpack.c.l.b16 %v4913
    %v5275 = vunpack.c.h.b16 %v4913
    %v5276 = vunpack.c.l.b16 %v4914
    %v5277 = vunpack.c.h.b16 %v4914
    %v5278 = vunpack.c.l.b16 %v4915
    %v5279 = vunpack.c.h.b16 %v4915
    %v5280 = vunpack.c.l.b16 %v4916
    %v5281 = vunpack.c.h.b16 %v4916
    %v5282 = vunpack.c.l.b16 %v4917
    %v5283 = vunpack.c.h.b16 %v4917
    %v5284 = vunpack.c.l.b16 %v4918
    %v5285 = vunpack.c.h.b16 %v4918
    %v5286 = vunpack.c.l.b16 %v4919
    %v5287 = vunpack.c.h.b16 %v4919
    %v5288 = vunpack.c.l.b16 %v4920
    %v5289 = vunpack.c.h.b16 %v4920
    %v5290 = vunpack.c.l.b16 %v4921
    %v5291 = vunpack.c.h.b16 %v4921
    %v5292 = vunpack.c.l.b16 %v4922
    %v5293 = vunpack.c.h.b16 %v4922
    %v5294 = vunpack.c.l.b16 %v4923
    %v5295 = vunpack.c.h.b16 %v4923
    %v5296 = vunpack.c.l.b16 %v4924
    %v5297 = vunpack.c.h.b16 %v4924
    %v5298 = vunpack.c.l.b16 %v4925
    %v5299 = vunpack.c.h.b16 %v4925
    %v5300 = vunpack.c.l.b16 %v4926
    %v5301 = vunpack.c.h.b16 %v4926
    %v5302 = vunpack.c.l.b16 %v4927
    %v5303 = vunpack.c.h.b16 %v4927
    %v5304 = vunpack.c.l.b16 %v4928
    %v5305 = vunpack.c.h.b16 %v4928
    %v5306 = vunpack.c.l.b16 %v4929
    %v5307 = vunpack.c.h.b16 %v4929
    %v5308 = vunpack.c.l.b16 %v4930
    %v5309 = vunpack.c.h.b16 %v4930
    %v5310 = vunpack.c.l.b16 %v4931
    %v5311 = vunpack.c.h.b16 %v4931
    %v5312 = vunpack.c.l.b16 %v4932
    %v5313 = vunpack.c.h.b16 %v4932
    %v5314 = vunpack.c.l.b16 %v4933
    %v5315 = vunpack.c.h.b16 %v4933
    %v5316 = vunpack.c.l.b16 %v4934
    %v5317 = vunpack.c.h.b16 %v4934
    %v5318 = vunpack.c.l.b16 %v4935
    %v5319 = vunpack.c.h.b16 %v4935
    %v5320 = vunpack.c.l.b16 %v4936
    %v5321 = vunpack.c.h.b16 %v4936
    %v5322 = vunpack.c.l.b16 %v4937
    %v5323 = vunpack.c.h.b16 %v4937
    %v5324 = vunpack.c.l.b16 %v4938
    %v5325 = vunpack.c.h.b16 %v4938
    %v5326 = vunpack.c.l.b16 %v4939
    %v5327 = vunpack.c.h.b16 %v4939
    %v5328 = vunpack.c.l.b16 %v4940
    %v5329 = vunpack.c.h.b16 %v4940
    %v5330 = vunpack.c.l.b16 %v4941
    %v5331 = vunpack.c.h.b16 %v4941
    %v5332 = vunpack.c.l.b16 %v4942
    %v5333 = vunpack.c.h.b16 %v4942
    %v5334 = vunpack.c.l.b16 %v4943
    %v5335 = vunpack.c.h.b16 %v4943
    %v5336 = vunpack.c.l.b16 %v4944
    %v5337 = vunpack.c.h.b16 %v4944
    %v5338 = vunpack.c.l.b16 %v4945
    %v5339 = vunpack.c.h.b16 %v4945
    %v5340 = vunpack.c.l.b16 %v4946
    %v5341 = vunpack.c.h.b16 %v4946
    %v5342 = vunpack.c.l.b16 %v4947
    %v5343 = vunpack.c.h.b16 %v4947
    %v5344 = vunpack.c.l.b16 %v4948
    %v5345 = vunpack.c.h.b16 %v4948
    %v5346 = vunpack.c.l.b16 %v4949
    %v5347 = vunpack.c.h.b16 %v4949
    %v5348 = vunpack.c.l.b16 %v4950
    %v5349 = vunpack.c.h.b16 %v4950
    %v5350 = vunpack.c.l.b16 %v4951
    %v5351 = vunpack.c.h.b16 %v4951
    %v5352 = vunpack.c.l.b16 %v4952
    %v5353 = vunpack.c.h.b16 %v4952
    %v5354 = vunpack.c.l.b16 %v4953
    %v5355 = vunpack.c.h.b16 %v4953
    %v5356 = vunpack.c.l.b16 %v4954
    %v5357 = vunpack.c.h.b16 %v4954
    %v5358 = vunpack.c.l.b16 %v4955
    %v5359 = vunpack.c.h.b16 %v4955
    %v5360 = vunpack.c.l.b16 %v4956
    %v5361 = vunpack.c.h.b16 %v4956
    %v5362 = vunpack.c.l.b16 %v4957
    %v5363 = vunpack.c.h.b16 %v4957
    %v5364 = vpack.c.b16 %v5112, %v5108
    %v5365 = vpack.c.b16 %v5113, %v5109
    %v5366 = vpack.c.b16 %v5114, %v5110
    %v5367 = vpack.c.b16 %v5115, %v5111
    %v5368 = vpack.c.b16 %v5120, %v5116
    %v5369 = vpack.c.b16 %v5121, %v5117
    %v5370 = vpack.c.b16 %v5122, %v5118
    %v5371 = vpack.c.b16 %v5123, %v5119
    %v5372 = vpack.c.b16 %v5128, %v5124
    %v5373 = vpack.c.b16 %v5129, %v5125
    %v5374 = vpack.c.b16 %v5130, %v5126
    %v5375 = vpack.c.b16 %v5131, %v5127
    %v5376 = vpack.c.b16 %v5136, %v5132
    %v5377 = vpack.c.b16 %v5137, %v5133
    %v5378 = vpack.c.b16 %v5138, %v5134
    %v5379 = vpack.c.b16 %v5139, %v5135
    %v5380 = vpack.c.b16 %v5144, %v5140
    %v5381 = vpack.c.b16 %v5145, %v5141
    %v5382 = vpack.c.b16 %v5146, %v5142
    %v5383 = vpack.c.b16 %v5147, %v5143
    %v5384 = vpack.c.b16 %v5152, %v5148
    %v5385 = vpack.c.b16 %v5153, %v5149
    %v5386 = vpack.c.b16 %v5154, %v5150
    %v5387 = vpack.c.b16 %v5155, %v5151
    %v5388 = vpack.c.b16 %v5160, %v5156
    %v5389 = vpack.c.b16 %v5161, %v5157
    %v5390 = vpack.c.b16 %v5162, %v5158
    %v5391 = vpack.c.b16 %v5163, %v5159
    %v5392 = vpack.c.b16 %v5168, %v5164
    %v5393 = vpack.c.b16 %v5169, %v5165
    %v5394 = vpack.c.b16 %v5170, %v5166
    %v5395 = vpack.c.b16 %v5171, %v5167
    %v5396 = vpack.c.b16 %v5176, %v5172
    %v5397 = vpack.c.b16 %v5177, %v5173
    %v5398 = vpack.c.b16 %v5178, %v5174
    %v5399 = vpack.c.b16 %v5179, %v5175
    %v5400 = vpack.c.b16 %v5184, %v5180
    %v5401 = vpack.c.b16 %v5185, %v5181
    %v5402 = vpack.c.b16 %v5186, %v5182
    %v5403 = vpack.c.b16 %v5187, %v5183
    %v5404 = vpack.c.b16 %v5192, %v5188
    %v5405 = vpack.c.b16 %v5193, %v5189
    %v5406 = vpack.c.b16 %v5194, %v5190
    %v5407 = vpack.c.b16 %v5195, %v5191
    %v5408 = vpack.c.b16 %v5200, %v5196
    %v5409 = vpack.c.b16 %v5201, %v5197
    %v5410 = vpack.c.b16 %v5202, %v5198
    %v5411 = vpack.c.b16 %v5203, %v5199
    %v5412 = vpack.c.b16 %v5208, %v5204
    %v5413 = vpack.c.b16 %v5209, %v5205
    %v5414 = vpack.c.b16 %v5210, %v5206
    %v5415 = vpack.c.b16 %v5211, %v5207
    %v5416 = vpack.c.b16 %v5216, %v5212
    %v5417 = vpack.c.b16 %v5217, %v5213
    %v5418 = vpack.c.b16 %v5218, %v5214
    %v5419 = vpack.c.b16 %v5219, %v5215
    %v5420 = vpack.c.b16 %v5224, %v5220
    %v5421 = vpack.c.b16 %v5225, %v5221
    %v5422 = vpack.c.b16 %v5226, %v5222
    %v5423 = vpack.c.b16 %v5227, %v5223
    %v5424 = vpack.c.b16 %v5232, %v5228
    %v5425 = vpack.c.b16 %v5233, %v5229
    %v5426 = vpack.c.b16 %v5234, %v5230
    %v5427 = vpack.c.b16 %v5235, %v5231
    %v5428 = vpack.c.b16 %v5240, %v5236
    %v5429 = vpack.c.b16 %v5241, %v5237
    %v5430 = vpack.c.b16 %v5242, %v5238
    %v5431 = vpack.c.b16 %v5243, %v5239
    %v5432 = vpack.c.b16 %v5248, %v5244
    %v5433 = vpack.c.b16 %v5249, %v5245
    %v5434 = vpack.c.b16 %v5250, %v5246
    %v5435 = vpack.c.b16 %v5251, %v5247
    %v5436 = vpack.c.b16 %v5256, %v5252
    %v5437 = vpack.c.b16 %v5257, %v5253
    %v5438 = vpack.c.b16 %v5258, %v5254
    %v5439 = vpack.c.b16 %v5259, %v5255
    %v5440 = vpack.c.b16 %v5264, %v5260
    %v5441 = vpack.c.b16 %v5265, %v5261
    %v5442 = vpack.c.b16 %v5266, %v5262
    %v5443 = vpack.c.b16 %v5267, %v5263
    %v5444 = vpack.c.b16 %v5272, %v5268
    %v5445 = vpack.c.b16 %v5273, %v5269
    %v5446 = vpack.c.b16 %v5274, %v5270
    %v5447 = vpack.c.b16 %v5275, %v5271
    %v5448 = vpack.c.b16 %v5280, %v5276
    %v5449 = vpack.c.b16 %v5281, %v5277
    %v5450 = vpack.c.b16 %v5282, %v5278
    %v5451 = vpack.c.b16 %v5283, %v5279
    %v5452 = vpack.c.b16 %v5288, %v5284
    %v5453 = vpack.c.b16 %v5289, %v5285
    %v5454 = vpack.c.b16 %v5290, %v5286
    %v5455 = vpack.c.b16 %v5291, %v5287
    %v5456 = vpack.c.b16 %v5296, %v5292
    %v5457 = vpack.c.b16 %v5297, %v5293
    %v5458 = vpack.c.b16 %v5298, %v5294
    %v5459 = vpack.c.b16 %v5299, %v5295
    %v5460 = vpack.c.b16 %v5304, %v5300
    %v5461 = vpack.c.b16 %v5305, %v5301
    %v5462 = vpack.c.b16 %v5306, %v5302
    %v5463 = vpack.c.b16 %v5307, %v5303
    %v5464 = vpack.c.b16 %v5312, %v5308
    %v5465 = vpack.c.b16 %v5313, %v5309
    %v5466 = vpack.c.b16 %v5314, %v5310
    %v5467 = vpack.c.b16 %v5315, %v5311
    %v5468 = vpack.c.b16 %v5320, %v5316
    %v5469 = vpack.c.b16 %v5321, %v5317
    %v5470 = vpack.c.b16 %v5322, %v5318
    %v5471 = vpack.c.b16 %v5323, %v5319
    %v5472 = vpack.c.b16 %v5328, %v5324
    %v5473 = vpack.c.b16 %v5329, %v5325
    %v5474 = vpack.c.b16 %v5330, %v5326
    %v5475 = vpack.c.b16 %v5331, %v5327
    %v5476 = vpack.c.b16 %v5336, %v5332
    %v5477 = vpack.c.b16 %v5337, %v5333
    %v5478 = vpack.c.b16 %v5338, %v5334
    %v5479 = vpack.c.b16 %v5339, %v5335
    %v5480 = vpack.c.b16 %v5344, %v5340
    %v5481 = vpack.c.b16 %v5345, %v5341
    %v5482 = vpack.c.b16 %v5346, %v5342
    %v5483 = vpack.c.b16 %v5347, %v5343
    %v5484 = vpack.c.b16 %v5352, %v5348
    %v5485 = vpack.c.b16 %v5353, %v5349
    %v5486 = vpack.c.b16 %v5354, %v5350
    %v5487 = vpack.c.b16 %v5355, %v5351
    %v5488 = vpack.c.b16 %v5360, %v5356
    %v5489 = vpack.c.b16 %v5361, %v5357
    %v5490 = vpack.c.b16 %v5362, %v5358
    %v5491 = vpack.c.b16 %v5363, %v5359
    %5620 = vmatprep.subr.bf16.mxu0 %v5393
    %5621 = vmatpush1.bf16.msra.mxu0 %v5392
    %5622 = vmatprep.subr.bf16.mxu0 %v5389
    %5623 = vmatpush1.bf16.msra.mxu0 %v5388
    %5624 = vmatprep.subr.bf16.mxu0 %v5385
    %5625 = vmatpush1.bf16.msra.mxu0 %v5384
    %5626 = vmatprep.subr.bf16.mxu0 %v5381
    %5627 = vmatpush1.bf16.msra.mxu0 %v5380
    %5628 = vmatprep.subr.bf16.mxu0 %v5377
    %5629 = vmatpush1.bf16.msra.mxu0 %v5376
    %5630 = vmatprep.subr.bf16.mxu0 %v5373
    %5631 = vmatpush1.bf16.msra.mxu0 %v5372
    %5632 = vmatprep.subr.bf16.mxu0 %v5369
    %5633 = vmatpush1.bf16.msra.mxu0 %v5368
    %5634 = vmatprep.subr.bf16.mxu0 %v5365
    %5635 = vmatpush1.bf16.msra.mxu0 %v5364
    %5636 = vmatprep.subr.bf16.mxu0 %v5425
    %5637 = vmatpush2.bf16.msra.mxu0 %v5424
    %5638 = vmatprep.subr.bf16.mxu0 %v5421
    %5639 = vmatpush2.bf16.msra.mxu0 %v5420
    %5640 = vmatprep.subr.bf16.mxu0 %v5417
    %5641 = vmatpush2.bf16.msra.mxu0 %v5416
    %5642 = vmatprep.subr.bf16.mxu0 %v5413
    %5643 = vmatpush2.bf16.msra.mxu0 %v5412
    %5644 = vmatprep.subr.bf16.mxu0 %v5409
    %5645 = vmatpush2.bf16.msra.mxu0 %v5408
    %5646 = vmatprep.subr.bf16.mxu0 %v5405
    %5647 = vmatpush2.bf16.msra.mxu0 %v5404
    %5648 = vmatprep.subr.bf16.mxu0 %v5401
    %5649 = vmatpush2.bf16.msra.mxu0 %v5400
    %5650 = vmatprep.subr.bf16.mxu0 %v5397
    %5651 = vmatpush2.bf16.msra.mxu0 %v5396
    %5652 = vmatprep.mubr.bf16.mxu0 %v4820
    %5653 = vmatmul.mubr.bf16.gmra.mxu0 %v4816
    %v5654 = vpop.f32.mrf.mxu0
    %v5655 = vadd.f32 %v4963, %v5654
    %v5656 = vpop.f32.mrf.mxu0
    %v5657 = vadd.f32 %v4967, %v5656
    %v5658 = vpop.f32.mrf.mxu0
    %v5659 = vadd.f32 %v4963, %v5658
    %v5660 = vpop.f32.mrf.mxu0
    %v5661 = vadd.f32 %v4967, %v5660
    %5662 = vdwg.mxu0
    %5663 = vmatprep.subr.bf16.mxu0 %v5457
    %5664 = vmatpush1.bf16.msra.mxu0 %v5456
    %5665 = vmatprep.subr.bf16.mxu0 %v5453
    %5666 = vmatpush1.bf16.msra.mxu0 %v5452
    %5667 = vmatprep.subr.bf16.mxu0 %v5449
    %5668 = vmatpush1.bf16.msra.mxu0 %v5448
    %5669 = vmatprep.subr.bf16.mxu0 %v5445
    %5670 = vmatpush1.bf16.msra.mxu0 %v5444
    %5671 = vmatprep.subr.bf16.mxu0 %v5441
    %5672 = vmatpush1.bf16.msra.mxu0 %v5440
    %5673 = vmatprep.subr.bf16.mxu0 %v5437
    %5674 = vmatpush1.bf16.msra.mxu0 %v5436
    %5675 = vmatprep.subr.bf16.mxu0 %v5433
    %5676 = vmatpush1.bf16.msra.mxu0 %v5432
    %5677 = vmatprep.subr.bf16.mxu0 %v5429
    %5678 = vmatpush1.bf16.msra.mxu0 %v5428
    %5679 = vmatprep.subr.bf16.mxu0 %v5489
    %5680 = vmatpush2.bf16.msra.mxu0 %v5488
    %5681 = vmatprep.subr.bf16.mxu0 %v5485
    %5682 = vmatpush2.bf16.msra.mxu0 %v5484
    %5683 = vmatprep.subr.bf16.mxu0 %v5481
    %5684 = vmatpush2.bf16.msra.mxu0 %v5480
    %5685 = vmatprep.subr.bf16.mxu0 %v5477
    %5686 = vmatpush2.bf16.msra.mxu0 %v5476
    %5687 = vmatprep.subr.bf16.mxu0 %v5473
    %5688 = vmatpush2.bf16.msra.mxu0 %v5472
    %5689 = vmatprep.subr.bf16.mxu0 %v5469
    %5690 = vmatpush2.bf16.msra.mxu0 %v5468
    %5691 = vmatprep.subr.bf16.mxu0 %v5465
    %5692 = vmatpush2.bf16.msra.mxu0 %v5464
    %5693 = vmatprep.subr.bf16.mxu0 %v5461
    %5694 = vmatpush2.bf16.msra.mxu0 %v5460
    %5695 = vmatprep.mubr.bf16.mxu0 %v4828
    %5696 = vmatmul.mubr.bf16.gmra.mxu0 %v4824
    %v5697 = vpop.f32.mrf.mxu0
    %v5698 = vadd.f32 %v5655, %v5697
    %v5699 = vpop.f32.mrf.mxu0
    %v5700 = vadd.f32 %v5657, %v5699
    %v5701 = vpop.f32.mrf.mxu0
    %v5702 = vadd.f32 %v5659, %v5701
    %v5703 = vpop.f32.mrf.mxu0
    %v5704 = vadd.f32 %v5661, %v5703
    %5705 = vdwg.mxu0
    %5706 = vmatprep.subr.bf16.mxu0 %v5395
    %5707 = vmatpush1.bf16.msra.mxu0 %v5394
    %5708 = vmatprep.subr.bf16.mxu0 %v5391
    %5709 = vmatpush1.bf16.msra.mxu0 %v5390
    %5710 = vmatprep.subr.bf16.mxu0 %v5387
    %5711 = vmatpush1.bf16.msra.mxu0 %v5386
    %5712 = vmatprep.subr.bf16.mxu0 %v5383
    %5713 = vmatpush1.bf16.msra.mxu0 %v5382
    %5714 = vmatprep.subr.bf16.mxu0 %v5379
    %5715 = vmatpush1.bf16.msra.mxu0 %v5378
    %5716 = vmatprep.subr.bf16.mxu0 %v5375
    %5717 = vmatpush1.bf16.msra.mxu0 %v5374
    %5718 = vmatprep.subr.bf16.mxu0 %v5371
    %5719 = vmatpush1.bf16.msra.mxu0 %v5370
    %5720 = vmatprep.subr.bf16.mxu0 %v5367
    %5721 = vmatpush1.bf16.msra.mxu0 %v5366
    %5722 = vmatprep.subr.bf16.mxu0 %v5427
    %5723 = vmatpush2.bf16.msra.mxu0 %v5426
    %5724 = vmatprep.subr.bf16.mxu0 %v5423
    %5725 = vmatpush2.bf16.msra.mxu0 %v5422
    %5726 = vmatprep.subr.bf16.mxu0 %v5419
    %5727 = vmatpush2.bf16.msra.mxu0 %v5418
    %5728 = vmatprep.subr.bf16.mxu0 %v5415
    %5729 = vmatpush2.bf16.msra.mxu0 %v5414
    %5730 = vmatprep.subr.bf16.mxu0 %v5411
    %5731 = vmatpush2.bf16.msra.mxu0 %v5410
    %5732 = vmatprep.subr.bf16.mxu0 %v5407
    %5733 = vmatpush2.bf16.msra.mxu0 %v5406
    %5734 = vmatprep.subr.bf16.mxu0 %v5403
    %5735 = vmatpush2.bf16.msra.mxu0 %v5402
    %5736 = vmatprep.subr.bf16.mxu0 %v5399
    %5737 = vmatpush2.bf16.msra.mxu0 %v5398
    %5738 = vmatprep.mubr.bf16.mxu0 %v4820
    %5739 = vmatmul.mubr.bf16.gmra.mxu0 %v4816
    %v5740 = vpop.f32.mrf.mxu0
    %v5741 = vadd.f32 %v4971, %v5740
    %v5742 = vpop.f32.mrf.mxu0
    %v5743 = vadd.f32 %v4975, %v5742
    %v5744 = vpop.f32.mrf.mxu0
    %v5745 = vadd.f32 %v4971, %v5744
    %v5746 = vpop.f32.mrf.mxu0
    %v5747 = vadd.f32 %v4975, %v5746
    %5748 = vdwg.mxu0
    %5749 = vmatprep.subr.bf16.mxu0 %v5459
    %5750 = vmatpush1.bf16.msra.mxu0 %v5458
    %5751 = vmatprep.subr.bf16.mxu0 %v5455
    %5752 = vmatpush1.bf16.msra.mxu0 %v5454
    %5753 = vmatprep.subr.bf16.mxu0 %v5451
    %5754 = vmatpush1.bf16.msra.mxu0 %v5450
    %5755 = vmatprep.subr.bf16.mxu0 %v5447
    %5756 = vmatpush1.bf16.msra.mxu0 %v5446
    %5757 = vmatprep.subr.bf16.mxu0 %v5443
    %5758 = vmatpush1.bf16.msra.mxu0 %v5442
    %5759 = vmatprep.subr.bf16.mxu0 %v5439
    %5760 = vmatpush1.bf16.msra.mxu0 %v5438
    %5761 = vmatprep.subr.bf16.mxu0 %v5435
    %5762 = vmatpush1.bf16.msra.mxu0 %v5434
    %5763 = vmatprep.subr.bf16.mxu0 %v5431
    %5764 = vmatpush1.bf16.msra.mxu0 %v5430
    %5765 = vmatprep.subr.bf16.mxu0 %v5491
    %5766 = vmatpush2.bf16.msra.mxu0 %v5490
    %5767 = vmatprep.subr.bf16.mxu0 %v5487
    %5768 = vmatpush2.bf16.msra.mxu0 %v5486
    %5769 = vmatprep.subr.bf16.mxu0 %v5483
    %5770 = vmatpush2.bf16.msra.mxu0 %v5482
    %5771 = vmatprep.subr.bf16.mxu0 %v5479
    %5772 = vmatpush2.bf16.msra.mxu0 %v5478
    %5773 = vmatprep.subr.bf16.mxu0 %v5475
    %5774 = vmatpush2.bf16.msra.mxu0 %v5474
    %5775 = vmatprep.subr.bf16.mxu0 %v5471
    %5776 = vmatpush2.bf16.msra.mxu0 %v5470
    %5777 = vmatprep.subr.bf16.mxu0 %v5467
    %5778 = vmatpush2.bf16.msra.mxu0 %v5466
    %5779 = vmatprep.subr.bf16.mxu0 %v5463
    %5780 = vmatpush2.bf16.msra.mxu0 %v5462
    %5781 = vmatprep.mubr.bf16.mxu0 %v4828
    %5782 = vmatmul.mubr.bf16.gmra.mxu0 %v4824
    %v5783 = vpop.f32.mrf.mxu0
    %v5784 = vadd.f32 %v5741, %v5783
    %v5785 = vpop.f32.mrf.mxu0
    %v5786 = vadd.f32 %v5743, %v5785
    %v5787 = vpop.f32.mrf.mxu0
    %v5788 = vadd.f32 %v5745, %v5787
    %v5789 = vpop.f32.mrf.mxu0
    %v5790 = vadd.f32 %v5747, %v5789
    %5791 = vdwg.mxu0
    %v5792 = vunpack.c.l.bf16 %v49
    %v5793 = vunpack.c.h.bf16 %v49
    %v5794 = vunpack.c.l.bf16 %v50
    %v5795 = vunpack.c.h.bf16 %v50
    %v5796 = vunpack.c.l.bf16 %v51
    %v5797 = vunpack.c.h.bf16 %v51
    %v5798 = vunpack.c.l.bf16 %v52
    %v5799 = vunpack.c.h.bf16 %v52
    %v5800 = vadd.f32 %v5698, %v5792
    %v5801 = vadd.f32 %v5700, %v5793
    %v5802 = vadd.f32 %v5784, %v5794
    %v5803 = vadd.f32 %v5786, %v5795
    %v5804 = vadd.f32 %v5702, %v5796
    %v5805 = vadd.f32 %v5704, %v5797
    %v5806 = vadd.f32 %v5788, %v5798
    %v5807 = vadd.f32 %v5790, %v5799
    %v5808 = vadd.f32 %v5800, %v5801
    %v5809 = vadd.f32 %v5808, %v5802
    %v5810 = vadd.f32 %v5809, %v5803
    %5811 = vadd.xlane.f32.xlu0 %v5810
    %v5812 = vpop.xlane.xlu0 %5811
    %v5813 = vadd.f32 %v5804, %v5805
    %v5814 = vadd.f32 %v5813, %v5806
    %v5815 = vadd.f32 %v5814, %v5807
    %5816 = vadd.xlane.f32.xlu0 %v5815
    %v5817 = vpop.xlane.xlu0 %5816
    %v5818 = vrcp.pop 512.0
    %v5819 = vmul.f32 %v5812, %v5818
    %v5820 = vmul.f32 %v5817, %v5818
    %v5821 = vsub.f32 %v5800, %v5819
    %v5822 = vsub.f32 %v5801, %v5819
    %v5823 = vsub.f32 %v5802, %v5819
    %v5824 = vsub.f32 %v5803, %v5819
    %v5825 = vsub.f32 %v5804, %v5820
    %v5826 = vsub.f32 %v5805, %v5820
    %v5827 = vsub.f32 %v5806, %v5820
    %v5828 = vsub.f32 %v5807, %v5820
    %v5829 = vmul.f32 %v5821, %v5821
    %v5830 = vmul.f32 %v5822, %v5822
    %v5831 = vmul.f32 %v5823, %v5823
    %v5832 = vmul.f32 %v5824, %v5824
    %v5833 = vmul.f32 %v5825, %v5825
    %v5834 = vmul.f32 %v5826, %v5826
    %v5835 = vmul.f32 %v5827, %v5827
    %v5836 = vmul.f32 %v5828, %v5828
    %v5837 = vadd.f32 %v5829, %v5830
    %v5838 = vadd.f32 %v5837, %v5831
    %v5839 = vadd.f32 %v5838, %v5832
    %5840 = vadd.xlane.f32.xlu0 %v5839
    %v5841 = vpop.xlane.xlu0 %5840
    %v5842 = vadd.f32 %v5833, %v5834
    %v5843 = vadd.f32 %v5842, %v5835
    %v5844 = vadd.f32 %v5843, %v5836
    %5845 = vadd.xlane.f32.xlu0 %v5844
    %v5846 = vpop.xlane.xlu0 %5845
    %v5847 = vmul.f32 %v5841, %v5818
    %v5848 = vmul.f32 %v5846, %v5818
    %v5849 = vadd.f32 %v5847, 1e-05
    %v5850 = vadd.f32 %v5848, 1e-05
    %v5851 = vrsqrt.pop %v5849
    %v5852 = vrsqrt.pop %v5850
    %v5853 = vmul.f32 %v5821, %v5851
    %v5854 = vmul.f32 %v5822, %v5851
    %v5855 = vmul.f32 %v5823, %v5851
    %v5856 = vmul.f32 %v5824, %v5851
    %v5857 = vmul.f32 %v5825, %v5852
    %v5858 = vmul.f32 %v5826, %v5852
    %v5859 = vmul.f32 %v5827, %v5852
    %v5860 = vmul.f32 %v5828, %v5852
    %v5861 = vld [vmem:[%s12] sm:$0xf]
    %v5863 = vlaneseq
    %v5864 = vshrl.u32 %v5863, 7
    %v5865 = vsub.s32 0, %v5864
    %v5866 = vrot.slane %v5861, %v5865
    %v5867 = vlaneseq
    %v5868 = vshrl.u32 %v5867, 7
    %v5869 = vsub.s32 1, %v5868
    %v5870 = vrot.slane %v5861, %v5869
    %v5871 = vlaneseq
    %v5872 = vshrl.u32 %v5871, 7
    %v5873 = vsub.s32 2, %v5872
    %v5874 = vrot.slane %v5861, %v5873
    %v5875 = vlaneseq
    %v5876 = vshrl.u32 %v5875, 7
    %v5877 = vsub.s32 3, %v5876
    %v5878 = vrot.slane %v5861, %v5877
    %v5883 = vmul.f32 %v5853, %v5866
    %v5884 = vmul.f32 %v5854, %v5870
    %v5885 = vmul.f32 %v5855, %v5874
    %v5886 = vmul.f32 %v5856, %v5878
    %v5887 = vmul.f32 %v5857, %v5866
    %v5888 = vmul.f32 %v5858, %v5870
    %v5889 = vmul.f32 %v5859, %v5874
    %v5890 = vmul.f32 %v5860, %v5878
    %v5891 = vld [vmem:[%s13] sm:$0xf]
    %v5893 = vlaneseq
    %v5894 = vshrl.u32 %v5893, 7
    %v5895 = vsub.s32 0, %v5894
    %v5896 = vrot.slane %v5891, %v5895
    %v5897 = vlaneseq
    %v5898 = vshrl.u32 %v5897, 7
    %v5899 = vsub.s32 1, %v5898
    %v5900 = vrot.slane %v5891, %v5899
    %v5901 = vlaneseq
    %v5902 = vshrl.u32 %v5901, 7
    %v5903 = vsub.s32 2, %v5902
    %v5904 = vrot.slane %v5891, %v5903
    %v5905 = vlaneseq
    %v5906 = vshrl.u32 %v5905, 7
    %v5907 = vsub.s32 3, %v5906
    %v5908 = vrot.slane %v5891, %v5907
    %v5913 = vadd.f32 %v5883, %v5896
    %v5914 = vadd.f32 %v5884, %v5900
    %v5915 = vadd.f32 %v5885, %v5904
    %v5916 = vadd.f32 %v5886, %v5908
    %v5917 = vadd.f32 %v5887, %v5896
    %v5918 = vadd.f32 %v5888, %v5900
    %v5919 = vadd.f32 %v5889, %v5904
    %v5920 = vadd.f32 %v5890, %v5908
    %5921 = vst [vmem:[#allocation2] sm:$0xff] %v5913
    %5922 = vst [vmem:[#allocation2 + $0x8] sm:$0xff] %v5914
    %5923 = vst [vmem:[#allocation2 + $0x10] sm:$0xff] %v5915
    %5924 = vst [vmem:[#allocation2 + $0x18] sm:$0xff] %v5916
    %5925 = vst [vmem:[#allocation2 + $0x20] sm:$0xff] %v5917
    %5926 = vst [vmem:[#allocation2 + $0x28] sm:$0xff] %v5918
    %5927 = vst [vmem:[#allocation2 + $0x30] sm:$0xff] %v5919
    %5928 = vst [vmem:[#allocation2 + $0x38] sm:$0xff] %v5920
    // Predicated region
    $region58: #{multi_head_attention.1} parent=1 // pred_check
      _
    $region59: #{multi_head_attention.1} parent=1 // pred_check_branch
      %5930 = sbr.rel (0) target = $region61
    $region60: #{multi_head_attention.1} parent=1 // pred_region
      %s5932 = ssub.s32 1024, 1024
      %5933 = vsyncadd [#allocation3], %s5932
      %s5934 = sshll.u32 [#allocation2], 4
      %s5935 = int_to_ptr.vmem [resolvable:$true] %s5934
      %5940 = dma.vmem_to_hbm [thread:$0]  %s5935, 1024, %s14, [#allocation3], 512, 512, 32
    $region61: #{multi_head_attention.1} parent=1 // pred_fallthru
      _
    // Predicated region
    $region62: #{multi_head_attention.1} parent=1 // pred_check
      _
    $region63: #{multi_head_attention.1} parent=1 // pred_check_branch
      %5942 = sbr.rel (0) target = $region65
    $region64: #{multi_head_attention.1} parent=1 // pred_region
      %5943 = dma.done [#allocation3], 1024
    $region65: #{multi_head_attention.1} parent=1 // pred_fallthru
      _
    %5944 = vsyncpa [#allocation3], 1

</llo_original>
